<compile_context>
chip_gen: v5e
topology: v5e:2x2
jax: 0.10.0
libtpu: 0.0.40
codegen_flags: <defaults>
</compile_context>

<pallas_src>
import numpy as np
import jax
import jax.numpy as jnp
from jax.experimental import pallas as pl
from jax.experimental.pallas import tpu as pltpu


# ----------------------------- Fused Pallas kernel ----------------------------- #

def _build_depthnet_kernel(N, stage_shapes):
    """stage_shapes: list of (H, W, Cin, Cmid) per stage (input spatial / channels)."""
    n_stage = len(stage_shapes)

    def kernel(*refs):
        x_ref = refs[0]
        w_refs = refs[1:1 + 4 * n_stage]                 # (w1, w2_flat, w3, vecs) x stage
        o_refs = refs[1 + 4 * n_stage:1 + 5 * n_stage]   # one output per stage
        pad_refs = refs[1 + 5 * n_stage:]                # one padded-scratch per stage

        x = x_ref[...]                                   # (N*H0*W0, Cin0)
        for s, (H, W, Cin, C) in enumerate(stage_shapes):
            Ho, Wo = H // 2, W // 2
            w1_ref, w2_ref, w3_ref, vec_ref = w_refs[4 * s:4 * s + 4]
            pad_ref = pad_refs[s]
            vecs = vec_ref[...]                          # (5, C): b1, b2, bn_s, bn_b, b3

            # --- conv1x1 (a): flat matmul on the VMEM-resident activations ---
            y1 = jnp.dot(x, w1_ref[...], preferred_element_type=jnp.float32)
            y1 = y1 + vecs[0:1, :]

            # --- zero-padded spatial layout in VMEM scratch (pad=1 each side) ---
            pad_ref[...] = jnp.zeros(pad_ref.shape, jnp.float32)
            pad_ref[:, 1:H + 1, 1:W + 1, :] = y1.reshape(N, H, W, C)

            # Stride-2 parity view of the padded buffer:
            #   p6[n, a, p, b, q, c] == padded[n, 2a+p, 2b+q, c]
            p6 = pad_ref[...].reshape(N, Ho + 1, 2, Wo + 1, 2, C)

            # --- im2col: 9 taps concatenated along channels -> one MXU matmul ---
            taps = []
            for ky in range(3):
                for kx in range(3):
                    r, c = ky % 2, kx % 2
                    oh, ow = ky // 2, kx // 2
                    tap = p6[:, oh:oh + Ho, r:r + 1, ow:ow + Wo, c:c + 1, :]
                    taps.append(tap.reshape(N * Ho * Wo, C))
            patches = jnp.concatenate(taps, axis=-1)     # (N*Ho*Wo, 9*C)

            # --- conv3x3 stride2 (+bias) + BatchNorm (eval, folded) + ReLU ---
            y2 = jnp.dot(patches, w2_ref[...], preferred_element_type=jnp.float32)
            y2 = y2 + vecs[1:2, :]
            y2 = jnp.maximum(y2 * vecs[2:3, :] + vecs[3:4, :], 0.0)

            # --- conv1x1 (b) ---
            y3 = jnp.dot(y2, w3_ref[...], preferred_element_type=jnp.float32)
            y3 = y3 + vecs[4:5, :]

            o_refs[s][...] = y3.astype(o_refs[s].dtype)
            x = y3                                       # next stage input (M halves 4x)

    return kernel


def _full_block_spec(shape):
    return pl.BlockSpec(tuple(shape), lambda i, n=len(shape): (0,) * n)


# ------------------------------- Parameters -------------------------------- #

def init_params(key, input_dim=1, inter_dim=(4, 16, 32, 64), eps=1e-5):
    """Kaiming-normal (fan_in, gain=sqrt(2)) conv weights, zero biases, default BN."""
    params = []
    cin = input_dim
    for cmid in inter_dim:
        k1, k2, k3, key = jax.random.split(key, 4)
        params.append({
            # conv1x1 (a): weights stored as (Cin, Cout)
            "w1": (np.sqrt(2.0 / cin) *
                   jax.random.normal(k1, (cin, cmid), jnp.float32)),
            "b1": jnp.zeros((cmid,), jnp.float32),
            # conv3x3 stride2: weights stored HWIO (3, 3, Cin, Cout)
            "w2": (np.sqrt(2.0 / (cmid * 9)) *
                   jax.random.normal(k2, (3, 3, cmid, cmid), jnp.float32)),
            "b2": jnp.zeros((cmid,), jnp.float32),
            # BatchNorm2d (eval, default stats) folded to scale/shift
            "bn_scale": jnp.full((cmid,), 1.0 / np.sqrt(1.0 + eps), jnp.float32),
            "bn_shift": jnp.zeros((cmid,), jnp.float32),
            # conv1x1 (b)
            "w3": (np.sqrt(2.0 / cmid) *
                   jax.random.normal(k3, (cmid, cmid), jnp.float32)),
            "b3": jnp.zeros((cmid,), jnp.float32),
        })
        cin = cmid
    return params


# ------------------------------ Forward pass -------------------------------- #

@jax.jit
def depthnet_forward(dp_nchw, params):
    """Returns [feat0, feat1, feat2, feat3] in NCHW, matching the PyTorch module."""
    N, Cin, H, W = dp_nchw.shape
    x = jnp.transpose(dp_nchw, (0, 2, 3, 1)).astype(jnp.float32)
    x = x.reshape(N * H * W, Cin)

    stage_shapes = []
    kernel_inputs = [x]
    in_specs = [_full_block_spec(x.shape)]
    out_shapes, out_specs, scratch_shapes = [], [], []

    h, w, cin = H, W, Cin
    for p in params:
        C = p["w1"].shape[1]
        ho, wo = h // 2, w // 2
        stage_shapes.append((h, w, cin, C))

        w2_flat = p["w2"].reshape(9 * C, C)                       # contiguous (9C, C) slab
        vecs = jnp.stack([p["b1"], p["b2"], p["bn_scale"],
                          p["bn_shift"], p["b3"]])                # (5, C)
        for arr in (p["w1"], w2_flat, p["w3"], vecs):
            kernel_inputs.append(arr)
            in_specs.append(_full_block_spec(arr.shape))

        out_shapes.append(jax.ShapeDtypeStruct((N * ho * wo, C), jnp.float32))
        out_specs.append(_full_block_spec((N * ho * wo, C)))
        scratch_shapes.append(pltpu.VMEM((N, h + 2, w + 2, C), jnp.float32))
        h, w, cin = ho, wo, C

    outs = pl.pallas_call(
        _build_depthnet_kernel(N, stage_shapes),
        out_shape=tuple(out_shapes),
        grid=(1,),
        in_specs=in_specs,
        out_specs=tuple(out_specs),
        scratch_shapes=scratch_shapes,
        compiler_params=pltpu.CompilerParams(dimension_semantics=("arbitrary",)),
    )(*kernel_inputs)

    feats = []
    h, w = H, W
    for p, o in zip(params, outs):
        C = p["w1"].shape[1]
        h, w = h // 2, w // 2
        feats.append(jnp.transpose(o.reshape(N, h, w, C), (0, 3, 1, 2)))  # NCHW
    return feats


# ------------------------ Pure-JAX reference (check) ------------------------ #

def _conv_ref(x_nhwc, w_hwio, b, stride, padding):
    y = jax.lax.conv_general_dilated(
        x_nhwc, w_hwio, window_strides=(stride, stride),
        padding=((padding, padding), (padding, padding)),
        dimension_numbers=("NHWC", "HWIO", "NHWC"))
    return y + b[None, None, None, :]


def reference_forward(dp_nchw, params):
    x = jnp.transpose(dp_nchw, (0, 2, 3, 1)).astype(jnp.float32)
    feats = []
    for p in params:
        y = _conv_ref(x, p["w1"][None, None], p["b1"], 1, 0)
        y = _conv_ref(y, p["w2"], p["b2"], 2, 1)
        y = y * p["bn_scale"][None, None, None, :] + p["bn_shift"][None, None, None, :]
        y = jnp.maximum(y, 0.0)
        y = _conv_ref(y, p["w3"][None, None], p["b3"], 1, 0)
        feats.append(jnp.transpose(y, (0, 3, 1, 2)))
        x = y
    return feats


# ---------------------------------- Main ------------------------------------ #

if __name__ == "__main__":
    key = jax.random.PRNGKey(0)
    k_in, k_par = jax.random.split(key)

    N, Cin, H, W = 2, 1, 16, 16
    inter_dim = (4, 16, 32, 64)

    dp = jax.random.normal(k_in, (N, Cin, H, W), dtype=jnp.float32)
    params = init_params(k_par, input_dim=Cin, inter_dim=inter_dim)

    feats = depthnet_forward(dp, params)
    feats = jax.block_until_ready(feats)

    refs = reference_forward(dp, params)
    expected_shapes = [(N, 4, 8, 8), (N, 16, 4, 4), (N, 32, 2, 2), (N, 64, 1, 1)]
    for f, r, s in zip(feats, refs, expected_shapes):
        assert f.shape == s, (f.shape, s)
        np.testing.assert_allclose(np.asarray(f), np.asarray(r),
                                   rtol=1e-4, atol=1e-4)

    print("KERNEL_OK")
</pallas_src>

<mosaic_0001>
module attributes {stable_mosaic.version = 11 : i64} {
  func.func @kernel(%arg0: i32, %arg1: memref<512x1xf32, #tpu.memory_space<vmem>>, %arg2: memref<1x4xf32, #tpu.memory_space<vmem>>, %arg3: memref<36x4xf32, #tpu.memory_space<vmem>>, %arg4: memref<4x4xf32, #tpu.memory_space<vmem>>, %arg5: memref<5x4xf32, #tpu.memory_space<vmem>>, %arg6: memref<4x16xf32, #tpu.memory_space<vmem>>, %arg7: memref<144x16xf32, #tpu.memory_space<vmem>>, %arg8: memref<16x16xf32, #tpu.memory_space<vmem>>, %arg9: memref<5x16xf32, #tpu.memory_space<vmem>>, %arg10: memref<16x32xf32, #tpu.memory_space<vmem>>, %arg11: memref<288x32xf32, #tpu.memory_space<vmem>>, %arg12: memref<32x32xf32, #tpu.memory_space<vmem>>, %arg13: memref<5x32xf32, #tpu.memory_space<vmem>>, %arg14: memref<32x64xf32, #tpu.memory_space<vmem>>, %arg15: memref<576x64xf32, #tpu.memory_space<vmem>>, %arg16: memref<64x64xf32, #tpu.memory_space<vmem>>, %arg17: memref<5x64xf32, #tpu.memory_space<vmem>>, %arg18: memref<128x4xf32, #tpu.memory_space<vmem>>, %arg19: memref<32x16xf32, #tpu.memory_space<vmem>>, %arg20: memref<8x32xf32, #tpu.memory_space<vmem>>, %arg21: memref<2x64xf32, #tpu.memory_space<vmem>>, %arg22: memref<2x18x18x4xf32, #tpu.memory_space<vmem>>, %arg23: memref<2x10x10x16xf32, #tpu.memory_space<vmem>>, %arg24: memref<2x6x6x32xf32, #tpu.memory_space<vmem>>, %arg25: memref<2x4x4x64xf32, #tpu.memory_space<vmem>>) attributes {dimension_semantics = [#tpu.dimension_semantics<arbitrary>], iteration_bounds = array<i64: 1>, scalar_prefetch = 0 : i64, scratch_operands = 4 : i64, tpu.core_type = #tpu.core_type<tc>, window_params = [{pipeline_mode = #tpu.pipeline_mode<synchronous>, transform_indices = @transform_0, window_bounds = array<i64: 512, 1>}, {pipeline_mode = #tpu.pipeline_mode<synchronous>, transform_indices = @transform_1, window_bounds = array<i64: 1, 4>}, {pipeline_mode = #tpu.pipeline_mode<synchronous>, transform_indices = @transform_2, window_bounds = array<i64: 36, 4>}, {pipeline_mode = #tpu.pipeline_mode<synchronous>, transform_indices = @transform_3, window_bounds = array<i64: 4, 4>}, {pipeline_mode = #tpu.pipeline_mode<synchronous>, transform_indices = @transform_4, window_bounds = array<i64: 5, 4>}, {pipeline_mode = #tpu.pipeline_mode<synchronous>, transform_indices = @transform_5, window_bounds = array<i64: 4, 16>}, {pipeline_mode = #tpu.pipeline_mode<synchronous>, transform_indices = @transform_6, window_bounds = array<i64: 144, 16>}, {pipeline_mode = #tpu.pipeline_mode<synchronous>, transform_indices = @transform_7, window_bounds = array<i64: 16, 16>}, {pipeline_mode = #tpu.pipeline_mode<synchronous>, transform_indices = @transform_8, window_bounds = array<i64: 5, 16>}, {pipeline_mode = #tpu.pipeline_mode<synchronous>, transform_indices = @transform_9, window_bounds = array<i64: 16, 32>}, {pipeline_mode = #tpu.pipeline_mode<synchronous>, transform_indices = @transform_10, window_bounds = array<i64: 288, 32>}, {pipeline_mode = #tpu.pipeline_mode<synchronous>, transform_indices = @transform_11, window_bounds = array<i64: 32, 32>}, {pipeline_mode = #tpu.pipeline_mode<synchronous>, transform_indices = @transform_12, window_bounds = array<i64: 5, 32>}, {pipeline_mode = #tpu.pipeline_mode<synchronous>, transform_indices = @transform_13, window_bounds = array<i64: 32, 64>}, {pipeline_mode = #tpu.pipeline_mode<synchronous>, transform_indices = @transform_14, window_bounds = array<i64: 576, 64>}, {pipeline_mode = #tpu.pipeline_mode<synchronous>, transform_indices = @transform_15, window_bounds = array<i64: 64, 64>}, {pipeline_mode = #tpu.pipeline_mode<synchronous>, transform_indices = @transform_16, window_bounds = array<i64: 5, 64>}, {pipeline_mode = #tpu.pipeline_mode<synchronous>, transform_indices = @transform_17, window_bounds = array<i64: 128, 4>}, {pipeline_mode = #tpu.pipeline_mode<synchronous>, transform_indices = @transform_18, window_bounds = array<i64: 32, 16>}, {pipeline_mode = #tpu.pipeline_mode<synchronous>, transform_indices = @transform_19, window_bounds = array<i64: 8, 32>}, {pipeline_mode = #tpu.pipeline_mode<synchronous>, transform_indices = @transform_20, window_bounds = array<i64: 2, 64>}]} {
    %c0 = arith.constant 0 : index
    %c0_0 = arith.constant 0 : index
    %0 = vector.load %arg1[%c0, %c0_0] : memref<512x1xf32, #tpu.memory_space<vmem>>, vector<512x1xf32>
    %c0_1 = arith.constant 0 : index
    %c0_2 = arith.constant 0 : index
    %1 = vector.load %arg5[%c0_1, %c0_2] : memref<5x4xf32, #tpu.memory_space<vmem>>, vector<5x4xf32>
    %c0_3 = arith.constant 0 : index
    %c0_4 = arith.constant 0 : index
    %2 = vector.load %arg2[%c0_3, %c0_4] : memref<1x4xf32, #tpu.memory_space<vmem>>, vector<1x4xf32>
    %cst = arith.constant dense<0.000000e+00> : vector<512x4xf32>
    %3 = tpu.matmul %0, %2, %cst {dimension_numbers = #tpu.dot_dimension_numbers<[1], [0], [0], [1], [0, 0, 1, 1], [], []>} : vector<512x1xf32>, vector<1x4xf32>, vector<512x4xf32> -> vector<512x4xf32>
    %4 = vector.extract_strided_slice %1 {offsets = [0, 0], sizes = [1, 4], strides = [1, 1]} : vector<5x4xf32> to vector<1x4xf32>
    %5 = vector.broadcast %4 : vector<1x4xf32> to vector<512x4xf32>
    %6 = arith.addf %3, %5 : vector<512x4xf32>
    %cst_5 = arith.constant 0.000000e+00 : f32
    %7 = vector.broadcast %cst_5 : f32 to vector<2x18x18x4xf32>
    %c0_6 = arith.constant 0 : index
    %c0_7 = arith.constant 0 : index
    %c0_8 = arith.constant 0 : index
    %c0_9 = arith.constant 0 : index
    %8 = vector.load %arg22[%c0_6, %c0_7, %c0_8, %c0_9] : memref<2x18x18x4xf32, #tpu.memory_space<vmem>>, vector<2x18x18x4xf32>
    tpu.vector_store %arg22[%c0_6, %c0_7, %c0_8, %c0_9], %7 {strides = array<i32>} : memref<2x18x18x4xf32, #tpu.memory_space<vmem>>, vector<2x18x18x4xf32>,
    %9 = vector.shape_cast %6 : vector<512x4xf32> to vector<2x16x16x4xf32>
    %c0_10 = arith.constant 0 : index
    %c1 = arith.constant 1 : index
    %c1_11 = arith.constant 1 : index
    %c0_12 = arith.constant 0 : index
    %10 = vector.load %arg22[%c0_10, %c1, %c1_11, %c0_12] : memref<2x18x18x4xf32, #tpu.memory_space<vmem>>, vector<2x16x16x4xf32>
    tpu.vector_store %arg22[%c0_10, %c1, %c1_11, %c0_12], %9 {strides = array<i32>} : memref<2x18x18x4xf32, #tpu.memory_space<vmem>>, vector<2x16x16x4xf32>,
    %c0_13 = arith.constant 0 : index
    %c0_14 = arith.constant 0 : index
    %c0_15 = arith.constant 0 : index
    %c0_16 = arith.constant 0 : index
    %11 = vector.load %arg22[%c0_13, %c0_14, %c0_15, %c0_16] : memref<2x18x18x4xf32, #tpu.memory_space<vmem>>, vector<2x18x18x4xf32>
    %12 = vector.shape_cast %11 : vector<2x18x18x4xf32> to vector<2x9x2x9x2x4xf32>
    %13 = vector.extract_strided_slice %12 {offsets = [0, 0, 0, 0, 0, 0], sizes = [2, 8, 1, 8, 1, 4], strides = [1, 1, 1, 1, 1, 1]} : vector<2x9x2x9x2x4xf32> to vector<2x8x1x8x1x4xf32>
    %14 = vector.shape_cast %13 : vector<2x8x1x8x1x4xf32> to vector<128x4xf32>
    %15 = vector.extract_strided_slice %12 {offsets = [0, 0, 0, 0, 1, 0], sizes = [2, 8, 1, 8, 1, 4], strides = [1, 1, 1, 1, 1, 1]} : vector<2x9x2x9x2x4xf32> to vector<2x8x1x8x1x4xf32>
    %16 = vector.shape_cast %15 : vector<2x8x1x8x1x4xf32> to vector<128x4xf32>
    %17 = vector.extract_strided_slice %12 {offsets = [0, 0, 0, 1, 0, 0], sizes = [2, 8, 1, 8, 1, 4], strides = [1, 1, 1, 1, 1, 1]} : vector<2x9x2x9x2x4xf32> to vector<2x8x1x8x1x4xf32>
    %18 = vector.shape_cast %17 : vector<2x8x1x8x1x4xf32> to vector<128x4xf32>
    %19 = vector.extract_strided_slice %12 {offsets = [0, 0, 1, 0, 0, 0], sizes = [2, 8, 1, 8, 1, 4], strides = [1, 1, 1, 1, 1, 1]} : vector<2x9x2x9x2x4xf32> to vector<2x8x1x8x1x4xf32>
    %20 = vector.shape_cast %19 : vector<2x8x1x8x1x4xf32> to vector<128x4xf32>
    %21 = vector.extract_strided_slice %12 {offsets = [0, 0, 1, 0, 1, 0], sizes = [2, 8, 1, 8, 1, 4], strides = [1, 1, 1, 1, 1, 1]} : vector<2x9x2x9x2x4xf32> to vector<2x8x1x8x1x4xf32>
    %22 = vector.shape_cast %21 : vector<2x8x1x8x1x4xf32> to vector<128x4xf32>
    %23 = vector.extract_strided_slice %12 {offsets = [0, 0, 1, 1, 0, 0], sizes = [2, 8, 1, 8, 1, 4], strides = [1, 1, 1, 1, 1, 1]} : vector<2x9x2x9x2x4xf32> to vector<2x8x1x8x1x4xf32>
    %24 = vector.shape_cast %23 : vector<2x8x1x8x1x4xf32> to vector<128x4xf32>
    %25 = vector.extract_strided_slice %12 {offsets = [0, 1, 0, 0, 0, 0], sizes = [2, 8, 1, 8, 1, 4], strides = [1, 1, 1, 1, 1, 1]} : vector<2x9x2x9x2x4xf32> to vector<2x8x1x8x1x4xf32>
    %26 = vector.shape_cast %25 : vector<2x8x1x8x1x4xf32> to vector<128x4xf32>
    %27 = vector.extract_strided_slice %12 {offsets = [0, 1, 0, 0, 1, 0], sizes = [2, 8, 1, 8, 1, 4], strides = [1, 1, 1, 1, 1, 1]} : vector<2x9x2x9x2x4xf32> to vector<2x8x1x8x1x4xf32>
    %28 = vector.shape_cast %27 : vector<2x8x1x8x1x4xf32> to vector<128x4xf32>
    %29 = vector.extract_strided_slice %12 {offsets = [0, 1, 0, 1, 0, 0], sizes = [2, 8, 1, 8, 1, 4], strides = [1, 1, 1, 1, 1, 1]} : vector<2x9x2x9x2x4xf32> to vector<2x8x1x8x1x4xf32>
    %30 = vector.shape_cast %29 : vector<2x8x1x8x1x4xf32> to vector<128x4xf32>
    %31 = tpu.concatenate %14, %16, %18, %20, %22, %24, %26, %28, %30 in 1 : vector<128x4xf32>, vector<128x4xf32>, vector<128x4xf32>, vector<128x4xf32>, vector<128x4xf32>, vector<128x4xf32>, vector<128x4xf32>, vector<128x4xf32>, vector<128x4xf32> -> vector<128x36xf32>
    %c0_17 = arith.constant 0 : index
    %c0_18 = arith.constant 0 : index
    %32 = vector.load %arg3[%c0_17, %c0_18] : memref<36x4xf32, #tpu.memory_space<vmem>>, vector<36x4xf32>
    %cst_19 = arith.constant dense<0.000000e+00> : vector<128x4xf32>
    %33 = tpu.matmul %31, %32, %cst_19 {dimension_numbers = #tpu.dot_dimension_numbers<[1], [0], [0], [1], [0, 0, 1, 1], [], []>} : vector<128x36xf32>, vector<36x4xf32>, vector<128x4xf32> -> vector<128x4xf32>
    %34 = vector.extract_strided_slice %1 {offsets = [1, 0], sizes = [1, 4], strides = [1, 1]} : vector<5x4xf32> to vector<1x4xf32>
    %35 = vector.broadcast %34 : vector<1x4xf32> to vector<128x4xf32>
    %36 = arith.addf %33, %35 : vector<128x4xf32>
    %37 = vector.extract_strided_slice %1 {offsets = [2, 0], sizes = [1, 4], strides = [1, 1]} : vector<5x4xf32> to vector<1x4xf32>
    %38 = vector.broadcast %37 : vector<1x4xf32> to vector<128x4xf32>
    %39 = arith.mulf %36, %38 : vector<128x4xf32>
    %40 = vector.extract_strided_slice %1 {offsets = [3, 0], sizes = [1, 4], strides = [1, 1]} : vector<5x4xf32> to vector<1x4xf32>
    %41 = vector.broadcast %40 : vector<1x4xf32> to vector<128x4xf32>
    %42 = arith.addf %39, %41 : vector<128x4xf32>
    %cst_20 = arith.constant 0.000000e+00 : f32
    %43 = vector.broadcast %cst_20 : f32 to vector<128x4xf32>
    %44 = arith.maximumf %42, %43 : vector<128x4xf32>
    %c0_21 = arith.constant 0 : index
    %c0_22 = arith.constant 0 : index
    %45 = vector.load %arg4[%c0_21, %c0_22] : memref<4x4xf32, #tpu.memory_space<vmem>>, vector<4x4xf32>
    %cst_23 = arith.constant dense<0.000000e+00> : vector<128x4xf32>
    %46 = tpu.matmul %44, %45, %cst_23 {dimension_numbers = #tpu.dot_dimension_numbers<[1], [0], [0], [1], [0, 0, 1, 1], [], []>} : vector<128x4xf32>, vector<4x4xf32>, vector<128x4xf32> -> vector<128x4xf32>
    %47 = vector.extract_strided_slice %1 {offsets = [4, 0], sizes = [1, 4], strides = [1, 1]} : vector<5x4xf32> to vector<1x4xf32>
    %48 = vector.broadcast %47 : vector<1x4xf32> to vector<128x4xf32>
    %49 = arith.addf %46, %48 : vector<128x4xf32>
    %c0_24 = arith.constant 0 : index
    %c0_25 = arith.constant 0 : index
    %50 = vector.load %arg18[%c0_24, %c0_25] : memref<128x4xf32, #tpu.memory_space<vmem>>, vector<128x4xf32>
    tpu.vector_store %arg18[%c0_24, %c0_25], %49 {strides = array<i32>} : memref<128x4xf32, #tpu.memory_space<vmem>>, vector<128x4xf32>,
    %c0_26 = arith.constant 0 : index
    %c0_27 = arith.constant 0 : index
    %51 = vector.load %arg9[%c0_26, %c0_27] : memref<5x16xf32, #tpu.memory_space<vmem>>, vector<5x16xf32>
    %c0_28 = arith.constant 0 : index
    %c0_29 = arith.constant 0 : index
    %52 = vector.load %arg6[%c0_28, %c0_29] : memref<4x16xf32, #tpu.memory_space<vmem>>, vector<4x16xf32>
    %cst_30 = arith.constant dense<0.000000e+00> : vector<128x16xf32>
    %53 = tpu.matmul %49, %52, %cst_30 {dimension_numbers = #tpu.dot_dimension_numbers<[1], [0], [0], [1], [0, 0, 1, 1], [], []>} : vector<128x4xf32>, vector<4x16xf32>, vector<128x16xf32> -> vector<128x16xf32>
    %54 = vector.extract_strided_slice %51 {offsets = [0, 0], sizes = [1, 16], strides = [1, 1]} : vector<5x16xf32> to vector<1x16xf32>
    %55 = vector.broadcast %54 : vector<1x16xf32> to vector<128x16xf32>
    %56 = arith.addf %53, %55 : vector<128x16xf32>
    %cst_31 = arith.constant 0.000000e+00 : f32
    %57 = vector.broadcast %cst_31 : f32 to vector<2x10x10x16xf32>
    %c0_32 = arith.constant 0 : index
    %c0_33 = arith.constant 0 : index
    %c0_34 = arith.constant 0 : index
    %c0_35 = arith.constant 0 : index
    %58 = vector.load %arg23[%c0_32, %c0_33, %c0_34, %c0_35] : memref<2x10x10x16xf32, #tpu.memory_space<vmem>>, vector<2x10x10x16xf32>
    tpu.vector_store %arg23[%c0_32, %c0_33, %c0_34, %c0_35], %57 {strides = array<i32>} : memref<2x10x10x16xf32, #tpu.memory_space<vmem>>, vector<2x10x10x16xf32>,
    %59 = vector.shape_cast %56 : vector<128x16xf32> to vector<2x8x8x16xf32>
    %c0_36 = arith.constant 0 : index
    %c1_37 = arith.constant 1 : index
    %c1_38 = arith.constant 1 : index
    %c0_39 = arith.constant 0 : index
    %60 = vector.load %arg23[%c0_36, %c1_37, %c1_38, %c0_39] : memref<2x10x10x16xf32, #tpu.memory_space<vmem>>, vector<2x8x8x16xf32>
    tpu.vector_store %arg23[%c0_36, %c1_37, %c1_38, %c0_39], %59 {strides = array<i32>} : memref<2x10x10x16xf32, #tpu.memory_space<vmem>>, vector<2x8x8x16xf32>,
    %c0_40 = arith.constant 0 : index
    %c0_41 = arith.constant 0 : index
    %c0_42 = arith.constant 0 : index
    %c0_43 = arith.constant 0 : index
    %61 = vector.load %arg23[%c0_40, %c0_41, %c0_42, %c0_43] : memref<2x10x10x16xf32, #tpu.memory_space<vmem>>, vector<2x10x10x16xf32>
    %62 = vector.shape_cast %61 : vector<2x10x10x16xf32> to vector<2x5x2x5x2x16xf32>
    %63 = vector.extract_strided_slice %62 {offsets = [0, 0, 0, 0, 0, 0], sizes = [2, 4, 1, 4, 1, 16], strides = [1, 1, 1, 1, 1, 1]} : vector<2x5x2x5x2x16xf32> to vector<2x4x1x4x1x16xf32>
    %64 = vector.shape_cast %63 : vector<2x4x1x4x1x16xf32> to vector<32x16xf32>
    %65 = vector.extract_strided_slice %62 {offsets = [0, 0, 0, 0, 1, 0], sizes = [2, 4, 1, 4, 1, 16], strides = [1, 1, 1, 1, 1, 1]} : vector<2x5x2x5x2x16xf32> to vector<2x4x1x4x1x16xf32>
    %66 = vector.shape_cast %65 : vector<2x4x1x4x1x16xf32> to vector<32x16xf32>
    %67 = vector.extract_strided_slice %62 {offsets = [0, 0, 0, 1, 0, 0], sizes = [2, 4, 1, 4, 1, 16], strides = [1, 1, 1, 1, 1, 1]} : vector<2x5x2x5x2x16xf32> to vector<2x4x1x4x1x16xf32>
    %68 = vector.shape_cast %67 : vector<2x4x1x4x1x16xf32> to vector<32x16xf32>
    %69 = vector.extract_strided_slice %62 {offsets = [0, 0, 1, 0, 0, 0], sizes = [2, 4, 1, 4, 1, 16], strides = [1, 1, 1, 1, 1, 1]} : vector<2x5x2x5x2x16xf32> to vector<2x4x1x4x1x16xf32>
    %70 = vector.shape_cast %69 : vector<2x4x1x4x1x16xf32> to vector<32x16xf32>
    %71 = vector.extract_strided_slice %62 {offsets = [0, 0, 1, 0, 1, 0], sizes = [2, 4, 1, 4, 1, 16], strides = [1, 1, 1, 1, 1, 1]} : vector<2x5x2x5x2x16xf32> to vector<2x4x1x4x1x16xf32>
    %72 = vector.shape_cast %71 : vector<2x4x1x4x1x16xf32> to vector<32x16xf32>
    %73 = vector.extract_strided_slice %62 {offsets = [0, 0, 1, 1, 0, 0], sizes = [2, 4, 1, 4, 1, 16], strides = [1, 1, 1, 1, 1, 1]} : vector<2x5x2x5x2x16xf32> to vector<2x4x1x4x1x16xf32>
    %74 = vector.shape_cast %73 : vector<2x4x1x4x1x16xf32> to vector<32x16xf32>
    %75 = vector.extract_strided_slice %62 {offsets = [0, 1, 0, 0, 0, 0], sizes = [2, 4, 1, 4, 1, 16], strides = [1, 1, 1, 1, 1, 1]} : vector<2x5x2x5x2x16xf32> to vector<2x4x1x4x1x16xf32>
    %76 = vector.shape_cast %75 : vector<2x4x1x4x1x16xf32> to vector<32x16xf32>
    %77 = vector.extract_strided_slice %62 {offsets = [0, 1, 0, 0, 1, 0], sizes = [2, 4, 1, 4, 1, 16], strides = [1, 1, 1, 1, 1, 1]} : vector<2x5x2x5x2x16xf32> to vector<2x4x1x4x1x16xf32>
    %78 = vector.shape_cast %77 : vector<2x4x1x4x1x16xf32> to vector<32x16xf32>
    %79 = vector.extract_strided_slice %62 {offsets = [0, 1, 0, 1, 0, 0], sizes = [2, 4, 1, 4, 1, 16], strides = [1, 1, 1, 1, 1, 1]} : vector<2x5x2x5x2x16xf32> to vector<2x4x1x4x1x16xf32>
    %80 = vector.shape_cast %79 : vector<2x4x1x4x1x16xf32> to vector<32x16xf32>
    %81 = tpu.concatenate %64, %66, %68, %70, %72, %74, %76, %78, %80 in 1 : vector<32x16xf32>, vector<32x16xf32>, vector<32x16xf32>, vector<32x16xf32>, vector<32x16xf32>, vector<32x16xf32>, vector<32x16xf32>, vector<32x16xf32>, vector<32x16xf32> -> vector<32x144xf32>
    %c0_44 = arith.constant 0 : index
    %c0_45 = arith.constant 0 : index
    %82 = vector.load %arg7[%c0_44, %c0_45] : memref<144x16xf32, #tpu.memory_space<vmem>>, vector<144x16xf32>
    %cst_46 = arith.constant dense<0.000000e+00> : vector<32x16xf32>
    %83 = tpu.matmul %81, %82, %cst_46 {dimension_numbers = #tpu.dot_dimension_numbers<[1], [0], [0], [1], [0, 0, 1, 1], [], []>} : vector<32x144xf32>, vector<144x16xf32>, vector<32x16xf32> -> vector<32x16xf32>
    %84 = vector.extract_strided_slice %51 {offsets = [1, 0], sizes = [1, 16], strides = [1, 1]} : vector<5x16xf32> to vector<1x16xf32>
    %85 = vector.broadcast %84 : vector<1x16xf32> to vector<32x16xf32>
    %86 = arith.addf %83, %85 : vector<32x16xf32>
    %87 = vector.extract_strided_slice %51 {offsets = [2, 0], sizes = [1, 16], strides = [1, 1]} : vector<5x16xf32> to vector<1x16xf32>
    %88 = vector.broadcast %87 : vector<1x16xf32> to vector<32x16xf32>
    %89 = arith.mulf %86, %88 : vector<32x16xf32>
    %90 = vector.extract_strided_slice %51 {offsets = [3, 0], sizes = [1, 16], strides = [1, 1]} : vector<5x16xf32> to vector<1x16xf32>
    %91 = vector.broadcast %90 : vector<1x16xf32> to vector<32x16xf32>
    %92 = arith.addf %89, %91 : vector<32x16xf32>
    %cst_47 = arith.constant 0.000000e+00 : f32
    %93 = vector.broadcast %cst_47 : f32 to vector<32x16xf32>
    %94 = arith.maximumf %92, %93 : vector<32x16xf32>
    %c0_48 = arith.constant 0 : index
    %c0_49 = arith.constant 0 : index
    %95 = vector.load %arg8[%c0_48, %c0_49] : memref<16x16xf32, #tpu.memory_space<vmem>>, vector<16x16xf32>
    %cst_50 = arith.constant dense<0.000000e+00> : vector<32x16xf32>
    %96 = tpu.matmul %94, %95, %cst_50 {dimension_numbers = #tpu.dot_dimension_numbers<[1], [0], [0], [1], [0, 0, 1, 1], [], []>} : vector<32x16xf32>, vector<16x16xf32>, vector<32x16xf32> -> vector<32x16xf32>
    %97 = vector.extract_strided_slice %51 {offsets = [4, 0], sizes = [1, 16], strides = [1, 1]} : vector<5x16xf32> to vector<1x16xf32>
    %98 = vector.broadcast %97 : vector<1x16xf32> to vector<32x16xf32>
    %99 = arith.addf %96, %98 : vector<32x16xf32>
    %c0_51 = arith.constant 0 : index
    %c0_52 = arith.constant 0 : index
    %100 = vector.load %arg19[%c0_51, %c0_52] : memref<32x16xf32, #tpu.memory_space<vmem>>, vector<32x16xf32>
    tpu.vector_store %arg19[%c0_51, %c0_52], %99 {strides = array<i32>} : memref<32x16xf32, #tpu.memory_space<vmem>>, vector<32x16xf32>,
    %c0_53 = arith.constant 0 : index
    %c0_54 = arith.constant 0 : index
    %101 = vector.load %arg13[%c0_53, %c0_54] : memref<5x32xf32, #tpu.memory_space<vmem>>, vector<5x32xf32>
    %c0_55 = arith.constant 0 : index
    %c0_56 = arith.constant 0 : index
    %102 = vector.load %arg10[%c0_55, %c0_56] : memref<16x32xf32, #tpu.memory_space<vmem>>, vector<16x32xf32>
    %cst_57 = arith.constant dense<0.000000e+00> : vector<32x32xf32>
    %103 = tpu.matmul %99, %102, %cst_57 {dimension_numbers = #tpu.dot_dimension_numbers<[1], [0], [0], [1], [0, 0, 1, 1], [], []>} : vector<32x16xf32>, vector<16x32xf32>, vector<32x32xf32> -> vector<32x32xf32>
    %104 = vector.extract_strided_slice %101 {offsets = [0, 0], sizes = [1, 32], strides = [1, 1]} : vector<5x32xf32> to vector<1x32xf32>
    %105 = vector.broadcast %104 : vector<1x32xf32> to vector<32x32xf32>
    %106 = arith.addf %103, %105 : vector<32x32xf32>
    %cst_58 = arith.constant 0.000000e+00 : f32
    %107 = vector.broadcast %cst_58 : f32 to vector<2x6x6x32xf32>
    %c0_59 = arith.constant 0 : index
    %c0_60 = arith.constant 0 : index
    %c0_61 = arith.constant 0 : index
    %c0_62 = arith.constant 0 : index
    %108 = vector.load %arg24[%c0_59, %c0_60, %c0_61, %c0_62] : memref<2x6x6x32xf32, #tpu.memory_space<vmem>>, vector<2x6x6x32xf32>
    tpu.vector_store %arg24[%c0_59, %c0_60, %c0_61, %c0_62], %107 {strides = array<i32>} : memref<2x6x6x32xf32, #tpu.memory_space<vmem>>, vector<2x6x6x32xf32>,
    %109 = vector.shape_cast %106 : vector<32x32xf32> to vector<2x4x4x32xf32>
    %c0_63 = arith.constant 0 : index
    %c1_64 = arith.constant 1 : index
    %c1_65 = arith.constant 1 : index
    %c0_66 = arith.constant 0 : index
    %110 = vector.load %arg24[%c0_63, %c1_64, %c1_65, %c0_66] : memref<2x6x6x32xf32, #tpu.memory_space<vmem>>, vector<2x4x4x32xf32>
    tpu.vector_store %arg24[%c0_63, %c1_64, %c1_65, %c0_66], %109 {strides = array<i32>} : memref<2x6x6x32xf32, #tpu.memory_space<vmem>>, vector<2x4x4x32xf32>,
    %c0_67 = arith.constant 0 : index
    %c0_68 = arith.constant 0 : index
    %c0_69 = arith.constant 0 : index
    %c0_70 = arith.constant 0 : index
    %111 = vector.load %arg24[%c0_67, %c0_68, %c0_69, %c0_70] : memref<2x6x6x32xf32, #tpu.memory_space<vmem>>, vector<2x6x6x32xf32>
    %112 = vector.shape_cast %111 : vector<2x6x6x32xf32> to vector<2x3x2x3x2x32xf32>
    %113 = vector.extract_strided_slice %112 {offsets = [0, 0, 0, 0, 0, 0], sizes = [2, 2, 1, 2, 1, 32], strides = [1, 1, 1, 1, 1, 1]} : vector<2x3x2x3x2x32xf32> to vector<2x2x1x2x1x32xf32>
    %114 = vector.shape_cast %113 : vector<2x2x1x2x1x32xf32> to vector<8x32xf32>
    %115 = vector.extract_strided_slice %112 {offsets = [0, 0, 0, 0, 1, 0], sizes = [2, 2, 1, 2, 1, 32], strides = [1, 1, 1, 1, 1, 1]} : vector<2x3x2x3x2x32xf32> to vector<2x2x1x2x1x32xf32>
    %116 = vector.shape_cast %115 : vector<2x2x1x2x1x32xf32> to vector<8x32xf32>
    %117 = vector.extract_strided_slice %112 {offsets = [0, 0, 0, 1, 0, 0], sizes = [2, 2, 1, 2, 1, 32], strides = [1, 1, 1, 1, 1, 1]} : vector<2x3x2x3x2x32xf32> to vector<2x2x1x2x1x32xf32>
    %118 = vector.shape_cast %117 : vector<2x2x1x2x1x32xf32> to vector<8x32xf32>
    %119 = vector.extract_strided_slice %112 {offsets = [0, 0, 1, 0, 0, 0], sizes = [2, 2, 1, 2, 1, 32], strides = [1, 1, 1, 1, 1, 1]} : vector<2x3x2x3x2x32xf32> to vector<2x2x1x2x1x32xf32>
    %120 = vector.shape_cast %119 : vector<2x2x1x2x1x32xf32> to vector<8x32xf32>
    %121 = vector.extract_strided_slice %112 {offsets = [0, 0, 1, 0, 1, 0], sizes = [2, 2, 1, 2, 1, 32], strides = [1, 1, 1, 1, 1, 1]} : vector<2x3x2x3x2x32xf32> to vector<2x2x1x2x1x32xf32>
    %122 = vector.shape_cast %121 : vector<2x2x1x2x1x32xf32> to vector<8x32xf32>
    %123 = vector.extract_strided_slice %112 {offsets = [0, 0, 1, 1, 0, 0], sizes = [2, 2, 1, 2, 1, 32], strides = [1, 1, 1, 1, 1, 1]} : vector<2x3x2x3x2x32xf32> to vector<2x2x1x2x1x32xf32>
    %124 = vector.shape_cast %123 : vector<2x2x1x2x1x32xf32> to vector<8x32xf32>
    %125 = vector.extract_strided_slice %112 {offsets = [0, 1, 0, 0, 0, 0], sizes = [2, 2, 1, 2, 1, 32], strides = [1, 1, 1, 1, 1, 1]} : vector<2x3x2x3x2x32xf32> to vector<2x2x1x2x1x32xf32>
    %126 = vector.shape_cast %125 : vector<2x2x1x2x1x32xf32> to vector<8x32xf32>
    %127 = vector.extract_strided_slice %112 {offsets = [0, 1, 0, 0, 1, 0], sizes = [2, 2, 1, 2, 1, 32], strides = [1, 1, 1, 1, 1, 1]} : vector<2x3x2x3x2x32xf32> to vector<2x2x1x2x1x32xf32>
    %128 = vector.shape_cast %127 : vector<2x2x1x2x1x32xf32> to vector<8x32xf32>
    %129 = vector.extract_strided_slice %112 {offsets = [0, 1, 0, 1, 0, 0], sizes = [2, 2, 1, 2, 1, 32], strides = [1, 1, 1, 1, 1, 1]} : vector<2x3x2x3x2x32xf32> to vector<2x2x1x2x1x32xf32>
    %130 = vector.shape_cast %129 : vector<2x2x1x2x1x32xf32> to vector<8x32xf32>
    %131 = tpu.concatenate %114, %116, %118, %120, %122, %124, %126, %128, %130 in 1 : vector<8x32xf32>, vector<8x32xf32>, vector<8x32xf32>, vector<8x32xf32>, vector<8x32xf32>, vector<8x32xf32>, vector<8x32xf32>, vector<8x32xf32>, vector<8x32xf32> -> vector<8x288xf32>
    %c0_71 = arith.constant 0 : index
    %c0_72 = arith.constant 0 : index
    %132 = vector.load %arg11[%c0_71, %c0_72] : memref<288x32xf32, #tpu.memory_space<vmem>>, vector<288x32xf32>
    %cst_73 = arith.constant dense<0.000000e+00> : vector<8x32xf32>
    %133 = tpu.matmul %131, %132, %cst_73 {dimension_numbers = #tpu.dot_dimension_numbers<[1], [0], [0], [1], [0, 0, 1, 1], [], []>} : vector<8x288xf32>, vector<288x32xf32>, vector<8x32xf32> -> vector<8x32xf32>
    %134 = vector.extract_strided_slice %101 {offsets = [1, 0], sizes = [1, 32], strides = [1, 1]} : vector<5x32xf32> to vector<1x32xf32>
    %135 = vector.broadcast %134 : vector<1x32xf32> to vector<8x32xf32>
    %136 = arith.addf %133, %135 : vector<8x32xf32>
    %137 = vector.extract_strided_slice %101 {offsets = [2, 0], sizes = [1, 32], strides = [1, 1]} : vector<5x32xf32> to vector<1x32xf32>
    %138 = vector.broadcast %137 : vector<1x32xf32> to vector<8x32xf32>
    %139 = arith.mulf %136, %138 : vector<8x32xf32>
    %140 = vector.extract_strided_slice %101 {offsets = [3, 0], sizes = [1, 32], strides = [1, 1]} : vector<5x32xf32> to vector<1x32xf32>
    %141 = vector.broadcast %140 : vector<1x32xf32> to vector<8x32xf32>
    %142 = arith.addf %139, %141 : vector<8x32xf32>
    %cst_74 = arith.constant 0.000000e+00 : f32
    %143 = vector.broadcast %cst_74 : f32 to vector<8x32xf32>
    %144 = arith.maximumf %142, %143 : vector<8x32xf32>
    %c0_75 = arith.constant 0 : index
    %c0_76 = arith.constant 0 : index
    %145 = vector.load %arg12[%c0_75, %c0_76] : memref<32x32xf32, #tpu.memory_space<vmem>>, vector<32x32xf32>
    %cst_77 = arith.constant dense<0.000000e+00> : vector<8x32xf32>
    %146 = tpu.matmul %144, %145, %cst_77 {dimension_numbers = #tpu.dot_dimension_numbers<[1], [0], [0], [1], [0, 0, 1, 1], [], []>} : vector<8x32xf32>, vector<32x32xf32>, vector<8x32xf32> -> vector<8x32xf32>
    %147 = vector.extract_strided_slice %101 {offsets = [4, 0], sizes = [1, 32], strides = [1, 1]} : vector<5x32xf32> to vector<1x32xf32>
    %148 = vector.broadcast %147 : vector<1x32xf32> to vector<8x32xf32>
    %149 = arith.addf %146, %148 : vector<8x32xf32>
    %c0_78 = arith.constant 0 : index
    %c0_79 = arith.constant 0 : index
    %150 = vector.load %arg20[%c0_78, %c0_79] : memref<8x32xf32, #tpu.memory_space<vmem>>, vector<8x32xf32>
    tpu.vector_store %arg20[%c0_78, %c0_79], %149 {strides = array<i32>} : memref<8x32xf32, #tpu.memory_space<vmem>>, vector<8x32xf32>,
    %c0_80 = arith.constant 0 : index
    %c0_81 = arith.constant 0 : index
    %151 = vector.load %arg17[%c0_80, %c0_81] : memref<5x64xf32, #tpu.memory_space<vmem>>, vector<5x64xf32>
    %c0_82 = arith.constant 0 : index
    %c0_83 = arith.constant 0 : index
    %152 = vector.load %arg14[%c0_82, %c0_83] : memref<32x64xf32, #tpu.memory_space<vmem>>, vector<32x64xf32>
    %cst_84 = arith.constant dense<0.000000e+00> : vector<8x64xf32>
    %153 = tpu.matmul %149, %152, %cst_84 {dimension_numbers = #tpu.dot_dimension_numbers<[1], [0], [0], [1], [0, 0, 1, 1], [], []>} : vector<8x32xf32>, vector<32x64xf32>, vector<8x64xf32> -> vector<8x64xf32>
    %154 = vector.extract_strided_slice %151 {offsets = [0, 0], sizes = [1, 64], strides = [1, 1]} : vector<5x64xf32> to vector<1x64xf32>
    %155 = vector.broadcast %154 : vector<1x64xf32> to vector<8x64xf32>
    %156 = arith.addf %153, %155 : vector<8x64xf32>
    %cst_85 = arith.constant 0.000000e+00 : f32
    %157 = vector.broadcast %cst_85 : f32 to vector<2x4x4x64xf32>
    %c0_86 = arith.constant 0 : index
    %c0_87 = arith.constant 0 : index
    %c0_88 = arith.constant 0 : index
    %c0_89 = arith.constant 0 : index
    %158 = vector.load %arg25[%c0_86, %c0_87, %c0_88, %c0_89] : memref<2x4x4x64xf32, #tpu.memory_space<vmem>>, vector<2x4x4x64xf32>
    tpu.vector_store %arg25[%c0_86, %c0_87, %c0_88, %c0_89], %157 {strides = array<i32>} : memref<2x4x4x64xf32, #tpu.memory_space<vmem>>, vector<2x4x4x64xf32>,
    %159 = vector.shape_cast %156 : vector<8x64xf32> to vector<2x2x2x64xf32>
    %c0_90 = arith.constant 0 : index
    %c1_91 = arith.constant 1 : index
    %c1_92 = arith.constant 1 : index
    %c0_93 = arith.constant 0 : index
    %160 = vector.load %arg25[%c0_90, %c1_91, %c1_92, %c0_93] : memref<2x4x4x64xf32, #tpu.memory_space<vmem>>, vector<2x2x2x64xf32>
    tpu.vector_store %arg25[%c0_90, %c1_91, %c1_92, %c0_93], %159 {strides = array<i32>} : memref<2x4x4x64xf32, #tpu.memory_space<vmem>>, vector<2x2x2x64xf32>,
    %c0_94 = arith.constant 0 : index
    %c0_95 = arith.constant 0 : index
    %c0_96 = arith.constant 0 : index
    %c0_97 = arith.constant 0 : index
    %161 = vector.load %arg25[%c0_94, %c0_95, %c0_96, %c0_97] : memref<2x4x4x64xf32, #tpu.memory_space<vmem>>, vector<2x4x4x64xf32>
    %162 = vector.shape_cast %161 : vector<2x4x4x64xf32> to vector<2x2x2x2x2x64xf32>
    %163 = vector.extract_strided_slice %162 {offsets = [0, 0, 0, 0, 0, 0], sizes = [2, 1, 1, 1, 1, 64], strides = [1, 1, 1, 1, 1, 1]} : vector<2x2x2x2x2x64xf32> to vector<2x1x1x1x1x64xf32>
    %164 = vector.shape_cast %163 : vector<2x1x1x1x1x64xf32> to vector<2x64xf32>
    %165 = vector.extract_strided_slice %162 {offsets = [0, 0, 0, 0, 1, 0], sizes = [2, 1, 1, 1, 1, 64], strides = [1, 1, 1, 1, 1, 1]} : vector<2x2x2x2x2x64xf32> to vector<2x1x1x1x1x64xf32>
    %166 = vector.shape_cast %165 : vector<2x1x1x1x1x64xf32> to vector<2x64xf32>
    %167 = vector.extract_strided_slice %162 {offsets = [0, 0, 0, 1, 0, 0], sizes = [2, 1, 1, 1, 1, 64], strides = [1, 1, 1, 1, 1, 1]} : vector<2x2x2x2x2x64xf32> to vector<2x1x1x1x1x64xf32>
    %168 = vector.shape_cast %167 : vector<2x1x1x1x1x64xf32> to vector<2x64xf32>
    %169 = vector.extract_strided_slice %162 {offsets = [0, 0, 1, 0, 0, 0], sizes = [2, 1, 1, 1, 1, 64], strides = [1, 1, 1, 1, 1, 1]} : vector<2x2x2x2x2x64xf32> to vector<2x1x1x1x1x64xf32>
    %170 = vector.shape_cast %169 : vector<2x1x1x1x1x64xf32> to vector<2x64xf32>
    %171 = vector.extract_strided_slice %162 {offsets = [0, 0, 1, 0, 1, 0], sizes = [2, 1, 1, 1, 1, 64], strides = [1, 1, 1, 1, 1, 1]} : vector<2x2x2x2x2x64xf32> to vector<2x1x1x1x1x64xf32>
    %172 = vector.shape_cast %171 : vector<2x1x1x1x1x64xf32> to vector<2x64xf32>
    %173 = vector.extract_strided_slice %162 {offsets = [0, 0, 1, 1, 0, 0], sizes = [2, 1, 1, 1, 1, 64], strides = [1, 1, 1, 1, 1, 1]} : vector<2x2x2x2x2x64xf32> to vector<2x1x1x1x1x64xf32>
    %174 = vector.shape_cast %173 : vector<2x1x1x1x1x64xf32> to vector<2x64xf32>
    %175 = vector.extract_strided_slice %162 {offsets = [0, 1, 0, 0, 0, 0], sizes = [2, 1, 1, 1, 1, 64], strides = [1, 1, 1, 1, 1, 1]} : vector<2x2x2x2x2x64xf32> to vector<2x1x1x1x1x64xf32>
    %176 = vector.shape_cast %175 : vector<2x1x1x1x1x64xf32> to vector<2x64xf32>
    %177 = vector.extract_strided_slice %162 {offsets = [0, 1, 0, 0, 1, 0], sizes = [2, 1, 1, 1, 1, 64], strides = [1, 1, 1, 1, 1, 1]} : vector<2x2x2x2x2x64xf32> to vector<2x1x1x1x1x64xf32>
    %178 = vector.shape_cast %177 : vector<2x1x1x1x1x64xf32> to vector<2x64xf32>
    %179 = vector.extract_strided_slice %162 {offsets = [0, 1, 0, 1, 0, 0], sizes = [2, 1, 1, 1, 1, 64], strides = [1, 1, 1, 1, 1, 1]} : vector<2x2x2x2x2x64xf32> to vector<2x1x1x1x1x64xf32>
    %180 = vector.shape_cast %179 : vector<2x1x1x1x1x64xf32> to vector<2x64xf32>
    %181 = tpu.concatenate %164, %166, %168, %170, %172, %174, %176, %178, %180 in 1 : vector<2x64xf32>, vector<2x64xf32>, vector<2x64xf32>, vector<2x64xf32>, vector<2x64xf32>, vector<2x64xf32>, vector<2x64xf32>, vector<2x64xf32>, vector<2x64xf32> -> vector<2x576xf32>
    %c0_98 = arith.constant 0 : index
    %c0_99 = arith.constant 0 : index
    %182 = vector.load %arg15[%c0_98, %c0_99] : memref<576x64xf32, #tpu.memory_space<vmem>>, vector<576x64xf32>
    %cst_100 = arith.constant dense<0.000000e+00> : vector<2x64xf32>
    %183 = tpu.matmul %181, %182, %cst_100 {dimension_numbers = #tpu.dot_dimension_numbers<[1], [0], [0], [1], [0, 0, 1, 1], [], []>} : vector<2x576xf32>, vector<576x64xf32>, vector<2x64xf32> -> vector<2x64xf32>
    %184 = vector.extract_strided_slice %151 {offsets = [1, 0], sizes = [1, 64], strides = [1, 1]} : vector<5x64xf32> to vector<1x64xf32>
    %185 = vector.broadcast %184 : vector<1x64xf32> to vector<2x64xf32>
    %186 = arith.addf %183, %185 : vector<2x64xf32>
    %187 = vector.extract_strided_slice %151 {offsets = [2, 0], sizes = [1, 64], strides = [1, 1]} : vector<5x64xf32> to vector<1x64xf32>
    %188 = vector.broadcast %187 : vector<1x64xf32> to vector<2x64xf32>
    %189 = arith.mulf %186, %188 : vector<2x64xf32>
    %190 = vector.extract_strided_slice %151 {offsets = [3, 0], sizes = [1, 64], strides = [1, 1]} : vector<5x64xf32> to vector<1x64xf32>
    %191 = vector.broadcast %190 : vector<1x64xf32> to vector<2x64xf32>
    %192 = arith.addf %189, %191 : vector<2x64xf32>
    %cst_101 = arith.constant 0.000000e+00 : f32
    %193 = vector.broadcast %cst_101 : f32 to vector<2x64xf32>
    %194 = arith.maximumf %192, %193 : vector<2x64xf32>
    %c0_102 = arith.constant 0 : index
    %c0_103 = arith.constant 0 : index
    %195 = vector.load %arg16[%c0_102, %c0_103] : memref<64x64xf32, #tpu.memory_space<vmem>>, vector<64x64xf32>
    %cst_104 = arith.constant dense<0.000000e+00> : vector<2x64xf32>
    %196 = tpu.matmul %194, %195, %cst_104 {dimension_numbers = #tpu.dot_dimension_numbers<[1], [0], [0], [1], [0, 0, 1, 1], [], []>} : vector<2x64xf32>, vector<64x64xf32>, vector<2x64xf32> -> vector<2x64xf32>
    %197 = vector.extract_strided_slice %151 {offsets = [4, 0], sizes = [1, 64], strides = [1, 1]} : vector<5x64xf32> to vector<1x64xf32>
    %198 = vector.broadcast %197 : vector<1x64xf32> to vector<2x64xf32>
    %199 = arith.addf %196, %198 : vector<2x64xf32>
    %c0_105 = arith.constant 0 : index
    %c0_106 = arith.constant 0 : index
    %200 = vector.load %arg21[%c0_105, %c0_106] : memref<2x64xf32, #tpu.memory_space<vmem>>, vector<2x64xf32>
    tpu.vector_store %arg21[%c0_105, %c0_106], %199 {strides = array<i32>} : memref<2x64xf32, #tpu.memory_space<vmem>>, vector<2x64xf32>,
    return
  }
  func.func @transform_0(%arg0: i32) -> (i32, i32) {
    %c0_i32 = arith.constant 0 : i32
    %c0_i32_0 = arith.constant 0 : i32
    %c0_i32_1 = arith.constant 0 : i32
    return %c0_i32, %c0_i32_0 : i32, i32
  }
  func.func @transform_1(%arg0: i32) -> (i32, i32) {
    %c0_i32 = arith.constant 0 : i32
    %c0_i32_0 = arith.constant 0 : i32
    %c0_i32_1 = arith.constant 0 : i32
    return %c0_i32, %c0_i32_0 : i32, i32
  }
  func.func @transform_2(%arg0: i32) -> (i32, i32) {
    %c0_i32 = arith.constant 0 : i32
    %c0_i32_0 = arith.constant 0 : i32
    %c0_i32_1 = arith.constant 0 : i32
    return %c0_i32, %c0_i32_0 : i32, i32
  }
  func.func @transform_3(%arg0: i32) -> (i32, i32) {
    %c0_i32 = arith.constant 0 : i32
    %c0_i32_0 = arith.constant 0 : i32
    %c0_i32_1 = arith.constant 0 : i32
    return %c0_i32, %c0_i32_0 : i32, i32
  }
  func.func @transform_4(%arg0: i32) -> (i32, i32) {
    %c0_i32 = arith.constant 0 : i32
    %c0_i32_0 = arith.constant 0 : i32
    %c0_i32_1 = arith.constant 0 : i32
    return %c0_i32, %c0_i32_0 : i32, i32
  }
  func.func @transform_5(%arg0: i32) -> (i32, i32) {
    %c0_i32 = arith.constant 0 : i32
    %c0_i32_0 = arith.constant 0 : i32
    %c0_i32_1 = arith.constant 0 : i32
    return %c0_i32, %c0_i32_0 : i32, i32
  }
  func.func @transform_6(%arg0: i32) -> (i32, i32) {
    %c0_i32 = arith.constant 0 : i32
    %c0_i32_0 = arith.constant 0 : i32
    %c0_i32_1 = arith.constant 0 : i32
    return %c0_i32, %c0_i32_0 : i32, i32
  }
  func.func @transform_7(%arg0: i32) -> (i32, i32) {
    %c0_i32 = arith.constant 0 : i32
    %c0_i32_0 = arith.constant 0 : i32
    %c0_i32_1 = arith.constant 0 : i32
    return %c0_i32, %c0_i32_0 : i32, i32
  }
  func.func @transform_8(%arg0: i32) -> (i32, i32) {
    %c0_i32 = arith.constant 0 : i32
    %c0_i32_0 = arith.constant 0 : i32
    %c0_i32_1 = arith.constant 0 : i32
    return %c0_i32, %c0_i32_0 : i32, i32
  }
  func.func @transform_9(%arg0: i32) -> (i32, i32) {
    %c0_i32 = arith.constant 0 : i32
    %c0_i32_0 = arith.constant 0 : i32
    %c0_i32_1 = arith.constant 0 : i32
    return %c0_i32, %c0_i32_0 : i32, i32
  }
  func.func @transform_10(%arg0: i32) -> (i32, i32) {
    %c0_i32 = arith.constant 0 : i32
    %c0_i32_0 = arith.constant 0 : i32
    %c0_i32_1 = arith.constant 0 : i32
    return %c0_i32, %c0_i32_0 : i32, i32
  }
  func.func @transform_11(%arg0: i32) -> (i32, i32) {
    %c0_i32 = arith.constant 0 : i32
    %c0_i32_0 = arith.constant 0 : i32
    %c0_i32_1 = arith.constant 0 : i32
    return %c0_i32, %c0_i32_0 : i32, i32
  }
  func.func @transform_12(%arg0: i32) -> (i32, i32) {
    %c0_i32 = arith.constant 0 : i32
    %c0_i32_0 = arith.constant 0 : i32
    %c0_i32_1 = arith.constant 0 : i32
    return %c0_i32, %c0_i32_0 : i32, i32
  }
  func.func @transform_13(%arg0: i32) -> (i32, i32) {
    %c0_i32 = arith.constant 0 : i32
    %c0_i32_0 = arith.constant 0 : i32
    %c0_i32_1 = arith.constant 0 : i32
    return %c0_i32, %c0_i32_0 : i32, i32
  }
  func.func @transform_14(%arg0: i32) -> (i32, i32) {
    %c0_i32 = arith.constant 0 : i32
    %c0_i32_0 = arith.constant 0 : i32
    %c0_i32_1 = arith.constant 0 : i32
    return %c0_i32, %c0_i32_0 : i32, i32
  }
  func.func @transform_15(%arg0: i32) -> (i32, i32) {
    %c0_i32 = arith.constant 0 : i32
    %c0_i32_0 = arith.constant 0 : i32
    %c0_i32_1 = arith.constant 0 : i32
    return %c0_i32, %c0_i32_0 : i32, i32
  }
  func.func @transform_16(%arg0: i32) -> (i32, i32) {
    %c0_i32 = arith.constant 0 : i32
    %c0_i32_0 = arith.constant 0 : i32
    %c0_i32_1 = arith.constant 0 : i32
    return %c0_i32, %c0_i32_0 : i32, i32
  }
  func.func @transform_17(%arg0: i32) -> (i32, i32) {
    %c0_i32 = arith.constant 0 : i32
    %c0_i32_0 = arith.constant 0 : i32
    %c0_i32_1 = arith.constant 0 : i32
    return %c0_i32, %c0_i32_0 : i32, i32
  }
  func.func @transform_18(%arg0: i32) -> (i32, i32) {
    %c0_i32 = arith.constant 0 : i32
    %c0_i32_0 = arith.constant 0 : i32
    %c0_i32_1 = arith.constant 0 : i32
    return %c0_i32, %c0_i32_0 : i32, i32
  }
  func.func @transform_19(%arg0: i32) -> (i32, i32) {
    %c0_i32 = arith.constant 0 : i32
    %c0_i32_0 = arith.constant 0 : i32
    %c0_i32_1 = arith.constant 0 : i32
    return %c0_i32, %c0_i32_0 : i32, i32
  }
  func.func @transform_20(%arg0: i32) -> (i32, i32) {
    %c0_i32 = arith.constant 0 : i32
    %c0_i32_0 = arith.constant 0 : i32
    %c0_i32_1 = arith.constant 0 : i32
    return %c0_i32, %c0_i32_0 : i32, i32
  }
}

</mosaic_0001>

<llo_original>
// kernel: depthnet_forward.1
$region0: #{depthnet_forward.1}
  #allocation0 [shape = 'u32[]', space=smem, size = 0x4, offset = 0x4, fixed_abs, tag = 'smem constant byte address 0x4 - core index']
  #allocation1 [shape = 'u32[72,128]{1,0:T(1,128)}', space=vmem, size = 0x9000, scoped, tag = 'internal scratch']
  #allocation2 [shape = 'f32[2,18,18,4]{3,2,1,0:T(8,128)}', space=vmem, size = 0x6c000, scoped, tag = 'scratch operand']
  #allocation3 [shape = 'f32[2,10,10,16]{3,2,1,0:T(8,128)}', space=vmem, size = 0x28000, scoped, tag = 'scratch operand']
  #allocation4 [shape = 'f32[2,6,6,32]{3,2,1,0:T(8,128)}', space=vmem, size = 0xc000, scoped, tag = 'scratch operand']
  #allocation5 [shape = 'f32[2,4,4,64]{3,2,1,0:T(4,128)}', space=vmem, size = 0x4000, scoped, tag = 'scratch operand']
  %s0 = inlined_call_operand.vmem [shape: f32[512,1], index: 0, kind: input, shape index: {}]
  %s1 = inlined_call_operand.vmem [shape: f32[1,4], index: 1, kind: input, shape index: {}]
  %s2 = inlined_call_operand.vmem [shape: f32[36,4], index: 2, kind: input, shape index: {}]
  %s3 = inlined_call_operand.hbm [shape: f32[4,4], index: 3, kind: input, shape index: {}]
  %s4 = inlined_call_operand.vmem [shape: f32[5,4], index: 4, kind: input, shape index: {}]
  %s5 = inlined_call_operand.vmem [shape: f32[4,16], index: 5, kind: input, shape index: {}]
  %s6 = inlined_call_operand.hbm [shape: f32[144,16], index: 6, kind: input, shape index: {}]
  %s7 = inlined_call_operand.hbm [shape: f32[16,16], index: 7, kind: input, shape index: {}]
  %s8 = inlined_call_operand.vmem [shape: f32[5,16], index: 8, kind: input, shape index: {}]
  %s9 = inlined_call_operand.hbm [shape: f32[16,32], index: 9, kind: input, shape index: {}]
  %s10 = inlined_call_operand.hbm [shape: f32[288,32], index: 10, kind: input, shape index: {}]
  %s11 = inlined_call_operand.vmem [shape: f32[32,32], index: 11, kind: input, shape index: {}]
  %s12 = inlined_call_operand.vmem [shape: f32[5,32], index: 12, kind: input, shape index: {}]
  %s13 = inlined_call_operand.hbm [shape: f32[32,64], index: 13, kind: input, shape index: {}]
  %s14 = inlined_call_operand.vmem [shape: f32[576,64], index: 14, kind: input, shape index: {}]
  %s15 = inlined_call_operand.hbm [shape: f32[64,64], index: 15, kind: input, shape index: {}]
  %s16 = inlined_call_operand.vmem [shape: f32[5,64], index: 16, kind: input, shape index: {}]
  %s17 = inlined_call_operand.vmem [shape: f32[128,4], index: 17, kind: output, shape index: {0}]
  %s18 = inlined_call_operand.hbm [shape: f32[32,16], index: 18, kind: output, shape index: {1}]
  %s19 = inlined_call_operand.hbm [shape: f32[8,32], index: 19, kind: output, shape index: {2}]
  %s20 = inlined_call_operand.hbm [shape: f32[2,64], index: 20, kind: output, shape index: {3}]
  %21 = xla_tuple %s17, %s18, %s19, %s20
  %s22 = sld [smem:[#allocation0]]
  $region130: #{depthnet_forward.1} parent=0
    _
  %s24 = ssub.s32 1, %s22
  %s25 = scalar_select 0, %s24, %s22
  $region1: #{depthnet_forward.1} parent=0
    #allocation6 [shape = 'u8[2048]{0}', space=vmem, size = 0x800, scoped, tag = 'input window, operand 3, single buffered']
    #allocation7 [shape = 's32[1]{0}', space=sflag, size = 0x4, scoped, tag = 'scoped memory for depthnet_forward.1']
    #allocation8 [shape = 's32[1]{0}', space=sflag, size = 0x4, scoped, tag = 'scoped memory for depthnet_forward.1']
    #allocation9 [shape = 'u8[73728]{0}', space=vmem, size = 0x12000, scoped, tag = 'input window, operand 6, single buffered']
    #allocation10 [shape = 's32[1]{0}', space=sflag, size = 0x4, scoped, tag = 'scoped memory for depthnet_forward.1']
    #allocation11 [shape = 'u8[8192]{0}', space=vmem, size = 0x2000, scoped, tag = 'input window, operand 7, single buffered']
    #allocation12 [shape = 'u8[8192]{0}', space=vmem, size = 0x2000, scoped, tag = 'input window, operand 9, single buffered']
    #allocation13 [shape = 's32[1]{0}', space=sflag, size = 0x4, scoped, tag = 'scoped memory for depthnet_forward.1']
    #allocation14 [shape = 'u8[147456]{0}', space=vmem, size = 0x24000, scoped, tag = 'input window, operand 10, single buffered']
    #allocation15 [shape = 'u8[16384]{0}', space=vmem, size = 0x4000, scoped, tag = 'input window, operand 13, single buffered']
    #allocation16 [shape = 's32[1]{0}', space=sflag, size = 0x4, scoped, tag = 'scoped memory for depthnet_forward.1']
    #allocation17 [shape = 'u8[32768]{0}', space=vmem, size = 0x8000, scoped, tag = 'input window, operand 15, single buffered']
    #allocation18 [shape = 'u8[16384]{0}', space=vmem, size = 0x4000, scoped, tag = 'output window, operand 1, single buffered']
    #allocation19 [shape = 'u8[4096]{0}', space=vmem, size = 0x1000, scoped, tag = 'output window, operand 2, single buffered']
    #allocation20 [shape = 's32[1]{0}', space=sflag, size = 0x4, scoped, tag = 'scoped memory for depthnet_forward.1']
    #allocation21 [shape = 'u8[1024]{0}', space=vmem, size = 0x400, scoped, tag = 'output window, operand 3, single buffered']
    %26 = vsyncpa [#allocation7], 0
    %27 = vsyncpa [#allocation10], 0
    %28 = vsyncpa [#allocation13], 0
    %29 = vsyncpa [#allocation16], 0
    %30 = vsyncpa [#allocation8], 0
    %31 = vsyncpa [#allocation20], 0
    // Predicated region
    $region2: #{depthnet_forward.1} parent=1 // pred_check
      _
    $region3: #{depthnet_forward.1} parent=1 // pred_check_branch
      %33 = sbr.rel (0) target = $region5
    $region4: #{depthnet_forward.1} parent=1 // pred_region
      _
    $region5: #{depthnet_forward.1} parent=1 // pred_fallthru
      _
    // Predicated region
    $region6: #{depthnet_forward.1} parent=1 // pred_check
      _
    $region7: #{depthnet_forward.1} parent=1 // pred_check_branch
      %35 = sbr.rel (0) target = $region9
    $region8: #{depthnet_forward.1} parent=1 // pred_region
      _
    $region9: #{depthnet_forward.1} parent=1 // pred_fallthru
      _
    // Predicated region
    $region10: #{depthnet_forward.1} parent=1 // pred_check
      _
    $region11: #{depthnet_forward.1} parent=1 // pred_check_branch
      %37 = sbr.rel (0) target = $region13
    $region12: #{depthnet_forward.1} parent=1 // pred_region
      _
    $region13: #{depthnet_forward.1} parent=1 // pred_fallthru
      _
    // Predicated region
    $region14: #{depthnet_forward.1} parent=1 // pred_check
      _
    $region15: #{depthnet_forward.1} parent=1 // pred_check_branch
      %39 = sbr.rel (0) target = $region17
    $region16: #{depthnet_forward.1} parent=1 // pred_region
      %41 = vsyncadd [#allocation7], 0
      %s43 = sshll.u32 %s3, 4
      %s44 = int_to_ptr.hbm [resolvable:$true] %s43
      %s45 = sshll.u32 [#allocation6], 4
      %s46 = int_to_ptr.vmem [resolvable:$true] %s45
      %48 = dma.hbm_to_vmem [thread:$0]  %s44, 64, %s46, [#allocation7]
    $region17: #{depthnet_forward.1} parent=1 // pred_fallthru
      _
    // Predicated region
    $region18: #{depthnet_forward.1} parent=1 // pred_check
      _
    $region19: #{depthnet_forward.1} parent=1 // pred_check_branch
      %50 = sbr.rel (0) target = $region21
    $region20: #{depthnet_forward.1} parent=1 // pred_region
      _
    $region21: #{depthnet_forward.1} parent=1 // pred_fallthru
      _
    // Predicated region
    $region22: #{depthnet_forward.1} parent=1 // pred_check
      _
    $region23: #{depthnet_forward.1} parent=1 // pred_check_branch
      %52 = sbr.rel (0) target = $region25
    $region24: #{depthnet_forward.1} parent=1 // pred_region
      _
    $region25: #{depthnet_forward.1} parent=1 // pred_fallthru
      _
    // Predicated region
    $region26: #{depthnet_forward.1} parent=1 // pred_check
      _
    $region27: #{depthnet_forward.1} parent=1 // pred_check_branch
      %54 = sbr.rel (0) target = $region29
    $region28: #{depthnet_forward.1} parent=1 // pred_region
      %56 = vsyncadd [#allocation10], 0
      %s57 = sshll.u32 %s6, 4
      %s58 = int_to_ptr.hbm [resolvable:$true] %s57
      %s59 = sshll.u32 [#allocation9], 4
      %s60 = int_to_ptr.vmem [resolvable:$true] %s59
      %65 = dma.hbm_to_vmem [thread:$0]  %s58, 2304, %s60, [#allocation10], 128, 128, 8
    $region29: #{depthnet_forward.1} parent=1 // pred_fallthru
      _
    // Predicated region
    $region30: #{depthnet_forward.1} parent=1 // pred_check
      _
    $region31: #{depthnet_forward.1} parent=1 // pred_check_branch
      %67 = sbr.rel (0) target = $region33
    $region32: #{depthnet_forward.1} parent=1 // pred_region
      %69 = vsyncadd [#allocation10], 0
      %s70 = sshll.u32 %s7, 4
      %s71 = int_to_ptr.hbm [resolvable:$true] %s70
      %s72 = sshll.u32 [#allocation11], 4
      %s73 = int_to_ptr.vmem [resolvable:$true] %s72
      %78 = dma.hbm_to_vmem [thread:$0]  %s71, 256, %s73, [#allocation10], 128, 128, 8
    $region33: #{depthnet_forward.1} parent=1 // pred_fallthru
      _
    // Predicated region
    $region34: #{depthnet_forward.1} parent=1 // pred_check
      _
    $region35: #{depthnet_forward.1} parent=1 // pred_check_branch
      %80 = sbr.rel (0) target = $region37
    $region36: #{depthnet_forward.1} parent=1 // pred_region
      _
    $region37: #{depthnet_forward.1} parent=1 // pred_fallthru
      _
    // Predicated region
    $region38: #{depthnet_forward.1} parent=1 // pred_check
      _
    $region39: #{depthnet_forward.1} parent=1 // pred_check_branch
      %82 = sbr.rel (0) target = $region41
    $region40: #{depthnet_forward.1} parent=1 // pred_region
      %84 = vsyncadd [#allocation13], 0
      %s85 = sshll.u32 %s9, 4
      %s86 = int_to_ptr.hbm [resolvable:$true] %s85
      %s87 = sshll.u32 [#allocation12], 4
      %s88 = int_to_ptr.vmem [resolvable:$true] %s87
      %93 = dma.hbm_to_vmem [thread:$0]  %s86, 256, %s88, [#allocation13], 128, 128, 8
    $region41: #{depthnet_forward.1} parent=1 // pred_fallthru
      _
    // Predicated region
    $region42: #{depthnet_forward.1} parent=1 // pred_check
      _
    $region43: #{depthnet_forward.1} parent=1 // pred_check_branch
      %95 = sbr.rel (0) target = $region45
    $region44: #{depthnet_forward.1} parent=1 // pred_region
      %97 = vsyncadd [#allocation13], 0
      %s98 = sshll.u32 %s10, 4
      %s99 = int_to_ptr.hbm [resolvable:$true] %s98
      %s100 = sshll.u32 [#allocation14], 4
      %s101 = int_to_ptr.vmem [resolvable:$true] %s100
      %106 = dma.hbm_to_vmem [thread:$0]  %s99, 4608, %s101, [#allocation13], 128, 128, 8
    $region45: #{depthnet_forward.1} parent=1 // pred_fallthru
      _
    // Predicated region
    $region46: #{depthnet_forward.1} parent=1 // pred_check
      _
    $region47: #{depthnet_forward.1} parent=1 // pred_check_branch
      %108 = sbr.rel (0) target = $region49
    $region48: #{depthnet_forward.1} parent=1 // pred_region
      _
    $region49: #{depthnet_forward.1} parent=1 // pred_fallthru
      _
    // Predicated region
    $region50: #{depthnet_forward.1} parent=1 // pred_check
      _
    $region51: #{depthnet_forward.1} parent=1 // pred_check_branch
      %110 = sbr.rel (0) target = $region53
    $region52: #{depthnet_forward.1} parent=1 // pred_region
      _
    $region53: #{depthnet_forward.1} parent=1 // pred_fallthru
      _
    // Predicated region
    $region54: #{depthnet_forward.1} parent=1 // pred_check
      _
    $region55: #{depthnet_forward.1} parent=1 // pred_check_branch
      %112 = sbr.rel (0) target = $region57
    $region56: #{depthnet_forward.1} parent=1 // pred_region
      %114 = vsyncadd [#allocation16], 0
      %s115 = sshll.u32 %s13, 4
      %s116 = int_to_ptr.hbm [resolvable:$true] %s115
      %s117 = sshll.u32 [#allocation15], 4
      %s118 = int_to_ptr.vmem [resolvable:$true] %s117
      %123 = dma.hbm_to_vmem [thread:$0]  %s116, 512, %s118, [#allocation16], 128, 128, 8
    $region57: #{depthnet_forward.1} parent=1 // pred_fallthru
      _
    // Predicated region
    $region58: #{depthnet_forward.1} parent=1 // pred_check
      _
    $region59: #{depthnet_forward.1} parent=1 // pred_check_branch
      %125 = sbr.rel (0) target = $region61
    $region60: #{depthnet_forward.1} parent=1 // pred_region
      _
    $region61: #{depthnet_forward.1} parent=1 // pred_fallthru
      _
    // Predicated region
    $region62: #{depthnet_forward.1} parent=1 // pred_check
      _
    $region63: #{depthnet_forward.1} parent=1 // pred_check_branch
      %127 = sbr.rel (0) target = $region65
    $region64: #{depthnet_forward.1} parent=1 // pred_region
      %129 = vsyncadd [#allocation16], 0
      %s130 = sshll.u32 %s15, 4
      %s131 = int_to_ptr.hbm [resolvable:$true] %s130
      %s132 = sshll.u32 [#allocation17], 4
      %s133 = int_to_ptr.vmem [resolvable:$true] %s132
      %138 = dma.hbm_to_vmem [thread:$0]  %s131, 1024, %s133, [#allocation16], 128, 128, 8
    $region65: #{depthnet_forward.1} parent=1 // pred_fallthru
      _
    // Predicated region
    $region66: #{depthnet_forward.1} parent=1 // pred_check
      _
    $region67: #{depthnet_forward.1} parent=1 // pred_check_branch
      %140 = sbr.rel (0) target = $region69
    $region68: #{depthnet_forward.1} parent=1 // pred_region
      _
    $region69: #{depthnet_forward.1} parent=1 // pred_fallthru
      _
    // Predicated region
    $region70: #{depthnet_forward.1} parent=1 // pred_check
      _
    $region71: #{depthnet_forward.1} parent=1 // pred_check_branch
      %142 = sbr.rel (0) target = $region73
    $region72: #{depthnet_forward.1} parent=1 // pred_region
      %144 = dma.done [#allocation7], 64
    $region73: #{depthnet_forward.1} parent=1 // pred_fallthru
      _
    // Predicated region
    $region74: #{depthnet_forward.1} parent=1 // pred_check
      _
    $region75: #{depthnet_forward.1} parent=1 // pred_check_branch
      %146 = sbr.rel (0) target = $region77
    $region76: #{depthnet_forward.1} parent=1 // pred_region
      %148 = dma.done [#allocation10], 2304
    $region77: #{depthnet_forward.1} parent=1 // pred_fallthru
      _
    // Predicated region
    $region78: #{depthnet_forward.1} parent=1 // pred_check
      _
    $region79: #{depthnet_forward.1} parent=1 // pred_check_branch
      %150 = sbr.rel (0) target = $region81
    $region80: #{depthnet_forward.1} parent=1 // pred_region
      %152 = dma.done [#allocation10], 256
    $region81: #{depthnet_forward.1} parent=1 // pred_fallthru
      _
    // Predicated region
    $region82: #{depthnet_forward.1} parent=1 // pred_check
      _
    $region83: #{depthnet_forward.1} parent=1 // pred_check_branch
      %154 = sbr.rel (0) target = $region85
    $region84: #{depthnet_forward.1} parent=1 // pred_region
      %156 = dma.done [#allocation13], 256
    $region85: #{depthnet_forward.1} parent=1 // pred_fallthru
      _
    // Predicated region
    $region86: #{depthnet_forward.1} parent=1 // pred_check
      _
    $region87: #{depthnet_forward.1} parent=1 // pred_check_branch
      %158 = sbr.rel (0) target = $region89
    $region88: #{depthnet_forward.1} parent=1 // pred_region
      %160 = dma.done [#allocation13], 4608
    $region89: #{depthnet_forward.1} parent=1 // pred_fallthru
      _
    // Predicated region
    $region90: #{depthnet_forward.1} parent=1 // pred_check
      _
    $region91: #{depthnet_forward.1} parent=1 // pred_check_branch
      %162 = sbr.rel (0) target = $region93
    $region92: #{depthnet_forward.1} parent=1 // pred_region
      %164 = dma.done [#allocation16], 512
    $region93: #{depthnet_forward.1} parent=1 // pred_fallthru
      _
    // Predicated region
    $region94: #{depthnet_forward.1} parent=1 // pred_check
      _
    $region95: #{depthnet_forward.1} parent=1 // pred_check_branch
      %166 = sbr.rel (0) target = $region97
    $region96: #{depthnet_forward.1} parent=1 // pred_region
      %168 = dma.done [#allocation16], 1024
    $region97: #{depthnet_forward.1} parent=1 // pred_fallthru
      _
    %v169 = vld [vmem:[%s0] sm:$0xff]
    %v170 = vld [vmem:[%s0 + $0x8] sm:$0xff]
    %v171 = vld [vmem:[%s0 + $0x10] sm:$0xff]
    %v172 = vld [vmem:[%s0 + $0x18] sm:$0xff]
    %v173 = vld [vmem:[%s0 + $0x20] sm:$0xff]
    %v174 = vld [vmem:[%s0 + $0x28] sm:$0xff]
    %v175 = vld [vmem:[%s0 + $0x30] sm:$0xff]
    %v176 = vld [vmem:[%s0 + $0x38] sm:$0xff]
    %v177 = vld [vmem:[%s0 + $0x40] sm:$0xff]
    %v178 = vld [vmem:[%s0 + $0x48] sm:$0xff]
    %v179 = vld [vmem:[%s0 + $0x50] sm:$0xff]
    %v180 = vld [vmem:[%s0 + $0x58] sm:$0xff]
    %v181 = vld [vmem:[%s0 + $0x60] sm:$0xff]
    %v182 = vld [vmem:[%s0 + $0x68] sm:$0xff]
    %v183 = vld [vmem:[%s0 + $0x70] sm:$0xff]
    %v184 = vld [vmem:[%s0 + $0x78] sm:$0xff]
    %v185 = vld [vmem:[%s0 + $0x80] sm:$0xff]
    %v186 = vld [vmem:[%s0 + $0x88] sm:$0xff]
    %v187 = vld [vmem:[%s0 + $0x90] sm:$0xff]
    %v188 = vld [vmem:[%s0 + $0x98] sm:$0xff]
    %v189 = vld [vmem:[%s0 + $0xa0] sm:$0xff]
    %v190 = vld [vmem:[%s0 + $0xa8] sm:$0xff]
    %v191 = vld [vmem:[%s0 + $0xb0] sm:$0xff]
    %v192 = vld [vmem:[%s0 + $0xb8] sm:$0xff]
    %v193 = vld [vmem:[%s0 + $0xc0] sm:$0xff]
    %v194 = vld [vmem:[%s0 + $0xc8] sm:$0xff]
    %v195 = vld [vmem:[%s0 + $0xd0] sm:$0xff]
    %v196 = vld [vmem:[%s0 + $0xd8] sm:$0xff]
    %v197 = vld [vmem:[%s0 + $0xe0] sm:$0xff]
    %v198 = vld [vmem:[%s0 + $0xe8] sm:$0xff]
    %v199 = vld [vmem:[%s0 + $0xf0] sm:$0xff]
    %v200 = vld [vmem:[%s0 + $0xf8] sm:$0xff]
    %v201 = vld [vmem:[%s0 + $0x100] sm:$0xff]
    %v202 = vld [vmem:[%s0 + $0x108] sm:$0xff]
    %v203 = vld [vmem:[%s0 + $0x110] sm:$0xff]
    %v204 = vld [vmem:[%s0 + $0x118] sm:$0xff]
    %v205 = vld [vmem:[%s0 + $0x120] sm:$0xff]
    %v206 = vld [vmem:[%s0 + $0x128] sm:$0xff]
    %v207 = vld [vmem:[%s0 + $0x130] sm:$0xff]
    %v208 = vld [vmem:[%s0 + $0x138] sm:$0xff]
    %v209 = vld [vmem:[%s0 + $0x140] sm:$0xff]
    %v210 = vld [vmem:[%s0 + $0x148] sm:$0xff]
    %v211 = vld [vmem:[%s0 + $0x150] sm:$0xff]
    %v212 = vld [vmem:[%s0 + $0x158] sm:$0xff]
    %v213 = vld [vmem:[%s0 + $0x160] sm:$0xff]
    %v214 = vld [vmem:[%s0 + $0x168] sm:$0xff]
    %v215 = vld [vmem:[%s0 + $0x170] sm:$0xff]
    %v216 = vld [vmem:[%s0 + $0x178] sm:$0xff]
    %v217 = vld [vmem:[%s0 + $0x180] sm:$0xff]
    %v218 = vld [vmem:[%s0 + $0x188] sm:$0xff]
    %v219 = vld [vmem:[%s0 + $0x190] sm:$0xff]
    %v220 = vld [vmem:[%s0 + $0x198] sm:$0xff]
    %v221 = vld [vmem:[%s0 + $0x1a0] sm:$0xff]
    %v222 = vld [vmem:[%s0 + $0x1a8] sm:$0xff]
    %v223 = vld [vmem:[%s0 + $0x1b0] sm:$0xff]
    %v224 = vld [vmem:[%s0 + $0x1b8] sm:$0xff]
    %v225 = vld [vmem:[%s0 + $0x1c0] sm:$0xff]
    %v226 = vld [vmem:[%s0 + $0x1c8] sm:$0xff]
    %v227 = vld [vmem:[%s0 + $0x1d0] sm:$0xff]
    %v228 = vld [vmem:[%s0 + $0x1d8] sm:$0xff]
    %v229 = vld [vmem:[%s0 + $0x1e0] sm:$0xff]
    %v230 = vld [vmem:[%s0 + $0x1e8] sm:$0xff]
    %v231 = vld [vmem:[%s0 + $0x1f0] sm:$0xff]
    %v232 = vld [vmem:[%s0 + $0x1f8] sm:$0xff]
    %v233 = vld [vmem:[%s4] sm:$0x1f]
    %v234 = vld [vmem:[%s1] sm:$0x1]
    %v235 = vperm.slane %v233, 0
    %vm236 = vcmask 7168
    %v238 = vsel %vm236, %v169, 0
    %v241 = vsel %vm236, %v170, 0
    %v244 = vsel %vm236, %v171, 0
    %v247 = vsel %vm236, %v172, 0
    %v250 = vsel %vm236, %v173, 0
    %v253 = vsel %vm236, %v174, 0
    %v256 = vsel %vm236, %v175, 0
    %v259 = vsel %vm236, %v176, 0
    %v262 = vsel %vm236, %v177, 0
    %v265 = vsel %vm236, %v178, 0
    %v268 = vsel %vm236, %v179, 0
    %v271 = vsel %vm236, %v180, 0
    %v274 = vsel %vm236, %v181, 0
    %v277 = vsel %vm236, %v182, 0
    %v280 = vsel %vm236, %v183, 0
    %v283 = vsel %vm236, %v184, 0
    %v286 = vsel %vm236, %v185, 0
    %v289 = vsel %vm236, %v186, 0
    %v292 = vsel %vm236, %v187, 0
    %v295 = vsel %vm236, %v188, 0
    %v298 = vsel %vm236, %v189, 0
    %v301 = vsel %vm236, %v190, 0
    %v304 = vsel %vm236, %v191, 0
    %v307 = vsel %vm236, %v192, 0
    %v310 = vsel %vm236, %v193, 0
    %v313 = vsel %vm236, %v194, 0
    %v316 = vsel %vm236, %v195, 0
    %v319 = vsel %vm236, %v196, 0
    %v322 = vsel %vm236, %v197, 0
    %v325 = vsel %vm236, %v198, 0
    %v328 = vsel %vm236, %v199, 0
    %v331 = vsel %vm236, %v200, 0
    %v334 = vsel %vm236, %v201, 0
    %v337 = vsel %vm236, %v202, 0
    %v340 = vsel %vm236, %v203, 0
    %v343 = vsel %vm236, %v204, 0
    %v346 = vsel %vm236, %v205, 0
    %v349 = vsel %vm236, %v206, 0
    %v352 = vsel %vm236, %v207, 0
    %v355 = vsel %vm236, %v208, 0
    %v358 = vsel %vm236, %v209, 0
    %v361 = vsel %vm236, %v210, 0
    %v364 = vsel %vm236, %v211, 0
    %v367 = vsel %vm236, %v212, 0
    %v370 = vsel %vm236, %v213, 0
    %v373 = vsel %vm236, %v214, 0
    %v376 = vsel %vm236, %v215, 0
    %v379 = vsel %vm236, %v216, 0
    %v382 = vsel %vm236, %v217, 0
    %v385 = vsel %vm236, %v218, 0
    %v388 = vsel %vm236, %v219, 0
    %v391 = vsel %vm236, %v220, 0
    %v394 = vsel %vm236, %v221, 0
    %v397 = vsel %vm236, %v222, 0
    %v400 = vsel %vm236, %v223, 0
    %v403 = vsel %vm236, %v224, 0
    %v406 = vsel %vm236, %v225, 0
    %v409 = vsel %vm236, %v226, 0
    %v412 = vsel %vm236, %v227, 0
    %v415 = vsel %vm236, %v228, 0
    %v418 = vsel %vm236, %v229, 0
    %v421 = vsel %vm236, %v230, 0
    %v424 = vsel %vm236, %v231, 0
    %v427 = vsel %vm236, %v232, 0
    %vm429 = vcmask 1040384
    %v431 = vsel %vm429, %v234, 0
    %433 = vmatpush.msra.mxu0 0.0
    %434 = vmatpush.msra.mxu0 0.0
    %435 = vmatpush.msra.mxu0 0.0
    %436 = vmatpush.msra.mxu0 0.0
    %437 = vmatpush.msra.mxu0 0.0
    %438 = vmatpush.msra.mxu0 0.0
    %439 = vmatpush.msra.mxu0 0.0
    %440 = vmatpush.msra.mxu0 0.0
    %441 = vmatpush.msra.mxu0 0.0
    %442 = vmatpush.msra.mxu0 0.0
    %443 = vmatpush.msra.mxu0 0.0
    %444 = vmatpush.msra.mxu0 0.0
    %445 = vmatpush.msra.mxu0 0.0
    %446 = vmatpush.msra.mxu0 0.0
    %447 = vmatpush.msra.mxu0 0.0
    %448 = vmatpush.msra.mxu0 %v431
    %449 = vmatmul.f32.gmra.mxu0 %v238
    %v450 = vpop.f32.mrf.mxu0
    %v451 = vadd.f32 %v235, %v450
    %452 = vmatmul.f32.gmra.mxu0 %v241
    %v453 = vpop.f32.mrf.mxu0
    %v454 = vadd.f32 %v235, %v453
    %455 = vmatmul.f32.gmra.mxu0 %v244
    %v456 = vpop.f32.mrf.mxu0
    %v457 = vadd.f32 %v235, %v456
    %458 = vmatmul.f32.gmra.mxu0 %v247
    %v459 = vpop.f32.mrf.mxu0
    %v460 = vadd.f32 %v235, %v459
    %461 = vmatmul.f32.gmra.mxu0 %v250
    %v462 = vpop.f32.mrf.mxu0
    %v463 = vadd.f32 %v235, %v462
    %464 = vmatmul.f32.gmra.mxu0 %v253
    %v465 = vpop.f32.mrf.mxu0
    %v466 = vadd.f32 %v235, %v465
    %467 = vmatmul.f32.gmra.mxu0 %v256
    %v468 = vpop.f32.mrf.mxu0
    %v469 = vadd.f32 %v235, %v468
    %470 = vmatmul.f32.gmra.mxu0 %v259
    %v471 = vpop.f32.mrf.mxu0
    %v472 = vadd.f32 %v235, %v471
    %473 = vmatmul.f32.gmra.mxu0 %v262
    %v474 = vpop.f32.mrf.mxu0
    %v475 = vadd.f32 %v235, %v474
    %476 = vmatmul.f32.gmra.mxu0 %v265
    %v477 = vpop.f32.mrf.mxu0
    %v478 = vadd.f32 %v235, %v477
    %479 = vmatmul.f32.gmra.mxu0 %v268
    %v480 = vpop.f32.mrf.mxu0
    %v481 = vadd.f32 %v235, %v480
    %482 = vmatmul.f32.gmra.mxu0 %v271
    %v483 = vpop.f32.mrf.mxu0
    %v484 = vadd.f32 %v235, %v483
    %485 = vmatmul.f32.gmra.mxu0 %v274
    %v486 = vpop.f32.mrf.mxu0
    %v487 = vadd.f32 %v235, %v486
    %488 = vmatmul.f32.gmra.mxu0 %v277
    %v489 = vpop.f32.mrf.mxu0
    %v490 = vadd.f32 %v235, %v489
    %491 = vmatmul.f32.gmra.mxu0 %v280
    %v492 = vpop.f32.mrf.mxu0
    %v493 = vadd.f32 %v235, %v492
    %494 = vmatmul.f32.gmra.mxu0 %v283
    %v495 = vpop.f32.mrf.mxu0
    %v496 = vadd.f32 %v235, %v495
    %497 = vmatmul.f32.gmra.mxu0 %v286
    %v498 = vpop.f32.mrf.mxu0
    %v499 = vadd.f32 %v235, %v498
    %500 = vmatmul.f32.gmra.mxu0 %v289
    %v501 = vpop.f32.mrf.mxu0
    %v502 = vadd.f32 %v235, %v501
    %503 = vmatmul.f32.gmra.mxu0 %v292
    %v504 = vpop.f32.mrf.mxu0
    %v505 = vadd.f32 %v235, %v504
    %506 = vmatmul.f32.gmra.mxu0 %v295
    %v507 = vpop.f32.mrf.mxu0
    %v508 = vadd.f32 %v235, %v507
    %509 = vmatmul.f32.gmra.mxu0 %v298
    %v510 = vpop.f32.mrf.mxu0
    %v511 = vadd.f32 %v235, %v510
    %512 = vmatmul.f32.gmra.mxu0 %v301
    %v513 = vpop.f32.mrf.mxu0
    %v514 = vadd.f32 %v235, %v513
    %515 = vmatmul.f32.gmra.mxu0 %v304
    %v516 = vpop.f32.mrf.mxu0
    %v517 = vadd.f32 %v235, %v516
    %518 = vmatmul.f32.gmra.mxu0 %v307
    %v519 = vpop.f32.mrf.mxu0
    %v520 = vadd.f32 %v235, %v519
    %521 = vmatmul.f32.gmra.mxu0 %v310
    %v522 = vpop.f32.mrf.mxu0
    %v523 = vadd.f32 %v235, %v522
    %524 = vmatmul.f32.gmra.mxu0 %v313
    %v525 = vpop.f32.mrf.mxu0
    %v526 = vadd.f32 %v235, %v525
    %527 = vmatmul.f32.gmra.mxu0 %v316
    %v528 = vpop.f32.mrf.mxu0
    %v529 = vadd.f32 %v235, %v528
    %530 = vmatmul.f32.gmra.mxu0 %v319
    %v531 = vpop.f32.mrf.mxu0
    %v532 = vadd.f32 %v235, %v531
    %533 = vmatmul.f32.gmra.mxu0 %v322
    %v534 = vpop.f32.mrf.mxu0
    %v535 = vadd.f32 %v235, %v534
    %536 = vmatmul.f32.gmra.mxu0 %v325
    %v537 = vpop.f32.mrf.mxu0
    %v538 = vadd.f32 %v235, %v537
    %539 = vmatmul.f32.gmra.mxu0 %v328
    %v540 = vpop.f32.mrf.mxu0
    %v541 = vadd.f32 %v235, %v540
    %542 = vmatmul.f32.gmra.mxu0 %v331
    %v543 = vpop.f32.mrf.mxu0
    %v544 = vadd.f32 %v235, %v543
    %545 = vmatmul.f32.gmra.mxu0 %v334
    %v546 = vpop.f32.mrf.mxu0
    %v547 = vadd.f32 %v235, %v546
    %548 = vmatmul.f32.gmra.mxu0 %v337
    %v549 = vpop.f32.mrf.mxu0
    %v550 = vadd.f32 %v235, %v549
    %551 = vmatmul.f32.gmra.mxu0 %v340
    %v552 = vpop.f32.mrf.mxu0
    %v553 = vadd.f32 %v235, %v552
    %554 = vmatmul.f32.gmra.mxu0 %v343
    %v555 = vpop.f32.mrf.mxu0
    %v556 = vadd.f32 %v235, %v555
    %557 = vmatmul.f32.gmra.mxu0 %v346
    %v558 = vpop.f32.mrf.mxu0
    %v559 = vadd.f32 %v235, %v558
    %560 = vmatmul.f32.gmra.mxu0 %v349
    %v561 = vpop.f32.mrf.mxu0
    %v562 = vadd.f32 %v235, %v561
    %563 = vmatmul.f32.gmra.mxu0 %v352
    %v564 = vpop.f32.mrf.mxu0
    %v565 = vadd.f32 %v235, %v564
    %566 = vmatmul.f32.gmra.mxu0 %v355
    %v567 = vpop.f32.mrf.mxu0
    %v568 = vadd.f32 %v235, %v567
    %569 = vmatmul.f32.gmra.mxu0 %v358
    %v570 = vpop.f32.mrf.mxu0
    %v571 = vadd.f32 %v235, %v570
    %572 = vmatmul.f32.gmra.mxu0 %v361
    %v573 = vpop.f32.mrf.mxu0
    %v574 = vadd.f32 %v235, %v573
    %575 = vmatmul.f32.gmra.mxu0 %v364
    %v576 = vpop.f32.mrf.mxu0
    %v577 = vadd.f32 %v235, %v576
    %578 = vmatmul.f32.gmra.mxu0 %v367
    %v579 = vpop.f32.mrf.mxu0
    %v580 = vadd.f32 %v235, %v579
    %581 = vmatmul.f32.gmra.mxu0 %v370
    %v582 = vpop.f32.mrf.mxu0
    %v583 = vadd.f32 %v235, %v582
    %584 = vmatmul.f32.gmra.mxu0 %v373
    %v585 = vpop.f32.mrf.mxu0
    %v586 = vadd.f32 %v235, %v585
    %587 = vmatmul.f32.gmra.mxu0 %v376
    %v588 = vpop.f32.mrf.mxu0
    %v589 = vadd.f32 %v235, %v588
    %590 = vmatmul.f32.gmra.mxu0 %v379
    %v591 = vpop.f32.mrf.mxu0
    %v592 = vadd.f32 %v235, %v591
    %593 = vmatmul.f32.gmra.mxu0 %v382
    %v594 = vpop.f32.mrf.mxu0
    %v595 = vadd.f32 %v235, %v594
    %596 = vmatmul.f32.gmra.mxu0 %v385
    %v597 = vpop.f32.mrf.mxu0
    %v598 = vadd.f32 %v235, %v597
    %599 = vmatmul.f32.gmra.mxu0 %v388
    %v600 = vpop.f32.mrf.mxu0
    %v601 = vadd.f32 %v235, %v600
    %602 = vmatmul.f32.gmra.mxu0 %v391
    %v603 = vpop.f32.mrf.mxu0
    %v604 = vadd.f32 %v235, %v603
    %605 = vmatmul.f32.gmra.mxu0 %v394
    %v606 = vpop.f32.mrf.mxu0
    %v607 = vadd.f32 %v235, %v606
    %608 = vmatmul.f32.gmra.mxu0 %v397
    %v609 = vpop.f32.mrf.mxu0
    %v610 = vadd.f32 %v235, %v609
    %611 = vmatmul.f32.gmra.mxu0 %v400
    %v612 = vpop.f32.mrf.mxu0
    %v613 = vadd.f32 %v235, %v612
    %614 = vmatmul.f32.gmra.mxu0 %v403
    %v615 = vpop.f32.mrf.mxu0
    %v616 = vadd.f32 %v235, %v615
    %617 = vmatmul.f32.gmra.mxu0 %v406
    %v618 = vpop.f32.mrf.mxu0
    %v619 = vadd.f32 %v235, %v618
    %620 = vmatmul.f32.gmra.mxu0 %v409
    %v621 = vpop.f32.mrf.mxu0
    %v622 = vadd.f32 %v235, %v621
    %623 = vmatmul.f32.gmra.mxu0 %v412
    %v624 = vpop.f32.mrf.mxu0
    %v625 = vadd.f32 %v235, %v624
    %626 = vmatmul.f32.gmra.mxu0 %v415
    %v627 = vpop.f32.mrf.mxu0
    %v628 = vadd.f32 %v235, %v627
    %629 = vmatmul.f32.gmra.mxu0 %v418
    %v630 = vpop.f32.mrf.mxu0
    %v631 = vadd.f32 %v235, %v630
    %632 = vmatmul.f32.gmra.mxu0 %v421
    %v633 = vpop.f32.mrf.mxu0
    %v634 = vadd.f32 %v235, %v633
    %635 = vmatmul.f32.gmra.mxu0 %v424
    %v636 = vpop.f32.mrf.mxu0
    %v637 = vadd.f32 %v235, %v636
    %638 = vmatmul.f32.gmra.mxu0 %v427
    %v639 = vpop.f32.mrf.mxu0
    %v640 = vadd.f32 %v235, %v639
    %641 = vdwg.mxu0
    %vm642 = vcmask 31744
    %643 = vst.msk [vmem:[#allocation2] sm:$0xff] %vm642, 0.0
    %644 = vst.msk [vmem:[#allocation2 + $0x8] sm:$0xff] %vm642, 0.0
    %vm645 = vcmask 25600
    %646 = vst.msk [vmem:[#allocation2 + $0x10] sm:$0x3] %vm645, 0.0
    %647 = vst.msk [vmem:[#allocation2 + $0x18] sm:$0xff] %vm642, 0.0
    %648 = vst.msk [vmem:[#allocation2 + $0x20] sm:$0xff] %vm642, 0.0
    %649 = vst.msk [vmem:[#allocation2 + $0x28] sm:$0x3] %vm645, 0.0
    %650 = vst.msk [vmem:[#allocation2 + $0x30] sm:$0xff] %vm642, 0.0
    %651 = vst.msk [vmem:[#allocation2 + $0x38] sm:$0xff] %vm642, 0.0
    %652 = vst.msk [vmem:[#allocation2 + $0x40] sm:$0x3] %vm645, 0.0
    %653 = vst.msk [vmem:[#allocation2 + $0x48] sm:$0xff] %vm642, 0.0
    %654 = vst.msk [vmem:[#allocation2 + $0x50] sm:$0xff] %vm642, 0.0
    %655 = vst.msk [vmem:[#allocation2 + $0x58] sm:$0x3] %vm645, 0.0
    %656 = vst.msk [vmem:[#allocation2 + $0x60] sm:$0xff] %vm642, 0.0
    %657 = vst.msk [vmem:[#allocation2 + $0x68] sm:$0xff] %vm642, 0.0
    %658 = vst.msk [vmem:[#allocation2 + $0x70] sm:$0x3] %vm645, 0.0
    %659 = vst.msk [vmem:[#allocation2 + $0x78] sm:$0xff] %vm642, 0.0
    %660 = vst.msk [vmem:[#allocation2 + $0x80] sm:$0xff] %vm642, 0.0
    %661 = vst.msk [vmem:[#allocation2 + $0x88] sm:$0x3] %vm645, 0.0
    %662 = vst.msk [vmem:[#allocation2 + $0x90] sm:$0xff] %vm642, 0.0
    %663 = vst.msk [vmem:[#allocation2 + $0x98] sm:$0xff] %vm642, 0.0
    %664 = vst.msk [vmem:[#allocation2 + $0xa0] sm:$0x3] %vm645, 0.0
    %665 = vst.msk [vmem:[#allocation2 + $0xa8] sm:$0xff] %vm642, 0.0
    %666 = vst.msk [vmem:[#allocation2 + $0xb0] sm:$0xff] %vm642, 0.0
    %667 = vst.msk [vmem:[#allocation2 + $0xb8] sm:$0x3] %vm645, 0.0
    %668 = vst.msk [vmem:[#allocation2 + $0xc0] sm:$0xff] %vm642, 0.0
    %669 = vst.msk [vmem:[#allocation2 + $0xc8] sm:$0xff] %vm642, 0.0
    %670 = vst.msk [vmem:[#allocation2 + $0xd0] sm:$0x3] %vm645, 0.0
    %671 = vst.msk [vmem:[#allocation2 + $0xd8] sm:$0xff] %vm642, 0.0
    %672 = vst.msk [vmem:[#allocation2 + $0xe0] sm:$0xff] %vm642, 0.0
    %673 = vst.msk [vmem:[#allocation2 + $0xe8] sm:$0x3] %vm645, 0.0
    %674 = vst.msk [vmem:[#allocation2 + $0xf0] sm:$0xff] %vm642, 0.0
    %675 = vst.msk [vmem:[#allocation2 + $0xf8] sm:$0xff] %vm642, 0.0
    %676 = vst.msk [vmem:[#allocation2 + $0x100] sm:$0x3] %vm645, 0.0
    %677 = vst.msk [vmem:[#allocation2 + $0x108] sm:$0xff] %vm642, 0.0
    %678 = vst.msk [vmem:[#allocation2 + $0x110] sm:$0xff] %vm642, 0.0
    %679 = vst.msk [vmem:[#allocation2 + $0x118] sm:$0x3] %vm645, 0.0
    %680 = vst.msk [vmem:[#allocation2 + $0x120] sm:$0xff] %vm642, 0.0
    %681 = vst.msk [vmem:[#allocation2 + $0x128] sm:$0xff] %vm642, 0.0
    %682 = vst.msk [vmem:[#allocation2 + $0x130] sm:$0x3] %vm645, 0.0
    %683 = vst.msk [vmem:[#allocation2 + $0x138] sm:$0xff] %vm642, 0.0
    %684 = vst.msk [vmem:[#allocation2 + $0x140] sm:$0xff] %vm642, 0.0
    %685 = vst.msk [vmem:[#allocation2 + $0x148] sm:$0x3] %vm645, 0.0
    %686 = vst.msk [vmem:[#allocation2 + $0x150] sm:$0xff] %vm642, 0.0
    %687 = vst.msk [vmem:[#allocation2 + $0x158] sm:$0xff] %vm642, 0.0
    %688 = vst.msk [vmem:[#allocation2 + $0x160] sm:$0x3] %vm645, 0.0
    %689 = vst.msk [vmem:[#allocation2 + $0x168] sm:$0xff] %vm642, 0.0
    %690 = vst.msk [vmem:[#allocation2 + $0x170] sm:$0xff] %vm642, 0.0
    %691 = vst.msk [vmem:[#allocation2 + $0x178] sm:$0x3] %vm645, 0.0
    %692 = vst.msk [vmem:[#allocation2 + $0x180] sm:$0xff] %vm642, 0.0
    %693 = vst.msk [vmem:[#allocation2 + $0x188] sm:$0xff] %vm642, 0.0
    %694 = vst.msk [vmem:[#allocation2 + $0x190] sm:$0x3] %vm645, 0.0
    %695 = vst.msk [vmem:[#allocation2 + $0x198] sm:$0xff] %vm642, 0.0
    %696 = vst.msk [vmem:[#allocation2 + $0x1a0] sm:$0xff] %vm642, 0.0
    %697 = vst.msk [vmem:[#allocation2 + $0x1a8] sm:$0x3] %vm645, 0.0
    %698 = vst.msk [vmem:[#allocation2 + $0x1b0] sm:$0xff] %vm642, 0.0
    %699 = vst.msk [vmem:[#allocation2 + $0x1b8] sm:$0xff] %vm642, 0.0
    %700 = vst.msk [vmem:[#allocation2 + $0x1c0] sm:$0x3] %vm645, 0.0
    %701 = vst.msk [vmem:[#allocation2 + $0x1c8] sm:$0xff] %vm642, 0.0
    %702 = vst.msk [vmem:[#allocation2 + $0x1d0] sm:$0xff] %vm642, 0.0
    %703 = vst.msk [vmem:[#allocation2 + $0x1d8] sm:$0x3] %vm645, 0.0
    %704 = vst.msk [vmem:[#allocation2 + $0x1e0] sm:$0xff] %vm642, 0.0
    %705 = vst.msk [vmem:[#allocation2 + $0x1e8] sm:$0xff] %vm642, 0.0
    %706 = vst.msk [vmem:[#allocation2 + $0x1f0] sm:$0x3] %vm645, 0.0
    %707 = vst.msk [vmem:[#allocation2 + $0x1f8] sm:$0xff] %vm642, 0.0
    %708 = vst.msk [vmem:[#allocation2 + $0x200] sm:$0xff] %vm642, 0.0
    %709 = vst.msk [vmem:[#allocation2 + $0x208] sm:$0x3] %vm645, 0.0
    %710 = vst.msk [vmem:[#allocation2 + $0x210] sm:$0xff] %vm642, 0.0
    %711 = vst.msk [vmem:[#allocation2 + $0x218] sm:$0xff] %vm642, 0.0
    %712 = vst.msk [vmem:[#allocation2 + $0x220] sm:$0x3] %vm645, 0.0
    %713 = vst.msk [vmem:[#allocation2 + $0x228] sm:$0xff] %vm642, 0.0
    %714 = vst.msk [vmem:[#allocation2 + $0x230] sm:$0xff] %vm642, 0.0
    %715 = vst.msk [vmem:[#allocation2 + $0x238] sm:$0x3] %vm645, 0.0
    %716 = vst.msk [vmem:[#allocation2 + $0x240] sm:$0xff] %vm642, 0.0
    %717 = vst.msk [vmem:[#allocation2 + $0x248] sm:$0xff] %vm642, 0.0
    %718 = vst.msk [vmem:[#allocation2 + $0x250] sm:$0x3] %vm645, 0.0
    %719 = vst.msk [vmem:[#allocation2 + $0x258] sm:$0xff] %vm642, 0.0
    %720 = vst.msk [vmem:[#allocation2 + $0x260] sm:$0xff] %vm642, 0.0
    %721 = vst.msk [vmem:[#allocation2 + $0x268] sm:$0x3] %vm645, 0.0
    %722 = vst.msk [vmem:[#allocation2 + $0x270] sm:$0xff] %vm642, 0.0
    %723 = vst.msk [vmem:[#allocation2 + $0x278] sm:$0xff] %vm642, 0.0
    %724 = vst.msk [vmem:[#allocation2 + $0x280] sm:$0x3] %vm645, 0.0
    %725 = vst.msk [vmem:[#allocation2 + $0x288] sm:$0xff] %vm642, 0.0
    %726 = vst.msk [vmem:[#allocation2 + $0x290] sm:$0xff] %vm642, 0.0
    %727 = vst.msk [vmem:[#allocation2 + $0x298] sm:$0x3] %vm645, 0.0
    %728 = vst.msk [vmem:[#allocation2 + $0x2a0] sm:$0xff] %vm642, 0.0
    %729 = vst.msk [vmem:[#allocation2 + $0x2a8] sm:$0xff] %vm642, 0.0
    %730 = vst.msk [vmem:[#allocation2 + $0x2b0] sm:$0x3] %vm645, 0.0
    %731 = vst.msk [vmem:[#allocation2 + $0x2b8] sm:$0xff] %vm642, 0.0
    %732 = vst.msk [vmem:[#allocation2 + $0x2c0] sm:$0xff] %vm642, 0.0
    %733 = vst.msk [vmem:[#allocation2 + $0x2c8] sm:$0x3] %vm645, 0.0
    %734 = vst.msk [vmem:[#allocation2 + $0x2d0] sm:$0xff] %vm642, 0.0
    %735 = vst.msk [vmem:[#allocation2 + $0x2d8] sm:$0xff] %vm642, 0.0
    %736 = vst.msk [vmem:[#allocation2 + $0x2e0] sm:$0x3] %vm645, 0.0
    %737 = vst.msk [vmem:[#allocation2 + $0x2e8] sm:$0xff] %vm642, 0.0
    %738 = vst.msk [vmem:[#allocation2 + $0x2f0] sm:$0xff] %vm642, 0.0
    %739 = vst.msk [vmem:[#allocation2 + $0x2f8] sm:$0x3] %vm645, 0.0
    %740 = vst.msk [vmem:[#allocation2 + $0x300] sm:$0xff] %vm642, 0.0
    %741 = vst.msk [vmem:[#allocation2 + $0x308] sm:$0xff] %vm642, 0.0
    %742 = vst.msk [vmem:[#allocation2 + $0x310] sm:$0x3] %vm645, 0.0
    %743 = vst.msk [vmem:[#allocation2 + $0x318] sm:$0xff] %vm642, 0.0
    %744 = vst.msk [vmem:[#allocation2 + $0x320] sm:$0xff] %vm642, 0.0
    %745 = vst.msk [vmem:[#allocation2 + $0x328] sm:$0x3] %vm645, 0.0
    %746 = vst.msk [vmem:[#allocation2 + $0x330] sm:$0xff] %vm642, 0.0
    %747 = vst.msk [vmem:[#allocation2 + $0x338] sm:$0xff] %vm642, 0.0
    %748 = vst.msk [vmem:[#allocation2 + $0x340] sm:$0x3] %vm645, 0.0
    %749 = vst.msk [vmem:[#allocation2 + $0x348] sm:$0xff] %vm642, 0.0
    %750 = vst.msk [vmem:[#allocation2 + $0x350] sm:$0xff] %vm642, 0.0
    %751 = vst.msk [vmem:[#allocation2 + $0x358] sm:$0x3] %vm645, 0.0
    %s752 = scalar_lea.vmem [#allocation2], 24
    %753 = vst.msk [vmem:[%s752 + $0x1] sm:$0xff] %vm642, %v451
    %754 = vst.msk [vmem:[%s752 + $0x9] sm:$0xff] %vm642, %v454
    %755 = vst.msk [vmem:[%s752 + $0x19] sm:$0xff] %vm642, %v457
    %756 = vst.msk [vmem:[%s752 + $0x21] sm:$0xff] %vm642, %v460
    %757 = vst.msk [vmem:[%s752 + $0x31] sm:$0xff] %vm642, %v463
    %758 = vst.msk [vmem:[%s752 + $0x39] sm:$0xff] %vm642, %v466
    %759 = vst.msk [vmem:[%s752 + $0x49] sm:$0xff] %vm642, %v469
    %760 = vst.msk [vmem:[%s752 + $0x51] sm:$0xff] %vm642, %v472
    %761 = vst.msk [vmem:[%s752 + $0x61] sm:$0xff] %vm642, %v475
    %762 = vst.msk [vmem:[%s752 + $0x69] sm:$0xff] %vm642, %v478
    %763 = vst.msk [vmem:[%s752 + $0x79] sm:$0xff] %vm642, %v481
    %764 = vst.msk [vmem:[%s752 + $0x81] sm:$0xff] %vm642, %v484
    %765 = vst.msk [vmem:[%s752 + $0x91] sm:$0xff] %vm642, %v487
    %766 = vst.msk [vmem:[%s752 + $0x99] sm:$0xff] %vm642, %v490
    %767 = vst.msk [vmem:[%s752 + $0xa9] sm:$0xff] %vm642, %v493
    %768 = vst.msk [vmem:[%s752 + $0xb1] sm:$0xff] %vm642, %v496
    %769 = vst.msk [vmem:[%s752 + $0xc1] sm:$0xff] %vm642, %v499
    %770 = vst.msk [vmem:[%s752 + $0xc9] sm:$0xff] %vm642, %v502
    %771 = vst.msk [vmem:[%s752 + $0xd9] sm:$0xff] %vm642, %v505
    %772 = vst.msk [vmem:[%s752 + $0xe1] sm:$0xff] %vm642, %v508
    %773 = vst.msk [vmem:[%s752 + $0xf1] sm:$0xff] %vm642, %v511
    %774 = vst.msk [vmem:[%s752 + $0xf9] sm:$0xff] %vm642, %v514
    %775 = vst.msk [vmem:[%s752 + $0x109] sm:$0xff] %vm642, %v517
    %776 = vst.msk [vmem:[%s752 + $0x111] sm:$0xff] %vm642, %v520
    %777 = vst.msk [vmem:[%s752 + $0x121] sm:$0xff] %vm642, %v523
    %778 = vst.msk [vmem:[%s752 + $0x129] sm:$0xff] %vm642, %v526
    %779 = vst.msk [vmem:[%s752 + $0x139] sm:$0xff] %vm642, %v529
    %780 = vst.msk [vmem:[%s752 + $0x141] sm:$0xff] %vm642, %v532
    %781 = vst.msk [vmem:[%s752 + $0x151] sm:$0xff] %vm642, %v535
    %782 = vst.msk [vmem:[%s752 + $0x159] sm:$0xff] %vm642, %v538
    %783 = vst.msk [vmem:[%s752 + $0x169] sm:$0xff] %vm642, %v541
    %784 = vst.msk [vmem:[%s752 + $0x171] sm:$0xff] %vm642, %v544
    %785 = vst.msk [vmem:[%s752 + $0x1b1] sm:$0xff] %vm642, %v547
    %786 = vst.msk [vmem:[%s752 + $0x1b9] sm:$0xff] %vm642, %v550
    %787 = vst.msk [vmem:[%s752 + $0x1c9] sm:$0xff] %vm642, %v553
    %788 = vst.msk [vmem:[%s752 + $0x1d1] sm:$0xff] %vm642, %v556
    %789 = vst.msk [vmem:[%s752 + $0x1e1] sm:$0xff] %vm642, %v559
    %790 = vst.msk [vmem:[%s752 + $0x1e9] sm:$0xff] %vm642, %v562
    %791 = vst.msk [vmem:[%s752 + $0x1f9] sm:$0xff] %vm642, %v565
    %792 = vst.msk [vmem:[%s752 + $0x201] sm:$0xff] %vm642, %v568
    %793 = vst.msk [vmem:[%s752 + $0x211] sm:$0xff] %vm642, %v571
    %794 = vst.msk [vmem:[%s752 + $0x219] sm:$0xff] %vm642, %v574
    %795 = vst.msk [vmem:[%s752 + $0x229] sm:$0xff] %vm642, %v577
    %796 = vst.msk [vmem:[%s752 + $0x231] sm:$0xff] %vm642, %v580
    %797 = vst.msk [vmem:[%s752 + $0x241] sm:$0xff] %vm642, %v583
    %798 = vst.msk [vmem:[%s752 + $0x249] sm:$0xff] %vm642, %v586
    %799 = vst.msk [vmem:[%s752 + $0x259] sm:$0xff] %vm642, %v589
    %800 = vst.msk [vmem:[%s752 + $0x261] sm:$0xff] %vm642, %v592
    %801 = vst.msk [vmem:[%s752 + $0x271] sm:$0xff] %vm642, %v595
    %802 = vst.msk [vmem:[%s752 + $0x279] sm:$0xff] %vm642, %v598
    %803 = vst.msk [vmem:[%s752 + $0x289] sm:$0xff] %vm642, %v601
    %804 = vst.msk [vmem:[%s752 + $0x291] sm:$0xff] %vm642, %v604
    %805 = vst.msk [vmem:[%s752 + $0x2a1] sm:$0xff] %vm642, %v607
    %806 = vst.msk [vmem:[%s752 + $0x2a9] sm:$0xff] %vm642, %v610
    %807 = vst.msk [vmem:[%s752 + $0x2b9] sm:$0xff] %vm642, %v613
    %808 = vst.msk [vmem:[%s752 + $0x2c1] sm:$0xff] %vm642, %v616
    %809 = vst.msk [vmem:[%s752 + $0x2d1] sm:$0xff] %vm642, %v619
    %810 = vst.msk [vmem:[%s752 + $0x2d9] sm:$0xff] %vm642, %v622
    %811 = vst.msk [vmem:[%s752 + $0x2e9] sm:$0xff] %vm642, %v625
    %812 = vst.msk [vmem:[%s752 + $0x2f1] sm:$0xff] %vm642, %v628
    %813 = vst.msk [vmem:[%s752 + $0x301] sm:$0xff] %vm642, %v631
    %814 = vst.msk [vmem:[%s752 + $0x309] sm:$0xff] %vm642, %v634
    %815 = vst.msk [vmem:[%s752 + $0x319] sm:$0xff] %vm642, %v637
    %816 = vst.msk [vmem:[%s752 + $0x321] sm:$0xff] %vm642, %v640
    %v817 = vld [vmem:[#allocation2] sm:$0xff]
    %v818 = vld [vmem:[#allocation2 + $0x8] sm:$0xff]
    %v819 = vld [vmem:[#allocation2 + $0x10] sm:$0x3]
    %v820 = vld [vmem:[#allocation2 + $0x18] sm:$0xff]
    %v821 = vld [vmem:[#allocation2 + $0x20] sm:$0xff]
    %v822 = vld [vmem:[#allocation2 + $0x28] sm:$0x3]
    %v823 = vld [vmem:[#allocation2 + $0x30] sm:$0xff]
    %v824 = vld [vmem:[#allocation2 + $0x38] sm:$0xff]
    %v825 = vld [vmem:[#allocation2 + $0x40] sm:$0x3]
    %v826 = vld [vmem:[#allocation2 + $0x48] sm:$0xff]
    %v827 = vld [vmem:[#allocation2 + $0x50] sm:$0xff]
    %v828 = vld [vmem:[#allocation2 + $0x58] sm:$0x3]
    %v829 = vld [vmem:[#allocation2 + $0x60] sm:$0xff]
    %v830 = vld [vmem:[#allocation2 + $0x68] sm:$0xff]
    %v831 = vld [vmem:[#allocation2 + $0x70] sm:$0x3]
    %v832 = vld [vmem:[#allocation2 + $0x78] sm:$0xff]
    %v833 = vld [vmem:[#allocation2 + $0x80] sm:$0xff]
    %v834 = vld [vmem:[#allocation2 + $0x88] sm:$0x3]
    %v835 = vld [vmem:[#allocation2 + $0x90] sm:$0xff]
    %v836 = vld [vmem:[#allocation2 + $0x98] sm:$0xff]
    %v837 = vld [vmem:[#allocation2 + $0xa0] sm:$0x3]
    %v838 = vld [vmem:[#allocation2 + $0xa8] sm:$0xff]
    %v839 = vld [vmem:[#allocation2 + $0xb0] sm:$0xff]
    %v840 = vld [vmem:[#allocation2 + $0xb8] sm:$0x3]
    %v841 = vld [vmem:[#allocation2 + $0xc0] sm:$0xff]
    %v842 = vld [vmem:[#allocation2 + $0xc8] sm:$0xff]
    %v843 = vld [vmem:[#allocation2 + $0xd0] sm:$0x3]
    %v844 = vld [vmem:[#allocation2 + $0xd8] sm:$0xff]
    %v845 = vld [vmem:[#allocation2 + $0xe0] sm:$0xff]
    %v846 = vld [vmem:[#allocation2 + $0xe8] sm:$0x3]
    %v847 = vld [vmem:[#allocation2 + $0xf0] sm:$0xff]
    %v848 = vld [vmem:[#allocation2 + $0xf8] sm:$0xff]
    %v849 = vld [vmem:[#allocation2 + $0x100] sm:$0x3]
    %v850 = vld [vmem:[#allocation2 + $0x108] sm:$0xff]
    %v851 = vld [vmem:[#allocation2 + $0x110] sm:$0xff]
    %v852 = vld [vmem:[#allocation2 + $0x118] sm:$0x3]
    %v853 = vld [vmem:[#allocation2 + $0x120] sm:$0xff]
    %v854 = vld [vmem:[#allocation2 + $0x128] sm:$0xff]
    %v855 = vld [vmem:[#allocation2 + $0x130] sm:$0x3]
    %v856 = vld [vmem:[#allocation2 + $0x138] sm:$0xff]
    %v857 = vld [vmem:[#allocation2 + $0x140] sm:$0xff]
    %v858 = vld [vmem:[#allocation2 + $0x148] sm:$0x3]
    %v859 = vld [vmem:[#allocation2 + $0x150] sm:$0xff]
    %v860 = vld [vmem:[#allocation2 + $0x158] sm:$0xff]
    %v861 = vld [vmem:[#allocation2 + $0x160] sm:$0x3]
    %v862 = vld [vmem:[#allocation2 + $0x168] sm:$0xff]
    %v863 = vld [vmem:[#allocation2 + $0x170] sm:$0xff]
    %v864 = vld [vmem:[#allocation2 + $0x178] sm:$0x3]
    %v865 = vld [vmem:[#allocation2 + $0x180] sm:$0xff]
    %v866 = vld [vmem:[#allocation2 + $0x188] sm:$0xff]
    %v867 = vld [vmem:[#allocation2 + $0x190] sm:$0x3]
    %v868 = vld [vmem:[#allocation2 + $0x1b0] sm:$0xff]
    %v869 = vld [vmem:[#allocation2 + $0x1b8] sm:$0xff]
    %v870 = vld [vmem:[#allocation2 + $0x1c0] sm:$0x3]
    %v871 = vld [vmem:[#allocation2 + $0x1c8] sm:$0xff]
    %v872 = vld [vmem:[#allocation2 + $0x1d0] sm:$0xff]
    %v873 = vld [vmem:[#allocation2 + $0x1d8] sm:$0x3]
    %v874 = vld [vmem:[#allocation2 + $0x1e0] sm:$0xff]
    %v875 = vld [vmem:[#allocation2 + $0x1e8] sm:$0xff]
    %v876 = vld [vmem:[#allocation2 + $0x1f0] sm:$0x3]
    %v877 = vld [vmem:[#allocation2 + $0x1f8] sm:$0xff]
    %v878 = vld [vmem:[#allocation2 + $0x200] sm:$0xff]
    %v879 = vld [vmem:[#allocation2 + $0x208] sm:$0x3]
    %v880 = vld [vmem:[#allocation2 + $0x210] sm:$0xff]
    %v881 = vld [vmem:[#allocation2 + $0x218] sm:$0xff]
    %v882 = vld [vmem:[#allocation2 + $0x220] sm:$0x3]
    %v883 = vld [vmem:[#allocation2 + $0x228] sm:$0xff]
    %v884 = vld [vmem:[#allocation2 + $0x230] sm:$0xff]
    %v885 = vld [vmem:[#allocation2 + $0x238] sm:$0x3]
    %v886 = vld [vmem:[#allocation2 + $0x240] sm:$0xff]
    %v887 = vld [vmem:[#allocation2 + $0x248] sm:$0xff]
    %v888 = vld [vmem:[#allocation2 + $0x250] sm:$0x3]
    %v889 = vld [vmem:[#allocation2 + $0x258] sm:$0xff]
    %v890 = vld [vmem:[#allocation2 + $0x260] sm:$0xff]
    %v891 = vld [vmem:[#allocation2 + $0x268] sm:$0x3]
    %v892 = vld [vmem:[#allocation2 + $0x270] sm:$0xff]
    %v893 = vld [vmem:[#allocation2 + $0x278] sm:$0xff]
    %v894 = vld [vmem:[#allocation2 + $0x280] sm:$0x3]
    %v895 = vld [vmem:[#allocation2 + $0x288] sm:$0xff]
    %v896 = vld [vmem:[#allocation2 + $0x290] sm:$0xff]
    %v897 = vld [vmem:[#allocation2 + $0x298] sm:$0x3]
    %v898 = vld [vmem:[#allocation2 + $0x2a0] sm:$0xff]
    %v899 = vld [vmem:[#allocation2 + $0x2a8] sm:$0xff]
    %v900 = vld [vmem:[#allocation2 + $0x2b0] sm:$0x3]
    %v901 = vld [vmem:[#allocation2 + $0x2b8] sm:$0xff]
    %v902 = vld [vmem:[#allocation2 + $0x2c0] sm:$0xff]
    %v903 = vld [vmem:[#allocation2 + $0x2c8] sm:$0x3]
    %v904 = vld [vmem:[#allocation2 + $0x2d0] sm:$0xff]
    %v905 = vld [vmem:[#allocation2 + $0x2d8] sm:$0xff]
    %v906 = vld [vmem:[#allocation2 + $0x2e0] sm:$0x3]
    %v907 = vld [vmem:[#allocation2 + $0x2e8] sm:$0xff]
    %v908 = vld [vmem:[#allocation2 + $0x2f0] sm:$0xff]
    %v909 = vld [vmem:[#allocation2 + $0x2f8] sm:$0x3]
    %v910 = vld [vmem:[#allocation2 + $0x300] sm:$0xff]
    %v911 = vld [vmem:[#allocation2 + $0x308] sm:$0xff]
    %v912 = vld [vmem:[#allocation2 + $0x310] sm:$0x3]
    %v913 = vld [vmem:[#allocation2 + $0x318] sm:$0xff]
    %v914 = vld [vmem:[#allocation2 + $0x320] sm:$0xff]
    %v915 = vld [vmem:[#allocation2 + $0x328] sm:$0x3]
    %v916 = vld [vmem:[#allocation2 + $0x330] sm:$0xff]
    %v917 = vld [vmem:[#allocation2 + $0x338] sm:$0xff]
    %v918 = vld [vmem:[#allocation2 + $0x340] sm:$0x3]
    %v1021 = vrot.slane %v817, 2
    %v1022 = vrot.slane %v817, 4
    %v1023 = vrot.slane %v817, 6
    %v1024 = vrot.slane %v818, 2
    %v1025 = vrot.slane %v818, 4
    %v1026 = vrot.slane %v818, 6
    %v1027 = vrot.slane %v820, 2
    %v1028 = vrot.slane %v820, 4
    %v1029 = vrot.slane %v820, 6
    %v1030 = vrot.slane %v821, 2
    %v1031 = vrot.slane %v821, 4
    %v1032 = vrot.slane %v821, 6
    %v1033 = vrot.slane %v823, 2
    %v1034 = vrot.slane %v823, 4
    %v1035 = vrot.slane %v823, 6
    %v1036 = vrot.slane %v824, 2
    %v1037 = vrot.slane %v824, 4
    %v1038 = vrot.slane %v824, 6
    %v1039 = vrot.slane %v826, 2
    %v1040 = vrot.slane %v826, 4
    %v1041 = vrot.slane %v826, 6
    %v1042 = vrot.slane %v827, 2
    %v1043 = vrot.slane %v827, 4
    %v1044 = vrot.slane %v827, 6
    %v1045 = vrot.slane %v829, 2
    %v1046 = vrot.slane %v829, 4
    %v1047 = vrot.slane %v829, 6
    %v1048 = vrot.slane %v830, 2
    %v1049 = vrot.slane %v830, 4
    %v1050 = vrot.slane %v830, 6
    %v1051 = vrot.slane %v832, 2
    %v1052 = vrot.slane %v832, 4
    %v1053 = vrot.slane %v832, 6
    %v1054 = vrot.slane %v833, 2
    %v1055 = vrot.slane %v833, 4
    %v1056 = vrot.slane %v833, 6
    %v1057 = vrot.slane %v835, 2
    %v1058 = vrot.slane %v835, 4
    %v1059 = vrot.slane %v835, 6
    %v1060 = vrot.slane %v836, 2
    %v1061 = vrot.slane %v836, 4
    %v1062 = vrot.slane %v836, 6
    %v1063 = vrot.slane %v838, 2
    %v1064 = vrot.slane %v838, 4
    %v1065 = vrot.slane %v838, 6
    %v1066 = vrot.slane %v839, 2
    %v1067 = vrot.slane %v839, 4
    %v1068 = vrot.slane %v839, 6
    %v1069 = vrot.slane %v841, 2
    %v1070 = vrot.slane %v841, 4
    %v1071 = vrot.slane %v841, 6
    %v1072 = vrot.slane %v842, 2
    %v1073 = vrot.slane %v842, 4
    %v1074 = vrot.slane %v842, 6
    %v1075 = vrot.slane %v844, 2
    %v1076 = vrot.slane %v844, 4
    %v1077 = vrot.slane %v844, 6
    %v1078 = vrot.slane %v845, 2
    %v1079 = vrot.slane %v845, 4
    %v1080 = vrot.slane %v845, 6
    %v1081 = vrot.slane %v847, 2
    %v1082 = vrot.slane %v847, 4
    %v1083 = vrot.slane %v847, 6
    %v1084 = vrot.slane %v848, 2
    %v1085 = vrot.slane %v848, 4
    %v1086 = vrot.slane %v848, 6
    %v1087 = vrot.slane %v850, 2
    %v1088 = vrot.slane %v850, 4
    %v1089 = vrot.slane %v850, 6
    %v1090 = vrot.slane %v851, 2
    %v1091 = vrot.slane %v851, 4
    %v1092 = vrot.slane %v851, 6
    %v1093 = vrot.slane %v853, 2
    %v1094 = vrot.slane %v853, 4
    %v1095 = vrot.slane %v853, 6
    %v1096 = vrot.slane %v854, 2
    %v1097 = vrot.slane %v854, 4
    %v1098 = vrot.slane %v854, 6
    %v1099 = vrot.slane %v856, 2
    %v1100 = vrot.slane %v856, 4
    %v1101 = vrot.slane %v856, 6
    %v1102 = vrot.slane %v857, 2
    %v1103 = vrot.slane %v857, 4
    %v1104 = vrot.slane %v857, 6
    %v1105 = vrot.slane %v859, 2
    %v1106 = vrot.slane %v859, 4
    %v1107 = vrot.slane %v859, 6
    %v1108 = vrot.slane %v860, 2
    %v1109 = vrot.slane %v860, 4
    %v1110 = vrot.slane %v860, 6
    %v1111 = vrot.slane %v862, 2
    %v1112 = vrot.slane %v862, 4
    %v1113 = vrot.slane %v862, 6
    %v1114 = vrot.slane %v863, 2
    %v1115 = vrot.slane %v863, 4
    %v1116 = vrot.slane %v863, 6
    %v1117 = vrot.slane %v865, 2
    %v1118 = vrot.slane %v865, 4
    %v1119 = vrot.slane %v865, 6
    %v1120 = vrot.slane %v866, 2
    %v1121 = vrot.slane %v866, 4
    %v1122 = vrot.slane %v866, 6
    %v1123 = vrot.slane %v868, 2
    %v1124 = vrot.slane %v868, 4
    %v1125 = vrot.slane %v868, 6
    %v1126 = vrot.slane %v869, 2
    %v1127 = vrot.slane %v869, 4
    %v1128 = vrot.slane %v869, 6
    %v1129 = vrot.slane %v871, 2
    %v1130 = vrot.slane %v871, 4
    %v1131 = vrot.slane %v871, 6
    %v1132 = vrot.slane %v872, 2
    %v1133 = vrot.slane %v872, 4
    %v1134 = vrot.slane %v872, 6
    %v1135 = vrot.slane %v874, 2
    %v1136 = vrot.slane %v874, 4
    %v1137 = vrot.slane %v874, 6
    %v1138 = vrot.slane %v875, 2
    %v1139 = vrot.slane %v875, 4
    %v1140 = vrot.slane %v875, 6
    %v1141 = vrot.slane %v877, 2
    %v1142 = vrot.slane %v877, 4
    %v1143 = vrot.slane %v877, 6
    %v1144 = vrot.slane %v878, 2
    %v1145 = vrot.slane %v878, 4
    %v1146 = vrot.slane %v878, 6
    %v1147 = vrot.slane %v880, 2
    %v1148 = vrot.slane %v880, 4
    %v1149 = vrot.slane %v880, 6
    %v1150 = vrot.slane %v881, 2
    %v1151 = vrot.slane %v881, 4
    %v1152 = vrot.slane %v881, 6
    %v1153 = vrot.slane %v883, 2
    %v1154 = vrot.slane %v883, 4
    %v1155 = vrot.slane %v883, 6
    %v1156 = vrot.slane %v884, 2
    %v1157 = vrot.slane %v884, 4
    %v1158 = vrot.slane %v884, 6
    %v1159 = vrot.slane %v886, 2
    %v1160 = vrot.slane %v886, 4
    %v1161 = vrot.slane %v886, 6
    %v1162 = vrot.slane %v887, 2
    %v1163 = vrot.slane %v887, 4
    %v1164 = vrot.slane %v887, 6
    %v1165 = vrot.slane %v889, 2
    %v1166 = vrot.slane %v889, 4
    %v1167 = vrot.slane %v889, 6
    %v1168 = vrot.slane %v890, 2
    %v1169 = vrot.slane %v890, 4
    %v1170 = vrot.slane %v890, 6
    %v1171 = vrot.slane %v892, 2
    %v1172 = vrot.slane %v892, 4
    %v1173 = vrot.slane %v892, 6
    %v1174 = vrot.slane %v893, 2
    %v1175 = vrot.slane %v893, 4
    %v1176 = vrot.slane %v893, 6
    %v1177 = vrot.slane %v895, 2
    %v1178 = vrot.slane %v895, 4
    %v1179 = vrot.slane %v895, 6
    %v1180 = vrot.slane %v896, 2
    %v1181 = vrot.slane %v896, 4
    %v1182 = vrot.slane %v896, 6
    %v1183 = vrot.slane %v898, 2
    %v1184 = vrot.slane %v898, 4
    %v1185 = vrot.slane %v898, 6
    %v1186 = vrot.slane %v899, 2
    %v1187 = vrot.slane %v899, 4
    %v1188 = vrot.slane %v899, 6
    %v1189 = vrot.slane %v901, 2
    %v1190 = vrot.slane %v901, 4
    %v1191 = vrot.slane %v901, 6
    %v1192 = vrot.slane %v902, 2
    %v1193 = vrot.slane %v902, 4
    %v1194 = vrot.slane %v902, 6
    %v1195 = vrot.slane %v904, 2
    %v1196 = vrot.slane %v904, 4
    %v1197 = vrot.slane %v904, 6
    %v1198 = vrot.slane %v905, 2
    %v1199 = vrot.slane %v905, 4
    %v1200 = vrot.slane %v905, 6
    %v1201 = vrot.slane %v907, 2
    %v1202 = vrot.slane %v907, 4
    %v1203 = vrot.slane %v907, 6
    %v1204 = vrot.slane %v908, 2
    %v1205 = vrot.slane %v908, 4
    %v1206 = vrot.slane %v908, 6
    %v1207 = vrot.slane %v910, 2
    %v1208 = vrot.slane %v910, 4
    %v1209 = vrot.slane %v910, 6
    %v1210 = vrot.slane %v911, 2
    %v1211 = vrot.slane %v911, 4
    %v1212 = vrot.slane %v911, 6
    %v1213 = vrot.slane %v913, 2
    %v1214 = vrot.slane %v913, 4
    %v1215 = vrot.slane %v913, 6
    %v1216 = vrot.slane %v914, 2
    %v1217 = vrot.slane %v914, 4
    %v1218 = vrot.slane %v914, 6
    %v1219 = vrot.slane %v916, 2
    %v1220 = vrot.slane %v916, 4
    %v1221 = vrot.slane %v916, 6
    %v1222 = vrot.slane %v917, 2
    %v1223 = vrot.slane %v917, 4
    %v1224 = vrot.slane %v917, 6
    %v1225 = vperm.slane %v817, 0
    %v1226 = vperm.slane %v1021, 0
    %v1227 = vperm.slane %v1022, 0
    %v1228 = vperm.slane %v1023, 0
    %v1229 = vperm.slane %v818, 0
    %v1230 = vperm.slane %v1024, 0
    %v1231 = vperm.slane %v1025, 0
    %v1232 = vperm.slane %v1026, 0
    %v1233 = vperm.slane %v823, 0
    %v1234 = vperm.slane %v1033, 0
    %v1235 = vperm.slane %v1034, 0
    %v1236 = vperm.slane %v1035, 0
    %v1237 = vperm.slane %v824, 0
    %v1238 = vperm.slane %v1036, 0
    %v1239 = vperm.slane %v1037, 0
    %v1240 = vperm.slane %v1038, 0
    %v1241 = vperm.slane %v829, 0
    %v1242 = vperm.slane %v1045, 0
    %v1243 = vperm.slane %v1046, 0
    %v1244 = vperm.slane %v1047, 0
    %v1245 = vperm.slane %v830, 0
    %v1246 = vperm.slane %v1048, 0
    %v1247 = vperm.slane %v1049, 0
    %v1248 = vperm.slane %v1050, 0
    %v1249 = vperm.slane %v835, 0
    %v1250 = vperm.slane %v1057, 0
    %v1251 = vperm.slane %v1058, 0
    %v1252 = vperm.slane %v1059, 0
    %v1253 = vperm.slane %v836, 0
    %v1254 = vperm.slane %v1060, 0
    %v1255 = vperm.slane %v1061, 0
    %v1256 = vperm.slane %v1062, 0
    %v1257 = vperm.slane %v841, 0
    %v1258 = vperm.slane %v1069, 0
    %v1259 = vperm.slane %v1070, 0
    %v1260 = vperm.slane %v1071, 0
    %v1261 = vperm.slane %v842, 0
    %v1262 = vperm.slane %v1072, 0
    %v1263 = vperm.slane %v1073, 0
    %v1264 = vperm.slane %v1074, 0
    %v1265 = vperm.slane %v847, 0
    %v1266 = vperm.slane %v1081, 0
    %v1267 = vperm.slane %v1082, 0
    %v1268 = vperm.slane %v1083, 0
    %v1269 = vperm.slane %v848, 0
    %v1270 = vperm.slane %v1084, 0
    %v1271 = vperm.slane %v1085, 0
    %v1272 = vperm.slane %v1086, 0
    %v1273 = vperm.slane %v853, 0
    %v1274 = vperm.slane %v1093, 0
    %v1275 = vperm.slane %v1094, 0
    %v1276 = vperm.slane %v1095, 0
    %v1277 = vperm.slane %v854, 0
    %v1278 = vperm.slane %v1096, 0
    %v1279 = vperm.slane %v1097, 0
    %v1280 = vperm.slane %v1098, 0
    %v1281 = vperm.slane %v859, 0
    %v1282 = vperm.slane %v1105, 0
    %v1283 = vperm.slane %v1106, 0
    %v1284 = vperm.slane %v1107, 0
    %v1285 = vperm.slane %v860, 0
    %v1286 = vperm.slane %v1108, 0
    %v1287 = vperm.slane %v1109, 0
    %v1288 = vperm.slane %v1110, 0
    %v1289 = vperm.slane %v868, 0
    %v1290 = vperm.slane %v1123, 0
    %v1291 = vperm.slane %v1124, 0
    %v1292 = vperm.slane %v1125, 0
    %v1293 = vperm.slane %v869, 0
    %v1294 = vperm.slane %v1126, 0
    %v1295 = vperm.slane %v1127, 0
    %v1296 = vperm.slane %v1128, 0
    %v1297 = vperm.slane %v874, 0
    %v1298 = vperm.slane %v1135, 0
    %v1299 = vperm.slane %v1136, 0
    %v1300 = vperm.slane %v1137, 0
    %v1301 = vperm.slane %v875, 0
    %v1302 = vperm.slane %v1138, 0
    %v1303 = vperm.slane %v1139, 0
    %v1304 = vperm.slane %v1140, 0
    %v1305 = vperm.slane %v880, 0
    %v1306 = vperm.slane %v1147, 0
    %v1307 = vperm.slane %v1148, 0
    %v1308 = vperm.slane %v1149, 0
    %v1309 = vperm.slane %v881, 0
    %v1310 = vperm.slane %v1150, 0
    %v1311 = vperm.slane %v1151, 0
    %v1312 = vperm.slane %v1152, 0
    %v1313 = vperm.slane %v886, 0
    %v1314 = vperm.slane %v1159, 0
    %v1315 = vperm.slane %v1160, 0
    %v1316 = vperm.slane %v1161, 0
    %v1317 = vperm.slane %v887, 0
    %v1318 = vperm.slane %v1162, 0
    %v1319 = vperm.slane %v1163, 0
    %v1320 = vperm.slane %v1164, 0
    %v1321 = vperm.slane %v892, 0
    %v1322 = vperm.slane %v1171, 0
    %v1323 = vperm.slane %v1172, 0
    %v1324 = vperm.slane %v1173, 0
    %v1325 = vperm.slane %v893, 0
    %v1326 = vperm.slane %v1174, 0
    %v1327 = vperm.slane %v1175, 0
    %v1328 = vperm.slane %v1176, 0
    %v1329 = vperm.slane %v898, 0
    %v1330 = vperm.slane %v1183, 0
    %v1331 = vperm.slane %v1184, 0
    %v1332 = vperm.slane %v1185, 0
    %v1333 = vperm.slane %v899, 0
    %v1334 = vperm.slane %v1186, 0
    %v1335 = vperm.slane %v1187, 0
    %v1336 = vperm.slane %v1188, 0
    %v1337 = vperm.slane %v904, 0
    %v1338 = vperm.slane %v1195, 0
    %v1339 = vperm.slane %v1196, 0
    %v1340 = vperm.slane %v1197, 0
    %v1341 = vperm.slane %v905, 0
    %v1342 = vperm.slane %v1198, 0
    %v1343 = vperm.slane %v1199, 0
    %v1344 = vperm.slane %v1200, 0
    %v1345 = vperm.slane %v910, 0
    %v1346 = vperm.slane %v1207, 0
    %v1347 = vperm.slane %v1208, 0
    %v1348 = vperm.slane %v1209, 0
    %v1349 = vperm.slane %v911, 0
    %v1350 = vperm.slane %v1210, 0
    %v1351 = vperm.slane %v1211, 0
    %v1352 = vperm.slane %v1212, 0
    %vm1353 = vcmask 1041409
    %v1354 = vsel %vm1353, %v1226, %v1225
    %vm1355 = vcmask 1042434
    %v1356 = vsel %vm1355, %v1227, %v1354
    %vm1357 = vcmask 1043459
    %v1358 = vsel %vm1357, %v1228, %v1356
    %vm1359 = vcmask 1044484
    %v1360 = vsel %vm1359, %v1229, %v1358
    %vm1361 = vcmask 1045509
    %v1362 = vsel %vm1361, %v1230, %v1360
    %vm1363 = vcmask 1046534
    %v1364 = vsel %vm1363, %v1231, %v1362
    %vm1365 = vcmask 1047559
    %v1366 = vsel %vm1365, %v1232, %v1364
    %v1367 = vsel %vm1353, %v1234, %v1233
    %v1368 = vsel %vm1355, %v1235, %v1367
    %v1369 = vsel %vm1357, %v1236, %v1368
    %v1370 = vsel %vm1359, %v1237, %v1369
    %v1371 = vsel %vm1361, %v1238, %v1370
    %v1372 = vsel %vm1363, %v1239, %v1371
    %v1373 = vsel %vm1365, %v1240, %v1372
    %v1374 = vsel %vm1353, %v1242, %v1241
    %v1375 = vsel %vm1355, %v1243, %v1374
    %v1376 = vsel %vm1357, %v1244, %v1375
    %v1377 = vsel %vm1359, %v1245, %v1376
    %v1378 = vsel %vm1361, %v1246, %v1377
    %v1379 = vsel %vm1363, %v1247, %v1378
    %v1380 = vsel %vm1365, %v1248, %v1379
    %v1381 = vsel %vm1353, %v1250, %v1249
    %v1382 = vsel %vm1355, %v1251, %v1381
    %v1383 = vsel %vm1357, %v1252, %v1382
    %v1384 = vsel %vm1359, %v1253, %v1383
    %v1385 = vsel %vm1361, %v1254, %v1384
    %v1386 = vsel %vm1363, %v1255, %v1385
    %v1387 = vsel %vm1365, %v1256, %v1386
    %v1388 = vsel %vm1353, %v1258, %v1257
    %v1389 = vsel %vm1355, %v1259, %v1388
    %v1390 = vsel %vm1357, %v1260, %v1389
    %v1391 = vsel %vm1359, %v1261, %v1390
    %v1392 = vsel %vm1361, %v1262, %v1391
    %v1393 = vsel %vm1363, %v1263, %v1392
    %v1394 = vsel %vm1365, %v1264, %v1393
    %v1395 = vsel %vm1353, %v1266, %v1265
    %v1396 = vsel %vm1355, %v1267, %v1395
    %v1397 = vsel %vm1357, %v1268, %v1396
    %v1398 = vsel %vm1359, %v1269, %v1397
    %v1399 = vsel %vm1361, %v1270, %v1398
    %v1400 = vsel %vm1363, %v1271, %v1399
    %v1401 = vsel %vm1365, %v1272, %v1400
    %v1402 = vsel %vm1353, %v1274, %v1273
    %v1403 = vsel %vm1355, %v1275, %v1402
    %v1404 = vsel %vm1357, %v1276, %v1403
    %v1405 = vsel %vm1359, %v1277, %v1404
    %v1406 = vsel %vm1361, %v1278, %v1405
    %v1407 = vsel %vm1363, %v1279, %v1406
    %v1408 = vsel %vm1365, %v1280, %v1407
    %v1409 = vsel %vm1353, %v1282, %v1281
    %v1410 = vsel %vm1355, %v1283, %v1409
    %v1411 = vsel %vm1357, %v1284, %v1410
    %v1412 = vsel %vm1359, %v1285, %v1411
    %v1413 = vsel %vm1361, %v1286, %v1412
    %v1414 = vsel %vm1363, %v1287, %v1413
    %v1415 = vsel %vm1365, %v1288, %v1414
    %v1416 = vsel %vm1353, %v1290, %v1289
    %v1417 = vsel %vm1355, %v1291, %v1416
    %v1418 = vsel %vm1357, %v1292, %v1417
    %v1419 = vsel %vm1359, %v1293, %v1418
    %v1420 = vsel %vm1361, %v1294, %v1419
    %v1421 = vsel %vm1363, %v1295, %v1420
    %v1422 = vsel %vm1365, %v1296, %v1421
    %v1423 = vsel %vm1353, %v1298, %v1297
    %v1424 = vsel %vm1355, %v1299, %v1423
    %v1425 = vsel %vm1357, %v1300, %v1424
    %v1426 = vsel %vm1359, %v1301, %v1425
    %v1427 = vsel %vm1361, %v1302, %v1426
    %v1428 = vsel %vm1363, %v1303, %v1427
    %v1429 = vsel %vm1365, %v1304, %v1428
    %v1430 = vsel %vm1353, %v1306, %v1305
    %v1431 = vsel %vm1355, %v1307, %v1430
    %v1432 = vsel %vm1357, %v1308, %v1431
    %v1433 = vsel %vm1359, %v1309, %v1432
    %v1434 = vsel %vm1361, %v1310, %v1433
    %v1435 = vsel %vm1363, %v1311, %v1434
    %v1436 = vsel %vm1365, %v1312, %v1435
    %v1437 = vsel %vm1353, %v1314, %v1313
    %v1438 = vsel %vm1355, %v1315, %v1437
    %v1439 = vsel %vm1357, %v1316, %v1438
    %v1440 = vsel %vm1359, %v1317, %v1439
    %v1441 = vsel %vm1361, %v1318, %v1440
    %v1442 = vsel %vm1363, %v1319, %v1441
    %v1443 = vsel %vm1365, %v1320, %v1442
    %v1444 = vsel %vm1353, %v1322, %v1321
    %v1445 = vsel %vm1355, %v1323, %v1444
    %v1446 = vsel %vm1357, %v1324, %v1445
    %v1447 = vsel %vm1359, %v1325, %v1446
    %v1448 = vsel %vm1361, %v1326, %v1447
    %v1449 = vsel %vm1363, %v1327, %v1448
    %v1450 = vsel %vm1365, %v1328, %v1449
    %v1451 = vsel %vm1353, %v1330, %v1329
    %v1452 = vsel %vm1355, %v1331, %v1451
    %v1453 = vsel %vm1357, %v1332, %v1452
    %v1454 = vsel %vm1359, %v1333, %v1453
    %v1455 = vsel %vm1361, %v1334, %v1454
    %v1456 = vsel %vm1363, %v1335, %v1455
    %v1457 = vsel %vm1365, %v1336, %v1456
    %v1458 = vsel %vm1353, %v1338, %v1337
    %v1459 = vsel %vm1355, %v1339, %v1458
    %v1460 = vsel %vm1357, %v1340, %v1459
    %v1461 = vsel %vm1359, %v1341, %v1460
    %v1462 = vsel %vm1361, %v1342, %v1461
    %v1463 = vsel %vm1363, %v1343, %v1462
    %v1464 = vsel %vm1365, %v1344, %v1463
    %v1465 = vsel %vm1353, %v1346, %v1345
    %v1466 = vsel %vm1355, %v1347, %v1465
    %v1467 = vsel %vm1357, %v1348, %v1466
    %v1468 = vsel %vm1359, %v1349, %v1467
    %v1469 = vsel %vm1361, %v1350, %v1468
    %v1470 = vsel %vm1363, %v1351, %v1469
    %v1471 = vsel %vm1365, %v1352, %v1470
    %v1488 = vperm.slane %v817, 1
    %v1489 = vperm.slane %v1021, 1
    %v1490 = vperm.slane %v1022, 1
    %v1491 = vperm.slane %v1023, 1
    %v1492 = vperm.slane %v818, 1
    %v1493 = vperm.slane %v1024, 1
    %v1494 = vperm.slane %v1025, 1
    %v1495 = vperm.slane %v1026, 1
    %v1496 = vperm.slane %v823, 1
    %v1497 = vperm.slane %v1033, 1
    %v1498 = vperm.slane %v1034, 1
    %v1499 = vperm.slane %v1035, 1
    %v1500 = vperm.slane %v824, 1
    %v1501 = vperm.slane %v1036, 1
    %v1502 = vperm.slane %v1037, 1
    %v1503 = vperm.slane %v1038, 1
    %v1504 = vperm.slane %v829, 1
    %v1505 = vperm.slane %v1045, 1
    %v1506 = vperm.slane %v1046, 1
    %v1507 = vperm.slane %v1047, 1
    %v1508 = vperm.slane %v830, 1
    %v1509 = vperm.slane %v1048, 1
    %v1510 = vperm.slane %v1049, 1
    %v1511 = vperm.slane %v1050, 1
    %v1512 = vperm.slane %v835, 1
    %v1513 = vperm.slane %v1057, 1
    %v1514 = vperm.slane %v1058, 1
    %v1515 = vperm.slane %v1059, 1
    %v1516 = vperm.slane %v836, 1
    %v1517 = vperm.slane %v1060, 1
    %v1518 = vperm.slane %v1061, 1
    %v1519 = vperm.slane %v1062, 1
    %v1520 = vperm.slane %v841, 1
    %v1521 = vperm.slane %v1069, 1
    %v1522 = vperm.slane %v1070, 1
    %v1523 = vperm.slane %v1071, 1
    %v1524 = vperm.slane %v842, 1
    %v1525 = vperm.slane %v1072, 1
    %v1526 = vperm.slane %v1073, 1
    %v1527 = vperm.slane %v1074, 1
    %v1528 = vperm.slane %v847, 1
    %v1529 = vperm.slane %v1081, 1
    %v1530 = vperm.slane %v1082, 1
    %v1531 = vperm.slane %v1083, 1
    %v1532 = vperm.slane %v848, 1
    %v1533 = vperm.slane %v1084, 1
    %v1534 = vperm.slane %v1085, 1
    %v1535 = vperm.slane %v1086, 1
    %v1536 = vperm.slane %v853, 1
    %v1537 = vperm.slane %v1093, 1
    %v1538 = vperm.slane %v1094, 1
    %v1539 = vperm.slane %v1095, 1
    %v1540 = vperm.slane %v854, 1
    %v1541 = vperm.slane %v1096, 1
    %v1542 = vperm.slane %v1097, 1
    %v1543 = vperm.slane %v1098, 1
    %v1544 = vperm.slane %v859, 1
    %v1545 = vperm.slane %v1105, 1
    %v1546 = vperm.slane %v1106, 1
    %v1547 = vperm.slane %v1107, 1
    %v1548 = vperm.slane %v860, 1
    %v1549 = vperm.slane %v1108, 1
    %v1550 = vperm.slane %v1109, 1
    %v1551 = vperm.slane %v1110, 1
    %v1552 = vperm.slane %v868, 1
    %v1553 = vperm.slane %v1123, 1
    %v1554 = vperm.slane %v1124, 1
    %v1555 = vperm.slane %v1125, 1
    %v1556 = vperm.slane %v869, 1
    %v1557 = vperm.slane %v1126, 1
    %v1558 = vperm.slane %v1127, 1
    %v1559 = vperm.slane %v1128, 1
    %v1560 = vperm.slane %v874, 1
    %v1561 = vperm.slane %v1135, 1
    %v1562 = vperm.slane %v1136, 1
    %v1563 = vperm.slane %v1137, 1
    %v1564 = vperm.slane %v875, 1
    %v1565 = vperm.slane %v1138, 1
    %v1566 = vperm.slane %v1139, 1
    %v1567 = vperm.slane %v1140, 1
    %v1568 = vperm.slane %v880, 1
    %v1569 = vperm.slane %v1147, 1
    %v1570 = vperm.slane %v1148, 1
    %v1571 = vperm.slane %v1149, 1
    %v1572 = vperm.slane %v881, 1
    %v1573 = vperm.slane %v1150, 1
    %v1574 = vperm.slane %v1151, 1
    %v1575 = vperm.slane %v1152, 1
    %v1576 = vperm.slane %v886, 1
    %v1577 = vperm.slane %v1159, 1
    %v1578 = vperm.slane %v1160, 1
    %v1579 = vperm.slane %v1161, 1
    %v1580 = vperm.slane %v887, 1
    %v1581 = vperm.slane %v1162, 1
    %v1582 = vperm.slane %v1163, 1
    %v1583 = vperm.slane %v1164, 1
    %v1584 = vperm.slane %v892, 1
    %v1585 = vperm.slane %v1171, 1
    %v1586 = vperm.slane %v1172, 1
    %v1587 = vperm.slane %v1173, 1
    %v1588 = vperm.slane %v893, 1
    %v1589 = vperm.slane %v1174, 1
    %v1590 = vperm.slane %v1175, 1
    %v1591 = vperm.slane %v1176, 1
    %v1592 = vperm.slane %v898, 1
    %v1593 = vperm.slane %v1183, 1
    %v1594 = vperm.slane %v1184, 1
    %v1595 = vperm.slane %v1185, 1
    %v1596 = vperm.slane %v899, 1
    %v1597 = vperm.slane %v1186, 1
    %v1598 = vperm.slane %v1187, 1
    %v1599 = vperm.slane %v1188, 1
    %v1600 = vperm.slane %v904, 1
    %v1601 = vperm.slane %v1195, 1
    %v1602 = vperm.slane %v1196, 1
    %v1603 = vperm.slane %v1197, 1
    %v1604 = vperm.slane %v905, 1
    %v1605 = vperm.slane %v1198, 1
    %v1606 = vperm.slane %v1199, 1
    %v1607 = vperm.slane %v1200, 1
    %v1608 = vperm.slane %v910, 1
    %v1609 = vperm.slane %v1207, 1
    %v1610 = vperm.slane %v1208, 1
    %v1611 = vperm.slane %v1209, 1
    %v1612 = vperm.slane %v911, 1
    %v1613 = vperm.slane %v1210, 1
    %v1614 = vperm.slane %v1211, 1
    %v1615 = vperm.slane %v1212, 1
    %v1616 = vsel %vm1353, %v1489, %v1488
    %v1617 = vsel %vm1355, %v1490, %v1616
    %v1618 = vsel %vm1357, %v1491, %v1617
    %v1619 = vsel %vm1359, %v1492, %v1618
    %v1620 = vsel %vm1361, %v1493, %v1619
    %v1621 = vsel %vm1363, %v1494, %v1620
    %v1622 = vsel %vm1365, %v1495, %v1621
    %v1623 = vsel %vm1353, %v1497, %v1496
    %v1624 = vsel %vm1355, %v1498, %v1623
    %v1625 = vsel %vm1357, %v1499, %v1624
    %v1626 = vsel %vm1359, %v1500, %v1625
    %v1627 = vsel %vm1361, %v1501, %v1626
    %v1628 = vsel %vm1363, %v1502, %v1627
    %v1629 = vsel %vm1365, %v1503, %v1628
    %v1630 = vsel %vm1353, %v1505, %v1504
    %v1631 = vsel %vm1355, %v1506, %v1630
    %v1632 = vsel %vm1357, %v1507, %v1631
    %v1633 = vsel %vm1359, %v1508, %v1632
    %v1634 = vsel %vm1361, %v1509, %v1633
    %v1635 = vsel %vm1363, %v1510, %v1634
    %v1636 = vsel %vm1365, %v1511, %v1635
    %v1637 = vsel %vm1353, %v1513, %v1512
    %v1638 = vsel %vm1355, %v1514, %v1637
    %v1639 = vsel %vm1357, %v1515, %v1638
    %v1640 = vsel %vm1359, %v1516, %v1639
    %v1641 = vsel %vm1361, %v1517, %v1640
    %v1642 = vsel %vm1363, %v1518, %v1641
    %v1643 = vsel %vm1365, %v1519, %v1642
    %v1644 = vsel %vm1353, %v1521, %v1520
    %v1645 = vsel %vm1355, %v1522, %v1644
    %v1646 = vsel %vm1357, %v1523, %v1645
    %v1647 = vsel %vm1359, %v1524, %v1646
    %v1648 = vsel %vm1361, %v1525, %v1647
    %v1649 = vsel %vm1363, %v1526, %v1648
    %v1650 = vsel %vm1365, %v1527, %v1649
    %v1651 = vsel %vm1353, %v1529, %v1528
    %v1652 = vsel %vm1355, %v1530, %v1651
    %v1653 = vsel %vm1357, %v1531, %v1652
    %v1654 = vsel %vm1359, %v1532, %v1653
    %v1655 = vsel %vm1361, %v1533, %v1654
    %v1656 = vsel %vm1363, %v1534, %v1655
    %v1657 = vsel %vm1365, %v1535, %v1656
    %v1658 = vsel %vm1353, %v1537, %v1536
    %v1659 = vsel %vm1355, %v1538, %v1658
    %v1660 = vsel %vm1357, %v1539, %v1659
    %v1661 = vsel %vm1359, %v1540, %v1660
    %v1662 = vsel %vm1361, %v1541, %v1661
    %v1663 = vsel %vm1363, %v1542, %v1662
    %v1664 = vsel %vm1365, %v1543, %v1663
    %v1665 = vsel %vm1353, %v1545, %v1544
    %v1666 = vsel %vm1355, %v1546, %v1665
    %v1667 = vsel %vm1357, %v1547, %v1666
    %v1668 = vsel %vm1359, %v1548, %v1667
    %v1669 = vsel %vm1361, %v1549, %v1668
    %v1670 = vsel %vm1363, %v1550, %v1669
    %v1671 = vsel %vm1365, %v1551, %v1670
    %v1672 = vsel %vm1353, %v1553, %v1552
    %v1673 = vsel %vm1355, %v1554, %v1672
    %v1674 = vsel %vm1357, %v1555, %v1673
    %v1675 = vsel %vm1359, %v1556, %v1674
    %v1676 = vsel %vm1361, %v1557, %v1675
    %v1677 = vsel %vm1363, %v1558, %v1676
    %v1678 = vsel %vm1365, %v1559, %v1677
    %v1679 = vsel %vm1353, %v1561, %v1560
    %v1680 = vsel %vm1355, %v1562, %v1679
    %v1681 = vsel %vm1357, %v1563, %v1680
    %v1682 = vsel %vm1359, %v1564, %v1681
    %v1683 = vsel %vm1361, %v1565, %v1682
    %v1684 = vsel %vm1363, %v1566, %v1683
    %v1685 = vsel %vm1365, %v1567, %v1684
    %v1686 = vsel %vm1353, %v1569, %v1568
    %v1687 = vsel %vm1355, %v1570, %v1686
    %v1688 = vsel %vm1357, %v1571, %v1687
    %v1689 = vsel %vm1359, %v1572, %v1688
    %v1690 = vsel %vm1361, %v1573, %v1689
    %v1691 = vsel %vm1363, %v1574, %v1690
    %v1692 = vsel %vm1365, %v1575, %v1691
    %v1693 = vsel %vm1353, %v1577, %v1576
    %v1694 = vsel %vm1355, %v1578, %v1693
    %v1695 = vsel %vm1357, %v1579, %v1694
    %v1696 = vsel %vm1359, %v1580, %v1695
    %v1697 = vsel %vm1361, %v1581, %v1696
    %v1698 = vsel %vm1363, %v1582, %v1697
    %v1699 = vsel %vm1365, %v1583, %v1698
    %v1700 = vsel %vm1353, %v1585, %v1584
    %v1701 = vsel %vm1355, %v1586, %v1700
    %v1702 = vsel %vm1357, %v1587, %v1701
    %v1703 = vsel %vm1359, %v1588, %v1702
    %v1704 = vsel %vm1361, %v1589, %v1703
    %v1705 = vsel %vm1363, %v1590, %v1704
    %v1706 = vsel %vm1365, %v1591, %v1705
    %v1707 = vsel %vm1353, %v1593, %v1592
    %v1708 = vsel %vm1355, %v1594, %v1707
    %v1709 = vsel %vm1357, %v1595, %v1708
    %v1710 = vsel %vm1359, %v1596, %v1709
    %v1711 = vsel %vm1361, %v1597, %v1710
    %v1712 = vsel %vm1363, %v1598, %v1711
    %v1713 = vsel %vm1365, %v1599, %v1712
    %v1714 = vsel %vm1353, %v1601, %v1600
    %v1715 = vsel %vm1355, %v1602, %v1714
    %v1716 = vsel %vm1357, %v1603, %v1715
    %v1717 = vsel %vm1359, %v1604, %v1716
    %v1718 = vsel %vm1361, %v1605, %v1717
    %v1719 = vsel %vm1363, %v1606, %v1718
    %v1720 = vsel %vm1365, %v1607, %v1719
    %v1721 = vsel %vm1353, %v1609, %v1608
    %v1722 = vsel %vm1355, %v1610, %v1721
    %v1723 = vsel %vm1357, %v1611, %v1722
    %v1724 = vsel %vm1359, %v1612, %v1723
    %v1725 = vsel %vm1361, %v1613, %v1724
    %v1726 = vsel %vm1363, %v1614, %v1725
    %v1727 = vsel %vm1365, %v1615, %v1726
    %1728 = vrot.lane.b32.xlu0 %v1622, 4
    %v1729 = vpop.permute.xlu0 %1728
    %1730 = vrot.lane.b32.xlu0 %v1629, 4
    %v1731 = vpop.permute.xlu0 %1730
    %1732 = vrot.lane.b32.xlu0 %v1636, 4
    %v1733 = vpop.permute.xlu0 %1732
    %1734 = vrot.lane.b32.xlu0 %v1643, 4
    %v1735 = vpop.permute.xlu0 %1734
    %1736 = vrot.lane.b32.xlu0 %v1650, 4
    %v1737 = vpop.permute.xlu0 %1736
    %1738 = vrot.lane.b32.xlu0 %v1657, 4
    %v1739 = vpop.permute.xlu0 %1738
    %1740 = vrot.lane.b32.xlu0 %v1664, 4
    %v1741 = vpop.permute.xlu0 %1740
    %1742 = vrot.lane.b32.xlu0 %v1671, 4
    %v1743 = vpop.permute.xlu0 %1742
    %1744 = vrot.lane.b32.xlu0 %v1678, 4
    %v1745 = vpop.permute.xlu0 %1744
    %1746 = vrot.lane.b32.xlu0 %v1685, 4
    %v1747 = vpop.permute.xlu0 %1746
    %1748 = vrot.lane.b32.xlu0 %v1692, 4
    %v1749 = vpop.permute.xlu0 %1748
    %1750 = vrot.lane.b32.xlu0 %v1699, 4
    %v1751 = vpop.permute.xlu0 %1750
    %1752 = vrot.lane.b32.xlu0 %v1706, 4
    %v1753 = vpop.permute.xlu0 %1752
    %1754 = vrot.lane.b32.xlu0 %v1713, 4
    %v1755 = vpop.permute.xlu0 %1754
    %1756 = vrot.lane.b32.xlu0 %v1720, 4
    %v1757 = vpop.permute.xlu0 %1756
    %1758 = vrot.lane.b32.xlu0 %v1727, 4
    %v1759 = vpop.permute.xlu0 %1758
    %v1776 = vperm.slane %v819, 0
    %v1777 = vperm.slane %v825, 0
    %v1778 = vperm.slane %v831, 0
    %v1779 = vperm.slane %v837, 0
    %v1780 = vperm.slane %v843, 0
    %v1781 = vperm.slane %v849, 0
    %v1782 = vperm.slane %v855, 0
    %v1783 = vperm.slane %v861, 0
    %v1784 = vperm.slane %v870, 0
    %v1785 = vperm.slane %v876, 0
    %v1786 = vperm.slane %v882, 0
    %v1787 = vperm.slane %v888, 0
    %v1788 = vperm.slane %v894, 0
    %v1789 = vperm.slane %v900, 0
    %v1790 = vperm.slane %v906, 0
    %v1791 = vperm.slane %v912, 0
    %v1792 = vsel %vm1353, %v1227, %v1226
    %v1793 = vsel %vm1355, %v1228, %v1792
    %v1794 = vsel %vm1357, %v1229, %v1793
    %v1795 = vsel %vm1359, %v1230, %v1794
    %v1796 = vsel %vm1361, %v1231, %v1795
    %v1797 = vsel %vm1363, %v1232, %v1796
    %v1798 = vsel %vm1365, %v1776, %v1797
    %v1799 = vsel %vm1353, %v1235, %v1234
    %v1800 = vsel %vm1355, %v1236, %v1799
    %v1801 = vsel %vm1357, %v1237, %v1800
    %v1802 = vsel %vm1359, %v1238, %v1801
    %v1803 = vsel %vm1361, %v1239, %v1802
    %v1804 = vsel %vm1363, %v1240, %v1803
    %v1805 = vsel %vm1365, %v1777, %v1804
    %v1806 = vsel %vm1353, %v1243, %v1242
    %v1807 = vsel %vm1355, %v1244, %v1806
    %v1808 = vsel %vm1357, %v1245, %v1807
    %v1809 = vsel %vm1359, %v1246, %v1808
    %v1810 = vsel %vm1361, %v1247, %v1809
    %v1811 = vsel %vm1363, %v1248, %v1810
    %v1812 = vsel %vm1365, %v1778, %v1811
    %v1813 = vsel %vm1353, %v1251, %v1250
    %v1814 = vsel %vm1355, %v1252, %v1813
    %v1815 = vsel %vm1357, %v1253, %v1814
    %v1816 = vsel %vm1359, %v1254, %v1815
    %v1817 = vsel %vm1361, %v1255, %v1816
    %v1818 = vsel %vm1363, %v1256, %v1817
    %v1819 = vsel %vm1365, %v1779, %v1818
    %v1820 = vsel %vm1353, %v1259, %v1258
    %v1821 = vsel %vm1355, %v1260, %v1820
    %v1822 = vsel %vm1357, %v1261, %v1821
    %v1823 = vsel %vm1359, %v1262, %v1822
    %v1824 = vsel %vm1361, %v1263, %v1823
    %v1825 = vsel %vm1363, %v1264, %v1824
    %v1826 = vsel %vm1365, %v1780, %v1825
    %v1827 = vsel %vm1353, %v1267, %v1266
    %v1828 = vsel %vm1355, %v1268, %v1827
    %v1829 = vsel %vm1357, %v1269, %v1828
    %v1830 = vsel %vm1359, %v1270, %v1829
    %v1831 = vsel %vm1361, %v1271, %v1830
    %v1832 = vsel %vm1363, %v1272, %v1831
    %v1833 = vsel %vm1365, %v1781, %v1832
    %v1834 = vsel %vm1353, %v1275, %v1274
    %v1835 = vsel %vm1355, %v1276, %v1834
    %v1836 = vsel %vm1357, %v1277, %v1835
    %v1837 = vsel %vm1359, %v1278, %v1836
    %v1838 = vsel %vm1361, %v1279, %v1837
    %v1839 = vsel %vm1363, %v1280, %v1838
    %v1840 = vsel %vm1365, %v1782, %v1839
    %v1841 = vsel %vm1353, %v1283, %v1282
    %v1842 = vsel %vm1355, %v1284, %v1841
    %v1843 = vsel %vm1357, %v1285, %v1842
    %v1844 = vsel %vm1359, %v1286, %v1843
    %v1845 = vsel %vm1361, %v1287, %v1844
    %v1846 = vsel %vm1363, %v1288, %v1845
    %v1847 = vsel %vm1365, %v1783, %v1846
    %v1848 = vsel %vm1353, %v1291, %v1290
    %v1849 = vsel %vm1355, %v1292, %v1848
    %v1850 = vsel %vm1357, %v1293, %v1849
    %v1851 = vsel %vm1359, %v1294, %v1850
    %v1852 = vsel %vm1361, %v1295, %v1851
    %v1853 = vsel %vm1363, %v1296, %v1852
    %v1854 = vsel %vm1365, %v1784, %v1853
    %v1855 = vsel %vm1353, %v1299, %v1298
    %v1856 = vsel %vm1355, %v1300, %v1855
    %v1857 = vsel %vm1357, %v1301, %v1856
    %v1858 = vsel %vm1359, %v1302, %v1857
    %v1859 = vsel %vm1361, %v1303, %v1858
    %v1860 = vsel %vm1363, %v1304, %v1859
    %v1861 = vsel %vm1365, %v1785, %v1860
    %v1862 = vsel %vm1353, %v1307, %v1306
    %v1863 = vsel %vm1355, %v1308, %v1862
    %v1864 = vsel %vm1357, %v1309, %v1863
    %v1865 = vsel %vm1359, %v1310, %v1864
    %v1866 = vsel %vm1361, %v1311, %v1865
    %v1867 = vsel %vm1363, %v1312, %v1866
    %v1868 = vsel %vm1365, %v1786, %v1867
    %v1869 = vsel %vm1353, %v1315, %v1314
    %v1870 = vsel %vm1355, %v1316, %v1869
    %v1871 = vsel %vm1357, %v1317, %v1870
    %v1872 = vsel %vm1359, %v1318, %v1871
    %v1873 = vsel %vm1361, %v1319, %v1872
    %v1874 = vsel %vm1363, %v1320, %v1873
    %v1875 = vsel %vm1365, %v1787, %v1874
    %v1876 = vsel %vm1353, %v1323, %v1322
    %v1877 = vsel %vm1355, %v1324, %v1876
    %v1878 = vsel %vm1357, %v1325, %v1877
    %v1879 = vsel %vm1359, %v1326, %v1878
    %v1880 = vsel %vm1361, %v1327, %v1879
    %v1881 = vsel %vm1363, %v1328, %v1880
    %v1882 = vsel %vm1365, %v1788, %v1881
    %v1883 = vsel %vm1353, %v1331, %v1330
    %v1884 = vsel %vm1355, %v1332, %v1883
    %v1885 = vsel %vm1357, %v1333, %v1884
    %v1886 = vsel %vm1359, %v1334, %v1885
    %v1887 = vsel %vm1361, %v1335, %v1886
    %v1888 = vsel %vm1363, %v1336, %v1887
    %v1889 = vsel %vm1365, %v1789, %v1888
    %v1890 = vsel %vm1353, %v1339, %v1338
    %v1891 = vsel %vm1355, %v1340, %v1890
    %v1892 = vsel %vm1357, %v1341, %v1891
    %v1893 = vsel %vm1359, %v1342, %v1892
    %v1894 = vsel %vm1361, %v1343, %v1893
    %v1895 = vsel %vm1363, %v1344, %v1894
    %v1896 = vsel %vm1365, %v1790, %v1895
    %v1897 = vsel %vm1353, %v1347, %v1346
    %v1898 = vsel %vm1355, %v1348, %v1897
    %v1899 = vsel %vm1357, %v1349, %v1898
    %v1900 = vsel %vm1359, %v1350, %v1899
    %v1901 = vsel %vm1361, %v1351, %v1900
    %v1902 = vsel %vm1363, %v1352, %v1901
    %v1903 = vsel %vm1365, %v1791, %v1902
    %1904 = vrot.lane.b32.xlu0 %v1798, 8
    %v1905 = vpop.permute.xlu0 %1904
    %1906 = vrot.lane.b32.xlu0 %v1805, 8
    %v1907 = vpop.permute.xlu0 %1906
    %1908 = vrot.lane.b32.xlu0 %v1812, 8
    %v1909 = vpop.permute.xlu0 %1908
    %1910 = vrot.lane.b32.xlu0 %v1819, 8
    %v1911 = vpop.permute.xlu0 %1910
    %1912 = vrot.lane.b32.xlu0 %v1826, 8
    %v1913 = vpop.permute.xlu0 %1912
    %1914 = vrot.lane.b32.xlu0 %v1833, 8
    %v1915 = vpop.permute.xlu0 %1914
    %1916 = vrot.lane.b32.xlu0 %v1840, 8
    %v1917 = vpop.permute.xlu0 %1916
    %1918 = vrot.lane.b32.xlu0 %v1847, 8
    %v1919 = vpop.permute.xlu0 %1918
    %1920 = vrot.lane.b32.xlu0 %v1854, 8
    %v1921 = vpop.permute.xlu0 %1920
    %1922 = vrot.lane.b32.xlu0 %v1861, 8
    %v1923 = vpop.permute.xlu0 %1922
    %1924 = vrot.lane.b32.xlu0 %v1868, 8
    %v1925 = vpop.permute.xlu0 %1924
    %1926 = vrot.lane.b32.xlu0 %v1875, 8
    %v1927 = vpop.permute.xlu0 %1926
    %1928 = vrot.lane.b32.xlu0 %v1882, 8
    %v1929 = vpop.permute.xlu0 %1928
    %1930 = vrot.lane.b32.xlu0 %v1889, 8
    %v1931 = vpop.permute.xlu0 %1930
    %1932 = vrot.lane.b32.xlu0 %v1896, 8
    %v1933 = vpop.permute.xlu0 %1932
    %1934 = vrot.lane.b32.xlu0 %v1903, 8
    %v1935 = vpop.permute.xlu0 %1934
    %v1952 = vperm.slane %v820, 0
    %v1953 = vperm.slane %v1027, 0
    %v1954 = vperm.slane %v1028, 0
    %v1955 = vperm.slane %v1029, 0
    %v1956 = vperm.slane %v821, 0
    %v1957 = vperm.slane %v1030, 0
    %v1958 = vperm.slane %v1031, 0
    %v1959 = vperm.slane %v1032, 0
    %v1960 = vperm.slane %v826, 0
    %v1961 = vperm.slane %v1039, 0
    %v1962 = vperm.slane %v1040, 0
    %v1963 = vperm.slane %v1041, 0
    %v1964 = vperm.slane %v827, 0
    %v1965 = vperm.slane %v1042, 0
    %v1966 = vperm.slane %v1043, 0
    %v1967 = vperm.slane %v1044, 0
    %v1968 = vperm.slane %v832, 0
    %v1969 = vperm.slane %v1051, 0
    %v1970 = vperm.slane %v1052, 0
    %v1971 = vperm.slane %v1053, 0
    %v1972 = vperm.slane %v833, 0
    %v1973 = vperm.slane %v1054, 0
    %v1974 = vperm.slane %v1055, 0
    %v1975 = vperm.slane %v1056, 0
    %v1976 = vperm.slane %v838, 0
    %v1977 = vperm.slane %v1063, 0
    %v1978 = vperm.slane %v1064, 0
    %v1979 = vperm.slane %v1065, 0
    %v1980 = vperm.slane %v839, 0
    %v1981 = vperm.slane %v1066, 0
    %v1982 = vperm.slane %v1067, 0
    %v1983 = vperm.slane %v1068, 0
    %v1984 = vperm.slane %v844, 0
    %v1985 = vperm.slane %v1075, 0
    %v1986 = vperm.slane %v1076, 0
    %v1987 = vperm.slane %v1077, 0
    %v1988 = vperm.slane %v845, 0
    %v1989 = vperm.slane %v1078, 0
    %v1990 = vperm.slane %v1079, 0
    %v1991 = vperm.slane %v1080, 0
    %v1992 = vperm.slane %v850, 0
    %v1993 = vperm.slane %v1087, 0
    %v1994 = vperm.slane %v1088, 0
    %v1995 = vperm.slane %v1089, 0
    %v1996 = vperm.slane %v851, 0
    %v1997 = vperm.slane %v1090, 0
    %v1998 = vperm.slane %v1091, 0
    %v1999 = vperm.slane %v1092, 0
    %v2000 = vperm.slane %v856, 0
    %v2001 = vperm.slane %v1099, 0
    %v2002 = vperm.slane %v1100, 0
    %v2003 = vperm.slane %v1101, 0
    %v2004 = vperm.slane %v857, 0
    %v2005 = vperm.slane %v1102, 0
    %v2006 = vperm.slane %v1103, 0
    %v2007 = vperm.slane %v1104, 0
    %v2008 = vperm.slane %v862, 0
    %v2009 = vperm.slane %v1111, 0
    %v2010 = vperm.slane %v1112, 0
    %v2011 = vperm.slane %v1113, 0
    %v2012 = vperm.slane %v863, 0
    %v2013 = vperm.slane %v1114, 0
    %v2014 = vperm.slane %v1115, 0
    %v2015 = vperm.slane %v1116, 0
    %v2016 = vperm.slane %v871, 0
    %v2017 = vperm.slane %v1129, 0
    %v2018 = vperm.slane %v1130, 0
    %v2019 = vperm.slane %v1131, 0
    %v2020 = vperm.slane %v872, 0
    %v2021 = vperm.slane %v1132, 0
    %v2022 = vperm.slane %v1133, 0
    %v2023 = vperm.slane %v1134, 0
    %v2024 = vperm.slane %v877, 0
    %v2025 = vperm.slane %v1141, 0
    %v2026 = vperm.slane %v1142, 0
    %v2027 = vperm.slane %v1143, 0
    %v2028 = vperm.slane %v878, 0
    %v2029 = vperm.slane %v1144, 0
    %v2030 = vperm.slane %v1145, 0
    %v2031 = vperm.slane %v1146, 0
    %v2032 = vperm.slane %v883, 0
    %v2033 = vperm.slane %v1153, 0
    %v2034 = vperm.slane %v1154, 0
    %v2035 = vperm.slane %v1155, 0
    %v2036 = vperm.slane %v884, 0
    %v2037 = vperm.slane %v1156, 0
    %v2038 = vperm.slane %v1157, 0
    %v2039 = vperm.slane %v1158, 0
    %v2040 = vperm.slane %v889, 0
    %v2041 = vperm.slane %v1165, 0
    %v2042 = vperm.slane %v1166, 0
    %v2043 = vperm.slane %v1167, 0
    %v2044 = vperm.slane %v890, 0
    %v2045 = vperm.slane %v1168, 0
    %v2046 = vperm.slane %v1169, 0
    %v2047 = vperm.slane %v1170, 0
    %v2048 = vperm.slane %v895, 0
    %v2049 = vperm.slane %v1177, 0
    %v2050 = vperm.slane %v1178, 0
    %v2051 = vperm.slane %v1179, 0
    %v2052 = vperm.slane %v896, 0
    %v2053 = vperm.slane %v1180, 0
    %v2054 = vperm.slane %v1181, 0
    %v2055 = vperm.slane %v1182, 0
    %v2056 = vperm.slane %v901, 0
    %v2057 = vperm.slane %v1189, 0
    %v2058 = vperm.slane %v1190, 0
    %v2059 = vperm.slane %v1191, 0
    %v2060 = vperm.slane %v902, 0
    %v2061 = vperm.slane %v1192, 0
    %v2062 = vperm.slane %v1193, 0
    %v2063 = vperm.slane %v1194, 0
    %v2064 = vperm.slane %v907, 0
    %v2065 = vperm.slane %v1201, 0
    %v2066 = vperm.slane %v1202, 0
    %v2067 = vperm.slane %v1203, 0
    %v2068 = vperm.slane %v908, 0
    %v2069 = vperm.slane %v1204, 0
    %v2070 = vperm.slane %v1205, 0
    %v2071 = vperm.slane %v1206, 0
    %v2072 = vperm.slane %v913, 0
    %v2073 = vperm.slane %v1213, 0
    %v2074 = vperm.slane %v1214, 0
    %v2075 = vperm.slane %v1215, 0
    %v2076 = vperm.slane %v914, 0
    %v2077 = vperm.slane %v1216, 0
    %v2078 = vperm.slane %v1217, 0
    %v2079 = vperm.slane %v1218, 0
    %v2080 = vsel %vm1353, %v1953, %v1952
    %v2081 = vsel %vm1355, %v1954, %v2080
    %v2082 = vsel %vm1357, %v1955, %v2081
    %v2083 = vsel %vm1359, %v1956, %v2082
    %v2084 = vsel %vm1361, %v1957, %v2083
    %v2085 = vsel %vm1363, %v1958, %v2084
    %v2086 = vsel %vm1365, %v1959, %v2085
    %v2087 = vsel %vm1353, %v1961, %v1960
    %v2088 = vsel %vm1355, %v1962, %v2087
    %v2089 = vsel %vm1357, %v1963, %v2088
    %v2090 = vsel %vm1359, %v1964, %v2089
    %v2091 = vsel %vm1361, %v1965, %v2090
    %v2092 = vsel %vm1363, %v1966, %v2091
    %v2093 = vsel %vm1365, %v1967, %v2092
    %v2094 = vsel %vm1353, %v1969, %v1968
    %v2095 = vsel %vm1355, %v1970, %v2094
    %v2096 = vsel %vm1357, %v1971, %v2095
    %v2097 = vsel %vm1359, %v1972, %v2096
    %v2098 = vsel %vm1361, %v1973, %v2097
    %v2099 = vsel %vm1363, %v1974, %v2098
    %v2100 = vsel %vm1365, %v1975, %v2099
    %v2101 = vsel %vm1353, %v1977, %v1976
    %v2102 = vsel %vm1355, %v1978, %v2101
    %v2103 = vsel %vm1357, %v1979, %v2102
    %v2104 = vsel %vm1359, %v1980, %v2103
    %v2105 = vsel %vm1361, %v1981, %v2104
    %v2106 = vsel %vm1363, %v1982, %v2105
    %v2107 = vsel %vm1365, %v1983, %v2106
    %v2108 = vsel %vm1353, %v1985, %v1984
    %v2109 = vsel %vm1355, %v1986, %v2108
    %v2110 = vsel %vm1357, %v1987, %v2109
    %v2111 = vsel %vm1359, %v1988, %v2110
    %v2112 = vsel %vm1361, %v1989, %v2111
    %v2113 = vsel %vm1363, %v1990, %v2112
    %v2114 = vsel %vm1365, %v1991, %v2113
    %v2115 = vsel %vm1353, %v1993, %v1992
    %v2116 = vsel %vm1355, %v1994, %v2115
    %v2117 = vsel %vm1357, %v1995, %v2116
    %v2118 = vsel %vm1359, %v1996, %v2117
    %v2119 = vsel %vm1361, %v1997, %v2118
    %v2120 = vsel %vm1363, %v1998, %v2119
    %v2121 = vsel %vm1365, %v1999, %v2120
    %v2122 = vsel %vm1353, %v2001, %v2000
    %v2123 = vsel %vm1355, %v2002, %v2122
    %v2124 = vsel %vm1357, %v2003, %v2123
    %v2125 = vsel %vm1359, %v2004, %v2124
    %v2126 = vsel %vm1361, %v2005, %v2125
    %v2127 = vsel %vm1363, %v2006, %v2126
    %v2128 = vsel %vm1365, %v2007, %v2127
    %v2129 = vsel %vm1353, %v2009, %v2008
    %v2130 = vsel %vm1355, %v2010, %v2129
    %v2131 = vsel %vm1357, %v2011, %v2130
    %v2132 = vsel %vm1359, %v2012, %v2131
    %v2133 = vsel %vm1361, %v2013, %v2132
    %v2134 = vsel %vm1363, %v2014, %v2133
    %v2135 = vsel %vm1365, %v2015, %v2134
    %v2136 = vsel %vm1353, %v2017, %v2016
    %v2137 = vsel %vm1355, %v2018, %v2136
    %v2138 = vsel %vm1357, %v2019, %v2137
    %v2139 = vsel %vm1359, %v2020, %v2138
    %v2140 = vsel %vm1361, %v2021, %v2139
    %v2141 = vsel %vm1363, %v2022, %v2140
    %v2142 = vsel %vm1365, %v2023, %v2141
    %v2143 = vsel %vm1353, %v2025, %v2024
    %v2144 = vsel %vm1355, %v2026, %v2143
    %v2145 = vsel %vm1357, %v2027, %v2144
    %v2146 = vsel %vm1359, %v2028, %v2145
    %v2147 = vsel %vm1361, %v2029, %v2146
    %v2148 = vsel %vm1363, %v2030, %v2147
    %v2149 = vsel %vm1365, %v2031, %v2148
    %v2150 = vsel %vm1353, %v2033, %v2032
    %v2151 = vsel %vm1355, %v2034, %v2150
    %v2152 = vsel %vm1357, %v2035, %v2151
    %v2153 = vsel %vm1359, %v2036, %v2152
    %v2154 = vsel %vm1361, %v2037, %v2153
    %v2155 = vsel %vm1363, %v2038, %v2154
    %v2156 = vsel %vm1365, %v2039, %v2155
    %v2157 = vsel %vm1353, %v2041, %v2040
    %v2158 = vsel %vm1355, %v2042, %v2157
    %v2159 = vsel %vm1357, %v2043, %v2158
    %v2160 = vsel %vm1359, %v2044, %v2159
    %v2161 = vsel %vm1361, %v2045, %v2160
    %v2162 = vsel %vm1363, %v2046, %v2161
    %v2163 = vsel %vm1365, %v2047, %v2162
    %v2164 = vsel %vm1353, %v2049, %v2048
    %v2165 = vsel %vm1355, %v2050, %v2164
    %v2166 = vsel %vm1357, %v2051, %v2165
    %v2167 = vsel %vm1359, %v2052, %v2166
    %v2168 = vsel %vm1361, %v2053, %v2167
    %v2169 = vsel %vm1363, %v2054, %v2168
    %v2170 = vsel %vm1365, %v2055, %v2169
    %v2171 = vsel %vm1353, %v2057, %v2056
    %v2172 = vsel %vm1355, %v2058, %v2171
    %v2173 = vsel %vm1357, %v2059, %v2172
    %v2174 = vsel %vm1359, %v2060, %v2173
    %v2175 = vsel %vm1361, %v2061, %v2174
    %v2176 = vsel %vm1363, %v2062, %v2175
    %v2177 = vsel %vm1365, %v2063, %v2176
    %v2178 = vsel %vm1353, %v2065, %v2064
    %v2179 = vsel %vm1355, %v2066, %v2178
    %v2180 = vsel %vm1357, %v2067, %v2179
    %v2181 = vsel %vm1359, %v2068, %v2180
    %v2182 = vsel %vm1361, %v2069, %v2181
    %v2183 = vsel %vm1363, %v2070, %v2182
    %v2184 = vsel %vm1365, %v2071, %v2183
    %v2185 = vsel %vm1353, %v2073, %v2072
    %v2186 = vsel %vm1355, %v2074, %v2185
    %v2187 = vsel %vm1357, %v2075, %v2186
    %v2188 = vsel %vm1359, %v2076, %v2187
    %v2189 = vsel %vm1361, %v2077, %v2188
    %v2190 = vsel %vm1363, %v2078, %v2189
    %v2191 = vsel %vm1365, %v2079, %v2190
    %2192 = vrot.lane.b32.xlu0 %v2086, 12
    %v2193 = vpop.permute.xlu0 %2192
    %2194 = vrot.lane.b32.xlu0 %v2093, 12
    %v2195 = vpop.permute.xlu0 %2194
    %2196 = vrot.lane.b32.xlu0 %v2100, 12
    %v2197 = vpop.permute.xlu0 %2196
    %2198 = vrot.lane.b32.xlu0 %v2107, 12
    %v2199 = vpop.permute.xlu0 %2198
    %2200 = vrot.lane.b32.xlu0 %v2114, 12
    %v2201 = vpop.permute.xlu0 %2200
    %2202 = vrot.lane.b32.xlu0 %v2121, 12
    %v2203 = vpop.permute.xlu0 %2202
    %2204 = vrot.lane.b32.xlu0 %v2128, 12
    %v2205 = vpop.permute.xlu0 %2204
    %2206 = vrot.lane.b32.xlu0 %v2135, 12
    %v2207 = vpop.permute.xlu0 %2206
    %2208 = vrot.lane.b32.xlu0 %v2142, 12
    %v2209 = vpop.permute.xlu0 %2208
    %2210 = vrot.lane.b32.xlu0 %v2149, 12
    %v2211 = vpop.permute.xlu0 %2210
    %2212 = vrot.lane.b32.xlu0 %v2156, 12
    %v2213 = vpop.permute.xlu0 %2212
    %2214 = vrot.lane.b32.xlu0 %v2163, 12
    %v2215 = vpop.permute.xlu0 %2214
    %2216 = vrot.lane.b32.xlu0 %v2170, 12
    %v2217 = vpop.permute.xlu0 %2216
    %2218 = vrot.lane.b32.xlu0 %v2177, 12
    %v2219 = vpop.permute.xlu0 %2218
    %2220 = vrot.lane.b32.xlu0 %v2184, 12
    %v2221 = vpop.permute.xlu0 %2220
    %2222 = vrot.lane.b32.xlu0 %v2191, 12
    %v2223 = vpop.permute.xlu0 %2222
    %v2240 = vperm.slane %v820, 1
    %v2241 = vperm.slane %v1027, 1
    %v2242 = vperm.slane %v1028, 1
    %v2243 = vperm.slane %v1029, 1
    %v2244 = vperm.slane %v821, 1
    %v2245 = vperm.slane %v1030, 1
    %v2246 = vperm.slane %v1031, 1
    %v2247 = vperm.slane %v1032, 1
    %v2248 = vperm.slane %v826, 1
    %v2249 = vperm.slane %v1039, 1
    %v2250 = vperm.slane %v1040, 1
    %v2251 = vperm.slane %v1041, 1
    %v2252 = vperm.slane %v827, 1
    %v2253 = vperm.slane %v1042, 1
    %v2254 = vperm.slane %v1043, 1
    %v2255 = vperm.slane %v1044, 1
    %v2256 = vperm.slane %v832, 1
    %v2257 = vperm.slane %v1051, 1
    %v2258 = vperm.slane %v1052, 1
    %v2259 = vperm.slane %v1053, 1
    %v2260 = vperm.slane %v833, 1
    %v2261 = vperm.slane %v1054, 1
    %v2262 = vperm.slane %v1055, 1
    %v2263 = vperm.slane %v1056, 1
    %v2264 = vperm.slane %v838, 1
    %v2265 = vperm.slane %v1063, 1
    %v2266 = vperm.slane %v1064, 1
    %v2267 = vperm.slane %v1065, 1
    %v2268 = vperm.slane %v839, 1
    %v2269 = vperm.slane %v1066, 1
    %v2270 = vperm.slane %v1067, 1
    %v2271 = vperm.slane %v1068, 1
    %v2272 = vperm.slane %v844, 1
    %v2273 = vperm.slane %v1075, 1
    %v2274 = vperm.slane %v1076, 1
    %v2275 = vperm.slane %v1077, 1
    %v2276 = vperm.slane %v845, 1
    %v2277 = vperm.slane %v1078, 1
    %v2278 = vperm.slane %v1079, 1
    %v2279 = vperm.slane %v1080, 1
    %v2280 = vperm.slane %v850, 1
    %v2281 = vperm.slane %v1087, 1
    %v2282 = vperm.slane %v1088, 1
    %v2283 = vperm.slane %v1089, 1
    %v2284 = vperm.slane %v851, 1
    %v2285 = vperm.slane %v1090, 1
    %v2286 = vperm.slane %v1091, 1
    %v2287 = vperm.slane %v1092, 1
    %v2288 = vperm.slane %v856, 1
    %v2289 = vperm.slane %v1099, 1
    %v2290 = vperm.slane %v1100, 1
    %v2291 = vperm.slane %v1101, 1
    %v2292 = vperm.slane %v857, 1
    %v2293 = vperm.slane %v1102, 1
    %v2294 = vperm.slane %v1103, 1
    %v2295 = vperm.slane %v1104, 1
    %v2296 = vperm.slane %v862, 1
    %v2297 = vperm.slane %v1111, 1
    %v2298 = vperm.slane %v1112, 1
    %v2299 = vperm.slane %v1113, 1
    %v2300 = vperm.slane %v863, 1
    %v2301 = vperm.slane %v1114, 1
    %v2302 = vperm.slane %v1115, 1
    %v2303 = vperm.slane %v1116, 1
    %v2304 = vperm.slane %v871, 1
    %v2305 = vperm.slane %v1129, 1
    %v2306 = vperm.slane %v1130, 1
    %v2307 = vperm.slane %v1131, 1
    %v2308 = vperm.slane %v872, 1
    %v2309 = vperm.slane %v1132, 1
    %v2310 = vperm.slane %v1133, 1
    %v2311 = vperm.slane %v1134, 1
    %v2312 = vperm.slane %v877, 1
    %v2313 = vperm.slane %v1141, 1
    %v2314 = vperm.slane %v1142, 1
    %v2315 = vperm.slane %v1143, 1
    %v2316 = vperm.slane %v878, 1
    %v2317 = vperm.slane %v1144, 1
    %v2318 = vperm.slane %v1145, 1
    %v2319 = vperm.slane %v1146, 1
    %v2320 = vperm.slane %v883, 1
    %v2321 = vperm.slane %v1153, 1
    %v2322 = vperm.slane %v1154, 1
    %v2323 = vperm.slane %v1155, 1
    %v2324 = vperm.slane %v884, 1
    %v2325 = vperm.slane %v1156, 1
    %v2326 = vperm.slane %v1157, 1
    %v2327 = vperm.slane %v1158, 1
    %v2328 = vperm.slane %v889, 1
    %v2329 = vperm.slane %v1165, 1
    %v2330 = vperm.slane %v1166, 1
    %v2331 = vperm.slane %v1167, 1
    %v2332 = vperm.slane %v890, 1
    %v2333 = vperm.slane %v1168, 1
    %v2334 = vperm.slane %v1169, 1
    %v2335 = vperm.slane %v1170, 1
    %v2336 = vperm.slane %v895, 1
    %v2337 = vperm.slane %v1177, 1
    %v2338 = vperm.slane %v1178, 1
    %v2339 = vperm.slane %v1179, 1
    %v2340 = vperm.slane %v896, 1
    %v2341 = vperm.slane %v1180, 1
    %v2342 = vperm.slane %v1181, 1
    %v2343 = vperm.slane %v1182, 1
    %v2344 = vperm.slane %v901, 1
    %v2345 = vperm.slane %v1189, 1
    %v2346 = vperm.slane %v1190, 1
    %v2347 = vperm.slane %v1191, 1
    %v2348 = vperm.slane %v902, 1
    %v2349 = vperm.slane %v1192, 1
    %v2350 = vperm.slane %v1193, 1
    %v2351 = vperm.slane %v1194, 1
    %v2352 = vperm.slane %v907, 1
    %v2353 = vperm.slane %v1201, 1
    %v2354 = vperm.slane %v1202, 1
    %v2355 = vperm.slane %v1203, 1
    %v2356 = vperm.slane %v908, 1
    %v2357 = vperm.slane %v1204, 1
    %v2358 = vperm.slane %v1205, 1
    %v2359 = vperm.slane %v1206, 1
    %v2360 = vperm.slane %v913, 1
    %v2361 = vperm.slane %v1213, 1
    %v2362 = vperm.slane %v1214, 1
    %v2363 = vperm.slane %v1215, 1
    %v2364 = vperm.slane %v914, 1
    %v2365 = vperm.slane %v1216, 1
    %v2366 = vperm.slane %v1217, 1
    %v2367 = vperm.slane %v1218, 1
    %v2368 = vsel %vm1353, %v2241, %v2240
    %v2369 = vsel %vm1355, %v2242, %v2368
    %v2370 = vsel %vm1357, %v2243, %v2369
    %v2371 = vsel %vm1359, %v2244, %v2370
    %v2372 = vsel %vm1361, %v2245, %v2371
    %v2373 = vsel %vm1363, %v2246, %v2372
    %v2374 = vsel %vm1365, %v2247, %v2373
    %v2375 = vsel %vm1353, %v2249, %v2248
    %v2376 = vsel %vm1355, %v2250, %v2375
    %v2377 = vsel %vm1357, %v2251, %v2376
    %v2378 = vsel %vm1359, %v2252, %v2377
    %v2379 = vsel %vm1361, %v2253, %v2378
    %v2380 = vsel %vm1363, %v2254, %v2379
    %v2381 = vsel %vm1365, %v2255, %v2380
    %v2382 = vsel %vm1353, %v2257, %v2256
    %v2383 = vsel %vm1355, %v2258, %v2382
    %v2384 = vsel %vm1357, %v2259, %v2383
    %v2385 = vsel %vm1359, %v2260, %v2384
    %v2386 = vsel %vm1361, %v2261, %v2385
    %v2387 = vsel %vm1363, %v2262, %v2386
    %v2388 = vsel %vm1365, %v2263, %v2387
    %v2389 = vsel %vm1353, %v2265, %v2264
    %v2390 = vsel %vm1355, %v2266, %v2389
    %v2391 = vsel %vm1357, %v2267, %v2390
    %v2392 = vsel %vm1359, %v2268, %v2391
    %v2393 = vsel %vm1361, %v2269, %v2392
    %v2394 = vsel %vm1363, %v2270, %v2393
    %v2395 = vsel %vm1365, %v2271, %v2394
    %v2396 = vsel %vm1353, %v2273, %v2272
    %v2397 = vsel %vm1355, %v2274, %v2396
    %v2398 = vsel %vm1357, %v2275, %v2397
    %v2399 = vsel %vm1359, %v2276, %v2398
    %v2400 = vsel %vm1361, %v2277, %v2399
    %v2401 = vsel %vm1363, %v2278, %v2400
    %v2402 = vsel %vm1365, %v2279, %v2401
    %v2403 = vsel %vm1353, %v2281, %v2280
    %v2404 = vsel %vm1355, %v2282, %v2403
    %v2405 = vsel %vm1357, %v2283, %v2404
    %v2406 = vsel %vm1359, %v2284, %v2405
    %v2407 = vsel %vm1361, %v2285, %v2406
    %v2408 = vsel %vm1363, %v2286, %v2407
    %v2409 = vsel %vm1365, %v2287, %v2408
    %v2410 = vsel %vm1353, %v2289, %v2288
    %v2411 = vsel %vm1355, %v2290, %v2410
    %v2412 = vsel %vm1357, %v2291, %v2411
    %v2413 = vsel %vm1359, %v2292, %v2412
    %v2414 = vsel %vm1361, %v2293, %v2413
    %v2415 = vsel %vm1363, %v2294, %v2414
    %v2416 = vsel %vm1365, %v2295, %v2415
    %v2417 = vsel %vm1353, %v2297, %v2296
    %v2418 = vsel %vm1355, %v2298, %v2417
    %v2419 = vsel %vm1357, %v2299, %v2418
    %v2420 = vsel %vm1359, %v2300, %v2419
    %v2421 = vsel %vm1361, %v2301, %v2420
    %v2422 = vsel %vm1363, %v2302, %v2421
    %v2423 = vsel %vm1365, %v2303, %v2422
    %v2424 = vsel %vm1353, %v2305, %v2304
    %v2425 = vsel %vm1355, %v2306, %v2424
    %v2426 = vsel %vm1357, %v2307, %v2425
    %v2427 = vsel %vm1359, %v2308, %v2426
    %v2428 = vsel %vm1361, %v2309, %v2427
    %v2429 = vsel %vm1363, %v2310, %v2428
    %v2430 = vsel %vm1365, %v2311, %v2429
    %v2431 = vsel %vm1353, %v2313, %v2312
    %v2432 = vsel %vm1355, %v2314, %v2431
    %v2433 = vsel %vm1357, %v2315, %v2432
    %v2434 = vsel %vm1359, %v2316, %v2433
    %v2435 = vsel %vm1361, %v2317, %v2434
    %v2436 = vsel %vm1363, %v2318, %v2435
    %v2437 = vsel %vm1365, %v2319, %v2436
    %v2438 = vsel %vm1353, %v2321, %v2320
    %v2439 = vsel %vm1355, %v2322, %v2438
    %v2440 = vsel %vm1357, %v2323, %v2439
    %v2441 = vsel %vm1359, %v2324, %v2440
    %v2442 = vsel %vm1361, %v2325, %v2441
    %v2443 = vsel %vm1363, %v2326, %v2442
    %v2444 = vsel %vm1365, %v2327, %v2443
    %v2445 = vsel %vm1353, %v2329, %v2328
    %v2446 = vsel %vm1355, %v2330, %v2445
    %v2447 = vsel %vm1357, %v2331, %v2446
    %v2448 = vsel %vm1359, %v2332, %v2447
    %v2449 = vsel %vm1361, %v2333, %v2448
    %v2450 = vsel %vm1363, %v2334, %v2449
    %v2451 = vsel %vm1365, %v2335, %v2450
    %v2452 = vsel %vm1353, %v2337, %v2336
    %v2453 = vsel %vm1355, %v2338, %v2452
    %v2454 = vsel %vm1357, %v2339, %v2453
    %v2455 = vsel %vm1359, %v2340, %v2454
    %v2456 = vsel %vm1361, %v2341, %v2455
    %v2457 = vsel %vm1363, %v2342, %v2456
    %v2458 = vsel %vm1365, %v2343, %v2457
    %v2459 = vsel %vm1353, %v2345, %v2344
    %v2460 = vsel %vm1355, %v2346, %v2459
    %v2461 = vsel %vm1357, %v2347, %v2460
    %v2462 = vsel %vm1359, %v2348, %v2461
    %v2463 = vsel %vm1361, %v2349, %v2462
    %v2464 = vsel %vm1363, %v2350, %v2463
    %v2465 = vsel %vm1365, %v2351, %v2464
    %v2466 = vsel %vm1353, %v2353, %v2352
    %v2467 = vsel %vm1355, %v2354, %v2466
    %v2468 = vsel %vm1357, %v2355, %v2467
    %v2469 = vsel %vm1359, %v2356, %v2468
    %v2470 = vsel %vm1361, %v2357, %v2469
    %v2471 = vsel %vm1363, %v2358, %v2470
    %v2472 = vsel %vm1365, %v2359, %v2471
    %v2473 = vsel %vm1353, %v2361, %v2360
    %v2474 = vsel %vm1355, %v2362, %v2473
    %v2475 = vsel %vm1357, %v2363, %v2474
    %v2476 = vsel %vm1359, %v2364, %v2475
    %v2477 = vsel %vm1361, %v2365, %v2476
    %v2478 = vsel %vm1363, %v2366, %v2477
    %v2479 = vsel %vm1365, %v2367, %v2478
    %2480 = vrot.lane.b32.xlu0 %v2374, 16
    %v2481 = vpop.permute.xlu0 %2480
    %2482 = vrot.lane.b32.xlu0 %v2381, 16
    %v2483 = vpop.permute.xlu0 %2482
    %2484 = vrot.lane.b32.xlu0 %v2388, 16
    %v2485 = vpop.permute.xlu0 %2484
    %2486 = vrot.lane.b32.xlu0 %v2395, 16
    %v2487 = vpop.permute.xlu0 %2486
    %2488 = vrot.lane.b32.xlu0 %v2402, 16
    %v2489 = vpop.permute.xlu0 %2488
    %2490 = vrot.lane.b32.xlu0 %v2409, 16
    %v2491 = vpop.permute.xlu0 %2490
    %2492 = vrot.lane.b32.xlu0 %v2416, 16
    %v2493 = vpop.permute.xlu0 %2492
    %2494 = vrot.lane.b32.xlu0 %v2423, 16
    %v2495 = vpop.permute.xlu0 %2494
    %2496 = vrot.lane.b32.xlu0 %v2430, 16
    %v2497 = vpop.permute.xlu0 %2496
    %2498 = vrot.lane.b32.xlu0 %v2437, 16
    %v2499 = vpop.permute.xlu0 %2498
    %2500 = vrot.lane.b32.xlu0 %v2444, 16
    %v2501 = vpop.permute.xlu0 %2500
    %2502 = vrot.lane.b32.xlu0 %v2451, 16
    %v2503 = vpop.permute.xlu0 %2502
    %2504 = vrot.lane.b32.xlu0 %v2458, 16
    %v2505 = vpop.permute.xlu0 %2504
    %2506 = vrot.lane.b32.xlu0 %v2465, 16
    %v2507 = vpop.permute.xlu0 %2506
    %2508 = vrot.lane.b32.xlu0 %v2472, 16
    %v2509 = vpop.permute.xlu0 %2508
    %2510 = vrot.lane.b32.xlu0 %v2479, 16
    %v2511 = vpop.permute.xlu0 %2510
    %v2528 = vperm.slane %v822, 0
    %v2529 = vperm.slane %v828, 0
    %v2530 = vperm.slane %v834, 0
    %v2531 = vperm.slane %v840, 0
    %v2532 = vperm.slane %v846, 0
    %v2533 = vperm.slane %v852, 0
    %v2534 = vperm.slane %v858, 0
    %v2535 = vperm.slane %v864, 0
    %v2536 = vperm.slane %v873, 0
    %v2537 = vperm.slane %v879, 0
    %v2538 = vperm.slane %v885, 0
    %v2539 = vperm.slane %v891, 0
    %v2540 = vperm.slane %v897, 0
    %v2541 = vperm.slane %v903, 0
    %v2542 = vperm.slane %v909, 0
    %v2543 = vperm.slane %v915, 0
    %v2544 = vsel %vm1353, %v1954, %v1953
    %v2545 = vsel %vm1355, %v1955, %v2544
    %v2546 = vsel %vm1357, %v1956, %v2545
    %v2547 = vsel %vm1359, %v1957, %v2546
    %v2548 = vsel %vm1361, %v1958, %v2547
    %v2549 = vsel %vm1363, %v1959, %v2548
    %v2550 = vsel %vm1365, %v2528, %v2549
    %v2551 = vsel %vm1353, %v1962, %v1961
    %v2552 = vsel %vm1355, %v1963, %v2551
    %v2553 = vsel %vm1357, %v1964, %v2552
    %v2554 = vsel %vm1359, %v1965, %v2553
    %v2555 = vsel %vm1361, %v1966, %v2554
    %v2556 = vsel %vm1363, %v1967, %v2555
    %v2557 = vsel %vm1365, %v2529, %v2556
    %v2558 = vsel %vm1353, %v1970, %v1969
    %v2559 = vsel %vm1355, %v1971, %v2558
    %v2560 = vsel %vm1357, %v1972, %v2559
    %v2561 = vsel %vm1359, %v1973, %v2560
    %v2562 = vsel %vm1361, %v1974, %v2561
    %v2563 = vsel %vm1363, %v1975, %v2562
    %v2564 = vsel %vm1365, %v2530, %v2563
    %v2565 = vsel %vm1353, %v1978, %v1977
    %v2566 = vsel %vm1355, %v1979, %v2565
    %v2567 = vsel %vm1357, %v1980, %v2566
    %v2568 = vsel %vm1359, %v1981, %v2567
    %v2569 = vsel %vm1361, %v1982, %v2568
    %v2570 = vsel %vm1363, %v1983, %v2569
    %v2571 = vsel %vm1365, %v2531, %v2570
    %v2572 = vsel %vm1353, %v1986, %v1985
    %v2573 = vsel %vm1355, %v1987, %v2572
    %v2574 = vsel %vm1357, %v1988, %v2573
    %v2575 = vsel %vm1359, %v1989, %v2574
    %v2576 = vsel %vm1361, %v1990, %v2575
    %v2577 = vsel %vm1363, %v1991, %v2576
    %v2578 = vsel %vm1365, %v2532, %v2577
    %v2579 = vsel %vm1353, %v1994, %v1993
    %v2580 = vsel %vm1355, %v1995, %v2579
    %v2581 = vsel %vm1357, %v1996, %v2580
    %v2582 = vsel %vm1359, %v1997, %v2581
    %v2583 = vsel %vm1361, %v1998, %v2582
    %v2584 = vsel %vm1363, %v1999, %v2583
    %v2585 = vsel %vm1365, %v2533, %v2584
    %v2586 = vsel %vm1353, %v2002, %v2001
    %v2587 = vsel %vm1355, %v2003, %v2586
    %v2588 = vsel %vm1357, %v2004, %v2587
    %v2589 = vsel %vm1359, %v2005, %v2588
    %v2590 = vsel %vm1361, %v2006, %v2589
    %v2591 = vsel %vm1363, %v2007, %v2590
    %v2592 = vsel %vm1365, %v2534, %v2591
    %v2593 = vsel %vm1353, %v2010, %v2009
    %v2594 = vsel %vm1355, %v2011, %v2593
    %v2595 = vsel %vm1357, %v2012, %v2594
    %v2596 = vsel %vm1359, %v2013, %v2595
    %v2597 = vsel %vm1361, %v2014, %v2596
    %v2598 = vsel %vm1363, %v2015, %v2597
    %v2599 = vsel %vm1365, %v2535, %v2598
    %v2600 = vsel %vm1353, %v2018, %v2017
    %v2601 = vsel %vm1355, %v2019, %v2600
    %v2602 = vsel %vm1357, %v2020, %v2601
    %v2603 = vsel %vm1359, %v2021, %v2602
    %v2604 = vsel %vm1361, %v2022, %v2603
    %v2605 = vsel %vm1363, %v2023, %v2604
    %v2606 = vsel %vm1365, %v2536, %v2605
    %v2607 = vsel %vm1353, %v2026, %v2025
    %v2608 = vsel %vm1355, %v2027, %v2607
    %v2609 = vsel %vm1357, %v2028, %v2608
    %v2610 = vsel %vm1359, %v2029, %v2609
    %v2611 = vsel %vm1361, %v2030, %v2610
    %v2612 = vsel %vm1363, %v2031, %v2611
    %v2613 = vsel %vm1365, %v2537, %v2612
    %v2614 = vsel %vm1353, %v2034, %v2033
    %v2615 = vsel %vm1355, %v2035, %v2614
    %v2616 = vsel %vm1357, %v2036, %v2615
    %v2617 = vsel %vm1359, %v2037, %v2616
    %v2618 = vsel %vm1361, %v2038, %v2617
    %v2619 = vsel %vm1363, %v2039, %v2618
    %v2620 = vsel %vm1365, %v2538, %v2619
    %v2621 = vsel %vm1353, %v2042, %v2041
    %v2622 = vsel %vm1355, %v2043, %v2621
    %v2623 = vsel %vm1357, %v2044, %v2622
    %v2624 = vsel %vm1359, %v2045, %v2623
    %v2625 = vsel %vm1361, %v2046, %v2624
    %v2626 = vsel %vm1363, %v2047, %v2625
    %v2627 = vsel %vm1365, %v2539, %v2626
    %v2628 = vsel %vm1353, %v2050, %v2049
    %v2629 = vsel %vm1355, %v2051, %v2628
    %v2630 = vsel %vm1357, %v2052, %v2629
    %v2631 = vsel %vm1359, %v2053, %v2630
    %v2632 = vsel %vm1361, %v2054, %v2631
    %v2633 = vsel %vm1363, %v2055, %v2632
    %v2634 = vsel %vm1365, %v2540, %v2633
    %v2635 = vsel %vm1353, %v2058, %v2057
    %v2636 = vsel %vm1355, %v2059, %v2635
    %v2637 = vsel %vm1357, %v2060, %v2636
    %v2638 = vsel %vm1359, %v2061, %v2637
    %v2639 = vsel %vm1361, %v2062, %v2638
    %v2640 = vsel %vm1363, %v2063, %v2639
    %v2641 = vsel %vm1365, %v2541, %v2640
    %v2642 = vsel %vm1353, %v2066, %v2065
    %v2643 = vsel %vm1355, %v2067, %v2642
    %v2644 = vsel %vm1357, %v2068, %v2643
    %v2645 = vsel %vm1359, %v2069, %v2644
    %v2646 = vsel %vm1361, %v2070, %v2645
    %v2647 = vsel %vm1363, %v2071, %v2646
    %v2648 = vsel %vm1365, %v2542, %v2647
    %v2649 = vsel %vm1353, %v2074, %v2073
    %v2650 = vsel %vm1355, %v2075, %v2649
    %v2651 = vsel %vm1357, %v2076, %v2650
    %v2652 = vsel %vm1359, %v2077, %v2651
    %v2653 = vsel %vm1361, %v2078, %v2652
    %v2654 = vsel %vm1363, %v2079, %v2653
    %v2655 = vsel %vm1365, %v2543, %v2654
    %2656 = vrot.lane.b32.xlu0 %v2550, 20
    %v2657 = vpop.permute.xlu0 %2656
    %2658 = vrot.lane.b32.xlu0 %v2557, 20
    %v2659 = vpop.permute.xlu0 %2658
    %2660 = vrot.lane.b32.xlu0 %v2564, 20
    %v2661 = vpop.permute.xlu0 %2660
    %2662 = vrot.lane.b32.xlu0 %v2571, 20
    %v2663 = vpop.permute.xlu0 %2662
    %2664 = vrot.lane.b32.xlu0 %v2578, 20
    %v2665 = vpop.permute.xlu0 %2664
    %2666 = vrot.lane.b32.xlu0 %v2585, 20
    %v2667 = vpop.permute.xlu0 %2666
    %2668 = vrot.lane.b32.xlu0 %v2592, 20
    %v2669 = vpop.permute.xlu0 %2668
    %2670 = vrot.lane.b32.xlu0 %v2599, 20
    %v2671 = vpop.permute.xlu0 %2670
    %2672 = vrot.lane.b32.xlu0 %v2606, 20
    %v2673 = vpop.permute.xlu0 %2672
    %2674 = vrot.lane.b32.xlu0 %v2613, 20
    %v2675 = vpop.permute.xlu0 %2674
    %2676 = vrot.lane.b32.xlu0 %v2620, 20
    %v2677 = vpop.permute.xlu0 %2676
    %2678 = vrot.lane.b32.xlu0 %v2627, 20
    %v2679 = vpop.permute.xlu0 %2678
    %2680 = vrot.lane.b32.xlu0 %v2634, 20
    %v2681 = vpop.permute.xlu0 %2680
    %2682 = vrot.lane.b32.xlu0 %v2641, 20
    %v2683 = vpop.permute.xlu0 %2682
    %2684 = vrot.lane.b32.xlu0 %v2648, 20
    %v2685 = vpop.permute.xlu0 %2684
    %2686 = vrot.lane.b32.xlu0 %v2655, 20
    %v2687 = vpop.permute.xlu0 %2686
    %v2704 = vperm.slane %v865, 0
    %v2705 = vperm.slane %v1117, 0
    %v2706 = vperm.slane %v1118, 0
    %v2707 = vperm.slane %v1119, 0
    %v2708 = vperm.slane %v866, 0
    %v2709 = vperm.slane %v1120, 0
    %v2710 = vperm.slane %v1121, 0
    %v2711 = vperm.slane %v1122, 0
    %v2712 = vperm.slane %v916, 0
    %v2713 = vperm.slane %v1219, 0
    %v2714 = vperm.slane %v1220, 0
    %v2715 = vperm.slane %v1221, 0
    %v2716 = vperm.slane %v917, 0
    %v2717 = vperm.slane %v1222, 0
    %v2718 = vperm.slane %v1223, 0
    %v2719 = vperm.slane %v1224, 0
    %v2720 = vsel %vm1353, %v2705, %v2704
    %v2721 = vsel %vm1355, %v2706, %v2720
    %v2722 = vsel %vm1357, %v2707, %v2721
    %v2723 = vsel %vm1359, %v2708, %v2722
    %v2724 = vsel %vm1361, %v2709, %v2723
    %v2725 = vsel %vm1363, %v2710, %v2724
    %v2726 = vsel %vm1365, %v2711, %v2725
    %v2727 = vsel %vm1353, %v2713, %v2712
    %v2728 = vsel %vm1355, %v2714, %v2727
    %v2729 = vsel %vm1357, %v2715, %v2728
    %v2730 = vsel %vm1359, %v2716, %v2729
    %v2731 = vsel %vm1361, %v2717, %v2730
    %v2732 = vsel %vm1363, %v2718, %v2731
    %v2733 = vsel %vm1365, %v2719, %v2732
    %2734 = vrot.lane.b32.xlu0 %v1373, 24
    %v2735 = vpop.permute.xlu0 %2734
    %2736 = vrot.lane.b32.xlu0 %v1380, 24
    %v2737 = vpop.permute.xlu0 %2736
    %2738 = vrot.lane.b32.xlu0 %v1387, 24
    %v2739 = vpop.permute.xlu0 %2738
    %2740 = vrot.lane.b32.xlu0 %v1394, 24
    %v2741 = vpop.permute.xlu0 %2740
    %2742 = vrot.lane.b32.xlu0 %v1401, 24
    %v2743 = vpop.permute.xlu0 %2742
    %2744 = vrot.lane.b32.xlu0 %v1408, 24
    %v2745 = vpop.permute.xlu0 %2744
    %2746 = vrot.lane.b32.xlu0 %v1415, 24
    %v2747 = vpop.permute.xlu0 %2746
    %2748 = vrot.lane.b32.xlu0 %v2726, 24
    %v2749 = vpop.permute.xlu0 %2748
    %2750 = vrot.lane.b32.xlu0 %v1429, 24
    %v2751 = vpop.permute.xlu0 %2750
    %2752 = vrot.lane.b32.xlu0 %v1436, 24
    %v2753 = vpop.permute.xlu0 %2752
    %2754 = vrot.lane.b32.xlu0 %v1443, 24
    %v2755 = vpop.permute.xlu0 %2754
    %2756 = vrot.lane.b32.xlu0 %v1450, 24
    %v2757 = vpop.permute.xlu0 %2756
    %2758 = vrot.lane.b32.xlu0 %v1457, 24
    %v2759 = vpop.permute.xlu0 %2758
    %2760 = vrot.lane.b32.xlu0 %v1464, 24
    %v2761 = vpop.permute.xlu0 %2760
    %2762 = vrot.lane.b32.xlu0 %v1471, 24
    %v2763 = vpop.permute.xlu0 %2762
    %2764 = vrot.lane.b32.xlu0 %v2733, 24
    %v2765 = vpop.permute.xlu0 %2764
    %v2782 = vperm.slane %v865, 1
    %v2783 = vperm.slane %v1117, 1
    %v2784 = vperm.slane %v1118, 1
    %v2785 = vperm.slane %v1119, 1
    %v2786 = vperm.slane %v866, 1
    %v2787 = vperm.slane %v1120, 1
    %v2788 = vperm.slane %v1121, 1
    %v2789 = vperm.slane %v1122, 1
    %v2790 = vperm.slane %v916, 1
    %v2791 = vperm.slane %v1219, 1
    %v2792 = vperm.slane %v1220, 1
    %v2793 = vperm.slane %v1221, 1
    %v2794 = vperm.slane %v917, 1
    %v2795 = vperm.slane %v1222, 1
    %v2796 = vperm.slane %v1223, 1
    %v2797 = vperm.slane %v1224, 1
    %v2798 = vsel %vm1353, %v2783, %v2782
    %v2799 = vsel %vm1355, %v2784, %v2798
    %v2800 = vsel %vm1357, %v2785, %v2799
    %v2801 = vsel %vm1359, %v2786, %v2800
    %v2802 = vsel %vm1361, %v2787, %v2801
    %v2803 = vsel %vm1363, %v2788, %v2802
    %v2804 = vsel %vm1365, %v2789, %v2803
    %v2805 = vsel %vm1353, %v2791, %v2790
    %v2806 = vsel %vm1355, %v2792, %v2805
    %v2807 = vsel %vm1357, %v2793, %v2806
    %v2808 = vsel %vm1359, %v2794, %v2807
    %v2809 = vsel %vm1361, %v2795, %v2808
    %v2810 = vsel %vm1363, %v2796, %v2809
    %v2811 = vsel %vm1365, %v2797, %v2810
    %2812 = vrot.lane.b32.xlu0 %v1629, 28
    %v2813 = vpop.permute.xlu0 %2812
    %2814 = vrot.lane.b32.xlu0 %v1636, 28
    %v2815 = vpop.permute.xlu0 %2814
    %2816 = vrot.lane.b32.xlu0 %v1643, 28
    %v2817 = vpop.permute.xlu0 %2816
    %2818 = vrot.lane.b32.xlu0 %v1650, 28
    %v2819 = vpop.permute.xlu0 %2818
    %2820 = vrot.lane.b32.xlu0 %v1657, 28
    %v2821 = vpop.permute.xlu0 %2820
    %2822 = vrot.lane.b32.xlu0 %v1664, 28
    %v2823 = vpop.permute.xlu0 %2822
    %2824 = vrot.lane.b32.xlu0 %v1671, 28
    %v2825 = vpop.permute.xlu0 %2824
    %2826 = vrot.lane.b32.xlu0 %v2804, 28
    %v2827 = vpop.permute.xlu0 %2826
    %2828 = vrot.lane.b32.xlu0 %v1685, 28
    %v2829 = vpop.permute.xlu0 %2828
    %2830 = vrot.lane.b32.xlu0 %v1692, 28
    %v2831 = vpop.permute.xlu0 %2830
    %2832 = vrot.lane.b32.xlu0 %v1699, 28
    %v2833 = vpop.permute.xlu0 %2832
    %2834 = vrot.lane.b32.xlu0 %v1706, 28
    %v2835 = vpop.permute.xlu0 %2834
    %2836 = vrot.lane.b32.xlu0 %v1713, 28
    %v2837 = vpop.permute.xlu0 %2836
    %2838 = vrot.lane.b32.xlu0 %v1720, 28
    %v2839 = vpop.permute.xlu0 %2838
    %2840 = vrot.lane.b32.xlu0 %v1727, 28
    %v2841 = vpop.permute.xlu0 %2840
    %2842 = vrot.lane.b32.xlu0 %v2811, 28
    %v2843 = vpop.permute.xlu0 %2842
    %v2860 = vperm.slane %v867, 0
    %v2861 = vperm.slane %v918, 0
    %v2862 = vsel %vm1353, %v2706, %v2705
    %v2863 = vsel %vm1355, %v2707, %v2862
    %v2864 = vsel %vm1357, %v2708, %v2863
    %v2865 = vsel %vm1359, %v2709, %v2864
    %v2866 = vsel %vm1361, %v2710, %v2865
    %v2867 = vsel %vm1363, %v2711, %v2866
    %v2868 = vsel %vm1365, %v2860, %v2867
    %v2869 = vsel %vm1353, %v2714, %v2713
    %v2870 = vsel %vm1355, %v2715, %v2869
    %v2871 = vsel %vm1357, %v2716, %v2870
    %v2872 = vsel %vm1359, %v2717, %v2871
    %v2873 = vsel %vm1361, %v2718, %v2872
    %v2874 = vsel %vm1363, %v2719, %v2873
    %v2875 = vsel %vm1365, %v2861, %v2874
    %2876 = vrot.lane.b32.xlu0 %v1805, 32
    %v2877 = vpop.permute.xlu0 %2876
    %2878 = vrot.lane.b32.xlu0 %v1812, 32
    %v2879 = vpop.permute.xlu0 %2878
    %2880 = vrot.lane.b32.xlu0 %v1819, 32
    %v2881 = vpop.permute.xlu0 %2880
    %2882 = vrot.lane.b32.xlu0 %v1826, 32
    %v2883 = vpop.permute.xlu0 %2882
    %2884 = vrot.lane.b32.xlu0 %v1833, 32
    %v2885 = vpop.permute.xlu0 %2884
    %2886 = vrot.lane.b32.xlu0 %v1840, 32
    %v2887 = vpop.permute.xlu0 %2886
    %2888 = vrot.lane.b32.xlu0 %v1847, 32
    %v2889 = vpop.permute.xlu0 %2888
    %2890 = vrot.lane.b32.xlu0 %v2868, 32
    %v2891 = vpop.permute.xlu0 %2890
    %2892 = vrot.lane.b32.xlu0 %v1861, 32
    %v2893 = vpop.permute.xlu0 %2892
    %2894 = vrot.lane.b32.xlu0 %v1868, 32
    %v2895 = vpop.permute.xlu0 %2894
    %2896 = vrot.lane.b32.xlu0 %v1875, 32
    %v2897 = vpop.permute.xlu0 %2896
    %2898 = vrot.lane.b32.xlu0 %v1882, 32
    %v2899 = vpop.permute.xlu0 %2898
    %2900 = vrot.lane.b32.xlu0 %v1889, 32
    %v2901 = vpop.permute.xlu0 %2900
    %2902 = vrot.lane.b32.xlu0 %v1896, 32
    %v2903 = vpop.permute.xlu0 %2902
    %2904 = vrot.lane.b32.xlu0 %v1903, 32
    %v2905 = vpop.permute.xlu0 %2904
    %2906 = vrot.lane.b32.xlu0 %v2875, 32
    %v2907 = vpop.permute.xlu0 %2906
    %v2924 = vsel %vm642, %v1366, %v1729
    %v2925 = vsel %vm642, %v1373, %v1731
    %v2926 = vsel %vm642, %v1380, %v1733
    %v2927 = vsel %vm642, %v1387, %v1735
    %v2928 = vsel %vm642, %v1394, %v1737
    %v2929 = vsel %vm642, %v1401, %v1739
    %v2930 = vsel %vm642, %v1408, %v1741
    %v2931 = vsel %vm642, %v1415, %v1743
    %v2932 = vsel %vm642, %v1422, %v1745
    %v2933 = vsel %vm642, %v1429, %v1747
    %v2934 = vsel %vm642, %v1436, %v1749
    %v2935 = vsel %vm642, %v1443, %v1751
    %v2936 = vsel %vm642, %v1450, %v1753
    %v2937 = vsel %vm642, %v1457, %v1755
    %v2938 = vsel %vm642, %v1464, %v1757
    %v2939 = vsel %vm642, %v1471, %v1759
    %vm2940 = vcmask 64512
    %v2941 = vsel %vm2940, %v2924, %v1905
    %v2942 = vsel %vm2940, %v2925, %v1907
    %v2943 = vsel %vm2940, %v2926, %v1909
    %v2944 = vsel %vm2940, %v2927, %v1911
    %v2945 = vsel %vm2940, %v2928, %v1913
    %v2946 = vsel %vm2940, %v2929, %v1915
    %v2947 = vsel %vm2940, %v2930, %v1917
    %v2948 = vsel %vm2940, %v2931, %v1919
    %v2949 = vsel %vm2940, %v2932, %v1921
    %v2950 = vsel %vm2940, %v2933, %v1923
    %v2951 = vsel %vm2940, %v2934, %v1925
    %v2952 = vsel %vm2940, %v2935, %v1927
    %v2953 = vsel %vm2940, %v2936, %v1929
    %v2954 = vsel %vm2940, %v2937, %v1931
    %v2955 = vsel %vm2940, %v2938, %v1933
    %v2956 = vsel %vm2940, %v2939, %v1935
    %vm2957 = vcmask 97280
    %v2958 = vsel %vm2957, %v2941, %v2193
    %v2959 = vsel %vm2957, %v2942, %v2195
    %v2960 = vsel %vm2957, %v2943, %v2197
    %v2961 = vsel %vm2957, %v2944, %v2199
    %v2962 = vsel %vm2957, %v2945, %v2201
    %v2963 = vsel %vm2957, %v2946, %v2203
    %v2964 = vsel %vm2957, %v2947, %v2205
    %v2965 = vsel %vm2957, %v2948, %v2207
    %v2966 = vsel %vm2957, %v2949, %v2209
    %v2967 = vsel %vm2957, %v2950, %v2211
    %v2968 = vsel %vm2957, %v2951, %v2213
    %v2969 = vsel %vm2957, %v2952, %v2215
    %v2970 = vsel %vm2957, %v2953, %v2217
    %v2971 = vsel %vm2957, %v2954, %v2219
    %v2972 = vsel %vm2957, %v2955, %v2221
    %v2973 = vsel %vm2957, %v2956, %v2223
    %vm2974 = vcmask 130048
    %v2975 = vsel %vm2974, %v2958, %v2481
    %v2976 = vsel %vm2974, %v2959, %v2483
    %v2977 = vsel %vm2974, %v2960, %v2485
    %v2978 = vsel %vm2974, %v2961, %v2487
    %v2979 = vsel %vm2974, %v2962, %v2489
    %v2980 = vsel %vm2974, %v2963, %v2491
    %v2981 = vsel %vm2974, %v2964, %v2493
    %v2982 = vsel %vm2974, %v2965, %v2495
    %v2983 = vsel %vm2974, %v2966, %v2497
    %v2984 = vsel %vm2974, %v2967, %v2499
    %v2985 = vsel %vm2974, %v2968, %v2501
    %v2986 = vsel %vm2974, %v2969, %v2503
    %v2987 = vsel %vm2974, %v2970, %v2505
    %v2988 = vsel %vm2974, %v2971, %v2507
    %v2989 = vsel %vm2974, %v2972, %v2509
    %v2990 = vsel %vm2974, %v2973, %v2511
    %vm2991 = vcmask 162816
    %v2992 = vsel %vm2991, %v2975, %v2657
    %v2993 = vsel %vm2991, %v2976, %v2659
    %v2994 = vsel %vm2991, %v2977, %v2661
    %v2995 = vsel %vm2991, %v2978, %v2663
    %v2996 = vsel %vm2991, %v2979, %v2665
    %v2997 = vsel %vm2991, %v2980, %v2667
    %v2998 = vsel %vm2991, %v2981, %v2669
    %v2999 = vsel %vm2991, %v2982, %v2671
    %v3000 = vsel %vm2991, %v2983, %v2673
    %v3001 = vsel %vm2991, %v2984, %v2675
    %v3002 = vsel %vm2991, %v2985, %v2677
    %v3003 = vsel %vm2991, %v2986, %v2679
    %v3004 = vsel %vm2991, %v2987, %v2681
    %v3005 = vsel %vm2991, %v2988, %v2683
    %v3006 = vsel %vm2991, %v2989, %v2685
    %v3007 = vsel %vm2991, %v2990, %v2687
    %vm3008 = vcmask 195584
    %v3009 = vsel %vm3008, %v2992, %v2735
    %v3010 = vsel %vm3008, %v2993, %v2737
    %v3011 = vsel %vm3008, %v2994, %v2739
    %v3012 = vsel %vm3008, %v2995, %v2741
    %v3013 = vsel %vm3008, %v2996, %v2743
    %v3014 = vsel %vm3008, %v2997, %v2745
    %v3015 = vsel %vm3008, %v2998, %v2747
    %v3016 = vsel %vm3008, %v2999, %v2749
    %v3017 = vsel %vm3008, %v3000, %v2751
    %v3018 = vsel %vm3008, %v3001, %v2753
    %v3019 = vsel %vm3008, %v3002, %v2755
    %v3020 = vsel %vm3008, %v3003, %v2757
    %v3021 = vsel %vm3008, %v3004, %v2759
    %v3022 = vsel %vm3008, %v3005, %v2761
    %v3023 = vsel %vm3008, %v3006, %v2763
    %v3024 = vsel %vm3008, %v3007, %v2765
    %vm3025 = vcmask 228352
    %v3026 = vsel %vm3025, %v3009, %v2813
    %v3027 = vsel %vm3025, %v3010, %v2815
    %v3028 = vsel %vm3025, %v3011, %v2817
    %v3029 = vsel %vm3025, %v3012, %v2819
    %v3030 = vsel %vm3025, %v3013, %v2821
    %v3031 = vsel %vm3025, %v3014, %v2823
    %v3032 = vsel %vm3025, %v3015, %v2825
    %v3033 = vsel %vm3025, %v3016, %v2827
    %v3034 = vsel %vm3025, %v3017, %v2829
    %v3035 = vsel %vm3025, %v3018, %v2831
    %v3036 = vsel %vm3025, %v3019, %v2833
    %v3037 = vsel %vm3025, %v3020, %v2835
    %v3038 = vsel %vm3025, %v3021, %v2837
    %v3039 = vsel %vm3025, %v3022, %v2839
    %v3040 = vsel %vm3025, %v3023, %v2841
    %v3041 = vsel %vm3025, %v3024, %v2843
    %vm3042 = vcmask 261120
    %v3043 = vsel %vm3042, %v3026, %v2877
    %v3044 = vsel %vm3042, %v3027, %v2879
    %v3045 = vsel %vm3042, %v3028, %v2881
    %v3046 = vsel %vm3042, %v3029, %v2883
    %v3047 = vsel %vm3042, %v3030, %v2885
    %v3048 = vsel %vm3042, %v3031, %v2887
    %v3049 = vsel %vm3042, %v3032, %v2889
    %v3050 = vsel %vm3042, %v3033, %v2891
    %v3051 = vsel %vm3042, %v3034, %v2893
    %v3052 = vsel %vm3042, %v3035, %v2895
    %v3053 = vsel %vm3042, %v3036, %v2897
    %v3054 = vsel %vm3042, %v3037, %v2899
    %v3055 = vsel %vm3042, %v3038, %v2901
    %v3056 = vsel %vm3042, %v3039, %v2903
    %v3057 = vsel %vm3042, %v3040, %v2905
    %v3058 = vsel %vm3042, %v3041, %v2907
    %v3059 = vld [vmem:[%s2] sm:$0xff]
    %v3060 = vld [vmem:[%s2 + $0x8] sm:$0xff]
    %v3061 = vld [vmem:[%s2 + $0x10] sm:$0xff]
    %v3062 = vld [vmem:[%s2 + $0x18] sm:$0xff]
    %v3063 = vld [vmem:[%s2 + $0x20] sm:$0xf]
    %v3064 = vperm.slane %v233, 1
    %vm3065 = vcmask 293888
    %v3067 = vsel %vm3065, %v3043, 0
    %v3070 = vsel %vm3065, %v3044, 0
    %v3073 = vsel %vm3065, %v3045, 0
    %v3076 = vsel %vm3065, %v3046, 0
    %v3079 = vsel %vm3065, %v3047, 0
    %v3082 = vsel %vm3065, %v3048, 0
    %v3085 = vsel %vm3065, %v3049, 0
    %v3088 = vsel %vm3065, %v3050, 0
    %v3091 = vsel %vm3065, %v3051, 0
    %v3094 = vsel %vm3065, %v3052, 0
    %v3097 = vsel %vm3065, %v3053, 0
    %v3100 = vsel %vm3065, %v3054, 0
    %v3103 = vsel %vm3065, %v3055, 0
    %v3106 = vsel %vm3065, %v3056, 0
    %v3109 = vsel %vm3065, %v3057, 0
    %v3112 = vsel %vm3065, %v3058, 0
    %vm3114 = vcmask 1043456
    %v3116 = vsel %vm3114, %v3063, 0
    %3118 = vmatpush.msra.mxu0 0.0
    %3119 = vmatpush.msra.mxu0 0.0
    %3120 = vmatpush.msra.mxu0 0.0
    %3121 = vmatpush.msra.mxu0 0.0
    %3122 = vmatpush.msra.mxu0 0.0
    %3123 = vmatpush.msra.mxu0 0.0
    %3124 = vmatpush.msra.mxu0 0.0
    %3125 = vmatpush.msra.mxu0 0.0
    %3126 = vmatpush.msra.mxu0 0.0
    %3127 = vmatpush.msra.mxu0 0.0
    %3128 = vmatpush.msra.mxu0 0.0
    %3129 = vmatpush.msra.mxu0 %v3116
    %3130 = vmatpush.msra.mxu0 %v3062
    %3131 = vmatpush.msra.mxu0 %v3061
    %3132 = vmatpush.msra.mxu0 %v3060
    %3133 = vmatpush.msra.mxu0 %v3059
    %3134 = vmatmul.f32.gmra.mxu0 %v3067
    %v3135 = vpop.f32.mrf.mxu0
    %v3136 = vadd.f32 %v3064, %v3135
    %3137 = vmatmul.f32.gmra.mxu0 %v3070
    %v3138 = vpop.f32.mrf.mxu0
    %v3139 = vadd.f32 %v3064, %v3138
    %3140 = vmatmul.f32.gmra.mxu0 %v3073
    %v3141 = vpop.f32.mrf.mxu0
    %v3142 = vadd.f32 %v3064, %v3141
    %3143 = vmatmul.f32.gmra.mxu0 %v3076
    %v3144 = vpop.f32.mrf.mxu0
    %v3145 = vadd.f32 %v3064, %v3144
    %3146 = vmatmul.f32.gmra.mxu0 %v3079
    %v3147 = vpop.f32.mrf.mxu0
    %v3148 = vadd.f32 %v3064, %v3147
    %3149 = vmatmul.f32.gmra.mxu0 %v3082
    %v3150 = vpop.f32.mrf.mxu0
    %v3151 = vadd.f32 %v3064, %v3150
    %3152 = vmatmul.f32.gmra.mxu0 %v3085
    %v3153 = vpop.f32.mrf.mxu0
    %v3154 = vadd.f32 %v3064, %v3153
    %3155 = vmatmul.f32.gmra.mxu0 %v3088
    %v3156 = vpop.f32.mrf.mxu0
    %v3157 = vadd.f32 %v3064, %v3156
    %3158 = vmatmul.f32.gmra.mxu0 %v3091
    %v3159 = vpop.f32.mrf.mxu0
    %v3160 = vadd.f32 %v3064, %v3159
    %3161 = vmatmul.f32.gmra.mxu0 %v3094
    %v3162 = vpop.f32.mrf.mxu0
    %v3163 = vadd.f32 %v3064, %v3162
    %3164 = vmatmul.f32.gmra.mxu0 %v3097
    %v3165 = vpop.f32.mrf.mxu0
    %v3166 = vadd.f32 %v3064, %v3165
    %3167 = vmatmul.f32.gmra.mxu0 %v3100
    %v3168 = vpop.f32.mrf.mxu0
    %v3169 = vadd.f32 %v3064, %v3168
    %3170 = vmatmul.f32.gmra.mxu0 %v3103
    %v3171 = vpop.f32.mrf.mxu0
    %v3172 = vadd.f32 %v3064, %v3171
    %3173 = vmatmul.f32.gmra.mxu0 %v3106
    %v3174 = vpop.f32.mrf.mxu0
    %v3175 = vadd.f32 %v3064, %v3174
    %3176 = vmatmul.f32.gmra.mxu0 %v3109
    %v3177 = vpop.f32.mrf.mxu0
    %v3178 = vadd.f32 %v3064, %v3177
    %3179 = vmatmul.f32.gmra.mxu0 %v3112
    %v3180 = vpop.f32.mrf.mxu0
    %v3181 = vadd.f32 %v3064, %v3180
    %3182 = vdwg.mxu0
    %v3183 = vperm.slane %v233, 2
    %v3184 = vmul.f32 %v3136, %v3183
    %v3185 = vmul.f32 %v3139, %v3183
    %v3186 = vmul.f32 %v3142, %v3183
    %v3187 = vmul.f32 %v3145, %v3183
    %v3188 = vmul.f32 %v3148, %v3183
    %v3189 = vmul.f32 %v3151, %v3183
    %v3190 = vmul.f32 %v3154, %v3183
    %v3191 = vmul.f32 %v3157, %v3183
    %v3192 = vmul.f32 %v3160, %v3183
    %v3193 = vmul.f32 %v3163, %v3183
    %v3194 = vmul.f32 %v3166, %v3183
    %v3195 = vmul.f32 %v3169, %v3183
    %v3196 = vmul.f32 %v3172, %v3183
    %v3197 = vmul.f32 %v3175, %v3183
    %v3198 = vmul.f32 %v3178, %v3183
    %v3199 = vmul.f32 %v3181, %v3183
    %v3200 = vperm.slane %v233, 3
    %v3201 = vadd.f32 %v3184, %v3200
    %v3202 = vadd.f32 %v3185, %v3200
    %v3203 = vadd.f32 %v3186, %v3200
    %v3204 = vadd.f32 %v3187, %v3200
    %v3205 = vadd.f32 %v3188, %v3200
    %v3206 = vadd.f32 %v3189, %v3200
    %v3207 = vadd.f32 %v3190, %v3200
    %v3208 = vadd.f32 %v3191, %v3200
    %v3209 = vadd.f32 %v3192, %v3200
    %v3210 = vadd.f32 %v3193, %v3200
    %v3211 = vadd.f32 %v3194, %v3200
    %v3212 = vadd.f32 %v3195, %v3200
    %v3213 = vadd.f32 %v3196, %v3200
    %v3214 = vadd.f32 %v3197, %v3200
    %v3215 = vadd.f32 %v3198, %v3200
    %v3216 = vadd.f32 %v3199, %v3200
    %v3217 = vmax.f32 %v3201, 0.0
    %v3218 = vmax.f32 %v3202, 0.0
    %v3219 = vmax.f32 %v3203, 0.0
    %v3220 = vmax.f32 %v3204, 0.0
    %v3221 = vmax.f32 %v3205, 0.0
    %v3222 = vmax.f32 %v3206, 0.0
    %v3223 = vmax.f32 %v3207, 0.0
    %v3224 = vmax.f32 %v3208, 0.0
    %v3225 = vmax.f32 %v3209, 0.0
    %v3226 = vmax.f32 %v3210, 0.0
    %v3227 = vmax.f32 %v3211, 0.0
    %v3228 = vmax.f32 %v3212, 0.0
    %v3229 = vmax.f32 %v3213, 0.0
    %v3230 = vmax.f32 %v3214, 0.0
    %v3231 = vmax.f32 %v3215, 0.0
    %v3232 = vmax.f32 %v3216, 0.0
    %v3233 = vld [vmem:[#allocation6] sm:$0xf]
    %v3234 = vperm.slane %v233, 4
    %v3236 = vsel %vm642, %v3217, 0
    %v3239 = vsel %vm642, %v3218, 0
    %v3242 = vsel %vm642, %v3219, 0
    %v3245 = vsel %vm642, %v3220, 0
    %v3248 = vsel %vm642, %v3221, 0
    %v3251 = vsel %vm642, %v3222, 0
    %v3254 = vsel %vm642, %v3223, 0
    %v3257 = vsel %vm642, %v3224, 0
    %v3260 = vsel %vm642, %v3225, 0
    %v3263 = vsel %vm642, %v3226, 0
    %v3266 = vsel %vm642, %v3227, 0
    %v3269 = vsel %vm642, %v3228, 0
    %v3272 = vsel %vm642, %v3229, 0
    %v3275 = vsel %vm642, %v3230, 0
    %v3278 = vsel %vm642, %v3231, 0
    %v3281 = vsel %vm642, %v3232, 0
    %v3284 = vsel %vm3114, %v3233, 0
    %3286 = vmatpush.msra.mxu0 0.0
    %3287 = vmatpush.msra.mxu0 0.0
    %3288 = vmatpush.msra.mxu0 0.0
    %3289 = vmatpush.msra.mxu0 0.0
    %3290 = vmatpush.msra.mxu0 0.0
    %3291 = vmatpush.msra.mxu0 0.0
    %3292 = vmatpush.msra.mxu0 0.0
    %3293 = vmatpush.msra.mxu0 0.0
    %3294 = vmatpush.msra.mxu0 0.0
    %3295 = vmatpush.msra.mxu0 0.0
    %3296 = vmatpush.msra.mxu0 0.0
    %3297 = vmatpush.msra.mxu0 0.0
    %3298 = vmatpush.msra.mxu0 0.0
    %3299 = vmatpush.msra.mxu0 0.0
    %3300 = vmatpush.msra.mxu0 0.0
    %3301 = vmatpush.msra.mxu0 %v3284
    %3302 = vmatmul.f32.gmra.mxu0 %v3236
    %v3303 = vpop.f32.mrf.mxu0
    %v3304 = vadd.f32 %v3234, %v3303
    %3305 = vmatmul.f32.gmra.mxu0 %v3239
    %v3306 = vpop.f32.mrf.mxu0
    %v3307 = vadd.f32 %v3234, %v3306
    %3308 = vmatmul.f32.gmra.mxu0 %v3242
    %v3309 = vpop.f32.mrf.mxu0
    %v3310 = vadd.f32 %v3234, %v3309
    %3311 = vmatmul.f32.gmra.mxu0 %v3245
    %v3312 = vpop.f32.mrf.mxu0
    %v3313 = vadd.f32 %v3234, %v3312
    %3314 = vmatmul.f32.gmra.mxu0 %v3248
    %v3315 = vpop.f32.mrf.mxu0
    %v3316 = vadd.f32 %v3234, %v3315
    %3317 = vmatmul.f32.gmra.mxu0 %v3251
    %v3318 = vpop.f32.mrf.mxu0
    %v3319 = vadd.f32 %v3234, %v3318
    %3320 = vmatmul.f32.gmra.mxu0 %v3254
    %v3321 = vpop.f32.mrf.mxu0
    %v3322 = vadd.f32 %v3234, %v3321
    %3323 = vmatmul.f32.gmra.mxu0 %v3257
    %v3324 = vpop.f32.mrf.mxu0
    %v3325 = vadd.f32 %v3234, %v3324
    %3326 = vmatmul.f32.gmra.mxu0 %v3260
    %v3327 = vpop.f32.mrf.mxu0
    %v3328 = vadd.f32 %v3234, %v3327
    %3329 = vmatmul.f32.gmra.mxu0 %v3263
    %v3330 = vpop.f32.mrf.mxu0
    %v3331 = vadd.f32 %v3234, %v3330
    %3332 = vmatmul.f32.gmra.mxu0 %v3266
    %v3333 = vpop.f32.mrf.mxu0
    %v3334 = vadd.f32 %v3234, %v3333
    %3335 = vmatmul.f32.gmra.mxu0 %v3269
    %v3336 = vpop.f32.mrf.mxu0
    %v3337 = vadd.f32 %v3234, %v3336
    %3338 = vmatmul.f32.gmra.mxu0 %v3272
    %v3339 = vpop.f32.mrf.mxu0
    %v3340 = vadd.f32 %v3234, %v3339
    %3341 = vmatmul.f32.gmra.mxu0 %v3275
    %v3342 = vpop.f32.mrf.mxu0
    %v3343 = vadd.f32 %v3234, %v3342
    %3344 = vmatmul.f32.gmra.mxu0 %v3278
    %v3345 = vpop.f32.mrf.mxu0
    %v3346 = vadd.f32 %v3234, %v3345
    %3347 = vmatmul.f32.gmra.mxu0 %v3281
    %v3348 = vpop.f32.mrf.mxu0
    %v3349 = vadd.f32 %v3234, %v3348
    %3350 = vdwg.mxu0
    %3351 = vst.msk [vmem:[%s17] sm:$0xff] %vm642, %v3304
    %3352 = vst.msk [vmem:[%s17 + $0x8] sm:$0xff] %vm642, %v3307
    %3353 = vst.msk [vmem:[%s17 + $0x10] sm:$0xff] %vm642, %v3310
    %3354 = vst.msk [vmem:[%s17 + $0x18] sm:$0xff] %vm642, %v3313
    %3355 = vst.msk [vmem:[%s17 + $0x20] sm:$0xff] %vm642, %v3316
    %3356 = vst.msk [vmem:[%s17 + $0x28] sm:$0xff] %vm642, %v3319
    %3357 = vst.msk [vmem:[%s17 + $0x30] sm:$0xff] %vm642, %v3322
    %3358 = vst.msk [vmem:[%s17 + $0x38] sm:$0xff] %vm642, %v3325
    %3359 = vst.msk [vmem:[%s17 + $0x40] sm:$0xff] %vm642, %v3328
    %3360 = vst.msk [vmem:[%s17 + $0x48] sm:$0xff] %vm642, %v3331
    %3361 = vst.msk [vmem:[%s17 + $0x50] sm:$0xff] %vm642, %v3334
    %3362 = vst.msk [vmem:[%s17 + $0x58] sm:$0xff] %vm642, %v3337
    %3363 = vst.msk [vmem:[%s17 + $0x60] sm:$0xff] %vm642, %v3340
    %3364 = vst.msk [vmem:[%s17 + $0x68] sm:$0xff] %vm642, %v3343
    %3365 = vst.msk [vmem:[%s17 + $0x70] sm:$0xff] %vm642, %v3346
    %3366 = vst.msk [vmem:[%s17 + $0x78] sm:$0xff] %vm642, %v3349
    %v3367 = vld [vmem:[%s8] sm:$0x1f]
    %v3368 = vld [vmem:[%s5] sm:$0xf]
    %v3369 = vperm.slane %v3367, 0
    %v3371 = vsel %vm642, %v3304, 0
    %v3374 = vsel %vm642, %v3307, 0
    %v3377 = vsel %vm642, %v3310, 0
    %v3380 = vsel %vm642, %v3313, 0
    %v3383 = vsel %vm642, %v3316, 0
    %v3386 = vsel %vm642, %v3319, 0
    %v3389 = vsel %vm642, %v3322, 0
    %v3392 = vsel %vm642, %v3325, 0
    %v3395 = vsel %vm642, %v3328, 0
    %v3398 = vsel %vm642, %v3331, 0
    %v3401 = vsel %vm642, %v3334, 0
    %v3404 = vsel %vm642, %v3337, 0
    %v3407 = vsel %vm642, %v3340, 0
    %v3410 = vsel %vm642, %v3343, 0
    %v3413 = vsel %vm642, %v3346, 0
    %v3416 = vsel %vm642, %v3349, 0
    %v3419 = vsel %vm3114, %v3368, 0
    %3421 = vmatpush.msra.mxu0 0.0
    %3422 = vmatpush.msra.mxu0 0.0
    %3423 = vmatpush.msra.mxu0 0.0
    %3424 = vmatpush.msra.mxu0 0.0
    %3425 = vmatpush.msra.mxu0 0.0
    %3426 = vmatpush.msra.mxu0 0.0
    %3427 = vmatpush.msra.mxu0 0.0
    %3428 = vmatpush.msra.mxu0 0.0
    %3429 = vmatpush.msra.mxu0 0.0
    %3430 = vmatpush.msra.mxu0 0.0
    %3431 = vmatpush.msra.mxu0 0.0
    %3432 = vmatpush.msra.mxu0 0.0
    %3433 = vmatpush.msra.mxu0 0.0
    %3434 = vmatpush.msra.mxu0 0.0
    %3435 = vmatpush.msra.mxu0 0.0
    %3436 = vmatpush.msra.mxu0 %v3419
    %3437 = vmatmul.f32.gmra.mxu0 %v3371
    %v3438 = vpop.f32.mrf.mxu0
    %v3439 = vadd.f32 %v3369, %v3438
    %3440 = vmatmul.f32.gmra.mxu0 %v3374
    %v3441 = vpop.f32.mrf.mxu0
    %v3442 = vadd.f32 %v3369, %v3441
    %3443 = vmatmul.f32.gmra.mxu0 %v3377
    %v3444 = vpop.f32.mrf.mxu0
    %v3445 = vadd.f32 %v3369, %v3444
    %3446 = vmatmul.f32.gmra.mxu0 %v3380
    %v3447 = vpop.f32.mrf.mxu0
    %v3448 = vadd.f32 %v3369, %v3447
    %3449 = vmatmul.f32.gmra.mxu0 %v3383
    %v3450 = vpop.f32.mrf.mxu0
    %v3451 = vadd.f32 %v3369, %v3450
    %3452 = vmatmul.f32.gmra.mxu0 %v3386
    %v3453 = vpop.f32.mrf.mxu0
    %v3454 = vadd.f32 %v3369, %v3453
    %3455 = vmatmul.f32.gmra.mxu0 %v3389
    %v3456 = vpop.f32.mrf.mxu0
    %v3457 = vadd.f32 %v3369, %v3456
    %3458 = vmatmul.f32.gmra.mxu0 %v3392
    %v3459 = vpop.f32.mrf.mxu0
    %v3460 = vadd.f32 %v3369, %v3459
    %3461 = vmatmul.f32.gmra.mxu0 %v3395
    %v3462 = vpop.f32.mrf.mxu0
    %v3463 = vadd.f32 %v3369, %v3462
    %3464 = vmatmul.f32.gmra.mxu0 %v3398
    %v3465 = vpop.f32.mrf.mxu0
    %v3466 = vadd.f32 %v3369, %v3465
    %3467 = vmatmul.f32.gmra.mxu0 %v3401
    %v3468 = vpop.f32.mrf.mxu0
    %v3469 = vadd.f32 %v3369, %v3468
    %3470 = vmatmul.f32.gmra.mxu0 %v3404
    %v3471 = vpop.f32.mrf.mxu0
    %v3472 = vadd.f32 %v3369, %v3471
    %3473 = vmatmul.f32.gmra.mxu0 %v3407
    %v3474 = vpop.f32.mrf.mxu0
    %v3475 = vadd.f32 %v3369, %v3474
    %3476 = vmatmul.f32.gmra.mxu0 %v3410
    %v3477 = vpop.f32.mrf.mxu0
    %v3478 = vadd.f32 %v3369, %v3477
    %3479 = vmatmul.f32.gmra.mxu0 %v3413
    %v3480 = vpop.f32.mrf.mxu0
    %v3481 = vadd.f32 %v3369, %v3480
    %3482 = vmatmul.f32.gmra.mxu0 %v3416
    %v3483 = vpop.f32.mrf.mxu0
    %v3484 = vadd.f32 %v3369, %v3483
    %3485 = vdwg.mxu0
    %3486 = vst.msk [vmem:[#allocation3] sm:$0xff] %vm2974, 0.0
    %vm3487 = vcmask 123904
    %3488 = vst.msk [vmem:[#allocation3 + $0x8] sm:$0x3] %vm3487, 0.0
    %3489 = vst.msk [vmem:[#allocation3 + $0x10] sm:$0xff] %vm2974, 0.0
    %3490 = vst.msk [vmem:[#allocation3 + $0x18] sm:$0x3] %vm3487, 0.0
    %3491 = vst.msk [vmem:[#allocation3 + $0x20] sm:$0xff] %vm2974, 0.0
    %3492 = vst.msk [vmem:[#allocation3 + $0x28] sm:$0x3] %vm3487, 0.0
    %3493 = vst.msk [vmem:[#allocation3 + $0x30] sm:$0xff] %vm2974, 0.0
    %3494 = vst.msk [vmem:[#allocation3 + $0x38] sm:$0x3] %vm3487, 0.0
    %3495 = vst.msk [vmem:[#allocation3 + $0x40] sm:$0xff] %vm2974, 0.0
    %3496 = vst.msk [vmem:[#allocation3 + $0x48] sm:$0x3] %vm3487, 0.0
    %3497 = vst.msk [vmem:[#allocation3 + $0x50] sm:$0xff] %vm2974, 0.0
    %3498 = vst.msk [vmem:[#allocation3 + $0x58] sm:$0x3] %vm3487, 0.0
    %3499 = vst.msk [vmem:[#allocation3 + $0x60] sm:$0xff] %vm2974, 0.0
    %3500 = vst.msk [vmem:[#allocation3 + $0x68] sm:$0x3] %vm3487, 0.0
    %3501 = vst.msk [vmem:[#allocation3 + $0x70] sm:$0xff] %vm2974, 0.0
    %3502 = vst.msk [vmem:[#allocation3 + $0x78] sm:$0x3] %vm3487, 0.0
    %3503 = vst.msk [vmem:[#allocation3 + $0x80] sm:$0xff] %vm2974, 0.0
    %3504 = vst.msk [vmem:[#allocation3 + $0x88] sm:$0x3] %vm3487, 0.0
    %3505 = vst.msk [vmem:[#allocation3 + $0x90] sm:$0xff] %vm2974, 0.0
    %3506 = vst.msk [vmem:[#allocation3 + $0x98] sm:$0x3] %vm3487, 0.0
    %3507 = vst.msk [vmem:[#allocation3 + $0xa0] sm:$0xff] %vm2974, 0.0
    %3508 = vst.msk [vmem:[#allocation3 + $0xa8] sm:$0x3] %vm3487, 0.0
    %3509 = vst.msk [vmem:[#allocation3 + $0xb0] sm:$0xff] %vm2974, 0.0
    %3510 = vst.msk [vmem:[#allocation3 + $0xb8] sm:$0x3] %vm3487, 0.0
    %3511 = vst.msk [vmem:[#allocation3 + $0xc0] sm:$0xff] %vm2974, 0.0
    %3512 = vst.msk [vmem:[#allocation3 + $0xc8] sm:$0x3] %vm3487, 0.0
    %3513 = vst.msk [vmem:[#allocation3 + $0xd0] sm:$0xff] %vm2974, 0.0
    %3514 = vst.msk [vmem:[#allocation3 + $0xd8] sm:$0x3] %vm3487, 0.0
    %3515 = vst.msk [vmem:[#allocation3 + $0xe0] sm:$0xff] %vm2974, 0.0
    %3516 = vst.msk [vmem:[#allocation3 + $0xe8] sm:$0x3] %vm3487, 0.0
    %3517 = vst.msk [vmem:[#allocation3 + $0xf0] sm:$0xff] %vm2974, 0.0
    %3518 = vst.msk [vmem:[#allocation3 + $0xf8] sm:$0x3] %vm3487, 0.0
    %3519 = vst.msk [vmem:[#allocation3 + $0x100] sm:$0xff] %vm2974, 0.0
    %3520 = vst.msk [vmem:[#allocation3 + $0x108] sm:$0x3] %vm3487, 0.0
    %3521 = vst.msk [vmem:[#allocation3 + $0x110] sm:$0xff] %vm2974, 0.0
    %3522 = vst.msk [vmem:[#allocation3 + $0x118] sm:$0x3] %vm3487, 0.0
    %3523 = vst.msk [vmem:[#allocation3 + $0x120] sm:$0xff] %vm2974, 0.0
    %3524 = vst.msk [vmem:[#allocation3 + $0x128] sm:$0x3] %vm3487, 0.0
    %3525 = vst.msk [vmem:[#allocation3 + $0x130] sm:$0xff] %vm2974, 0.0
    %3526 = vst.msk [vmem:[#allocation3 + $0x138] sm:$0x3] %vm3487, 0.0
    %s3527 = scalar_lea.vmem [#allocation3], 16
    %3528 = vst.msk [vmem:[%s3527 + $0x1] sm:$0xff] %vm2974, %v3439
    %3529 = vst.msk [vmem:[%s3527 + $0x11] sm:$0xff] %vm2974, %v3442
    %3530 = vst.msk [vmem:[%s3527 + $0x21] sm:$0xff] %vm2974, %v3445
    %3531 = vst.msk [vmem:[%s3527 + $0x31] sm:$0xff] %vm2974, %v3448
    %3532 = vst.msk [vmem:[%s3527 + $0x41] sm:$0xff] %vm2974, %v3451
    %3533 = vst.msk [vmem:[%s3527 + $0x51] sm:$0xff] %vm2974, %v3454
    %3534 = vst.msk [vmem:[%s3527 + $0x61] sm:$0xff] %vm2974, %v3457
    %3535 = vst.msk [vmem:[%s3527 + $0x71] sm:$0xff] %vm2974, %v3460
    %3536 = vst.msk [vmem:[%s3527 + $0xa1] sm:$0xff] %vm2974, %v3463
    %3537 = vst.msk [vmem:[%s3527 + $0xb1] sm:$0xff] %vm2974, %v3466
    %3538 = vst.msk [vmem:[%s3527 + $0xc1] sm:$0xff] %vm2974, %v3469
    %3539 = vst.msk [vmem:[%s3527 + $0xd1] sm:$0xff] %vm2974, %v3472
    %3540 = vst.msk [vmem:[%s3527 + $0xe1] sm:$0xff] %vm2974, %v3475
    %3541 = vst.msk [vmem:[%s3527 + $0xf1] sm:$0xff] %vm2974, %v3478
    %3542 = vst.msk [vmem:[%s3527 + $0x101] sm:$0xff] %vm2974, %v3481
    %3543 = vst.msk [vmem:[%s3527 + $0x111] sm:$0xff] %vm2974, %v3484
    %v3544 = vld [vmem:[#allocation3] sm:$0xff]
    %v3545 = vld [vmem:[#allocation3 + $0x8] sm:$0x3]
    %v3546 = vld [vmem:[#allocation3 + $0x10] sm:$0xff]
    %v3547 = vld [vmem:[#allocation3 + $0x18] sm:$0x3]
    %v3548 = vld [vmem:[#allocation3 + $0x20] sm:$0xff]
    %v3549 = vld [vmem:[#allocation3 + $0x28] sm:$0x3]
    %v3550 = vld [vmem:[#allocation3 + $0x30] sm:$0xff]
    %v3551 = vld [vmem:[#allocation3 + $0x38] sm:$0x3]
    %v3552 = vld [vmem:[#allocation3 + $0x40] sm:$0xff]
    %v3553 = vld [vmem:[#allocation3 + $0x48] sm:$0x3]
    %v3554 = vld [vmem:[#allocation3 + $0x50] sm:$0xff]
    %v3555 = vld [vmem:[#allocation3 + $0x58] sm:$0x3]
    %v3556 = vld [vmem:[#allocation3 + $0x60] sm:$0xff]
    %v3557 = vld [vmem:[#allocation3 + $0x68] sm:$0x3]
    %v3558 = vld [vmem:[#allocation3 + $0x70] sm:$0xff]
    %v3559 = vld [vmem:[#allocation3 + $0x78] sm:$0x3]
    %v3560 = vld [vmem:[#allocation3 + $0x80] sm:$0xff]
    %v3561 = vld [vmem:[#allocation3 + $0x88] sm:$0x3]
    %v3562 = vld [vmem:[#allocation3 + $0xa0] sm:$0xff]
    %v3563 = vld [vmem:[#allocation3 + $0xa8] sm:$0x3]
    %v3564 = vld [vmem:[#allocation3 + $0xb0] sm:$0xff]
    %v3565 = vld [vmem:[#allocation3 + $0xb8] sm:$0x3]
    %v3566 = vld [vmem:[#allocation3 + $0xc0] sm:$0xff]
    %v3567 = vld [vmem:[#allocation3 + $0xc8] sm:$0x3]
    %v3568 = vld [vmem:[#allocation3 + $0xd0] sm:$0xff]
    %v3569 = vld [vmem:[#allocation3 + $0xd8] sm:$0x3]
    %v3570 = vld [vmem:[#allocation3 + $0xe0] sm:$0xff]
    %v3571 = vld [vmem:[#allocation3 + $0xe8] sm:$0x3]
    %v3572 = vld [vmem:[#allocation3 + $0xf0] sm:$0xff]
    %v3573 = vld [vmem:[#allocation3 + $0xf8] sm:$0x3]
    %v3574 = vld [vmem:[#allocation3 + $0x100] sm:$0xff]
    %v3575 = vld [vmem:[#allocation3 + $0x108] sm:$0x3]
    %v3576 = vld [vmem:[#allocation3 + $0x110] sm:$0xff]
    %v3577 = vld [vmem:[#allocation3 + $0x118] sm:$0x3]
    %v3578 = vld [vmem:[#allocation3 + $0x120] sm:$0xff]
    %v3579 = vld [vmem:[#allocation3 + $0x128] sm:$0x3]
    %v3616 = vrot.slane %v3544, 2
    %v3617 = vrot.slane %v3544, 4
    %v3618 = vrot.slane %v3544, 6
    %v3619 = vrot.slane %v3546, 2
    %v3620 = vrot.slane %v3546, 4
    %v3621 = vrot.slane %v3546, 6
    %v3622 = vrot.slane %v3548, 2
    %v3623 = vrot.slane %v3548, 4
    %v3624 = vrot.slane %v3548, 6
    %v3625 = vrot.slane %v3550, 2
    %v3626 = vrot.slane %v3550, 4
    %v3627 = vrot.slane %v3550, 6
    %v3628 = vrot.slane %v3552, 2
    %v3629 = vrot.slane %v3552, 4
    %v3630 = vrot.slane %v3552, 6
    %v3631 = vrot.slane %v3554, 2
    %v3632 = vrot.slane %v3554, 4
    %v3633 = vrot.slane %v3554, 6
    %v3634 = vrot.slane %v3556, 2
    %v3635 = vrot.slane %v3556, 4
    %v3636 = vrot.slane %v3556, 6
    %v3637 = vrot.slane %v3558, 2
    %v3638 = vrot.slane %v3558, 4
    %v3639 = vrot.slane %v3558, 6
    %v3640 = vrot.slane %v3560, 2
    %v3641 = vrot.slane %v3560, 4
    %v3642 = vrot.slane %v3560, 6
    %v3643 = vrot.slane %v3562, 2
    %v3644 = vrot.slane %v3562, 4
    %v3645 = vrot.slane %v3562, 6
    %v3646 = vrot.slane %v3564, 2
    %v3647 = vrot.slane %v3564, 4
    %v3648 = vrot.slane %v3564, 6
    %v3649 = vrot.slane %v3566, 2
    %v3650 = vrot.slane %v3566, 4
    %v3651 = vrot.slane %v3566, 6
    %v3652 = vrot.slane %v3568, 2
    %v3653 = vrot.slane %v3568, 4
    %v3654 = vrot.slane %v3568, 6
    %v3655 = vrot.slane %v3570, 2
    %v3656 = vrot.slane %v3570, 4
    %v3657 = vrot.slane %v3570, 6
    %v3658 = vrot.slane %v3572, 2
    %v3659 = vrot.slane %v3572, 4
    %v3660 = vrot.slane %v3572, 6
    %v3661 = vrot.slane %v3574, 2
    %v3662 = vrot.slane %v3574, 4
    %v3663 = vrot.slane %v3574, 6
    %v3664 = vrot.slane %v3576, 2
    %v3665 = vrot.slane %v3576, 4
    %v3666 = vrot.slane %v3576, 6
    %v3667 = vrot.slane %v3578, 2
    %v3668 = vrot.slane %v3578, 4
    %v3669 = vrot.slane %v3578, 6
    %v3670 = vperm.slane %v3544, 0
    %v3671 = vperm.slane %v3616, 0
    %v3672 = vperm.slane %v3617, 0
    %v3673 = vperm.slane %v3618, 0
    %v3674 = vperm.slane %v3548, 0
    %v3675 = vperm.slane %v3622, 0
    %v3676 = vperm.slane %v3623, 0
    %v3677 = vperm.slane %v3624, 0
    %v3678 = vperm.slane %v3552, 0
    %v3679 = vperm.slane %v3628, 0
    %v3680 = vperm.slane %v3629, 0
    %v3681 = vperm.slane %v3630, 0
    %v3682 = vperm.slane %v3556, 0
    %v3683 = vperm.slane %v3634, 0
    %v3684 = vperm.slane %v3635, 0
    %v3685 = vperm.slane %v3636, 0
    %v3686 = vperm.slane %v3562, 0
    %v3687 = vperm.slane %v3643, 0
    %v3688 = vperm.slane %v3644, 0
    %v3689 = vperm.slane %v3645, 0
    %v3690 = vperm.slane %v3566, 0
    %v3691 = vperm.slane %v3649, 0
    %v3692 = vperm.slane %v3650, 0
    %v3693 = vperm.slane %v3651, 0
    %v3694 = vperm.slane %v3570, 0
    %v3695 = vperm.slane %v3655, 0
    %v3696 = vperm.slane %v3656, 0
    %v3697 = vperm.slane %v3657, 0
    %v3698 = vperm.slane %v3574, 0
    %v3699 = vperm.slane %v3661, 0
    %v3700 = vperm.slane %v3662, 0
    %v3701 = vperm.slane %v3663, 0
    %v3702 = vsel %vm1353, %v3671, %v3670
    %v3703 = vsel %vm1355, %v3672, %v3702
    %v3704 = vsel %vm1357, %v3673, %v3703
    %v3705 = vsel %vm1359, %v3674, %v3704
    %v3706 = vsel %vm1361, %v3675, %v3705
    %v3707 = vsel %vm1363, %v3676, %v3706
    %v3708 = vsel %vm1365, %v3677, %v3707
    %v3709 = vsel %vm1353, %v3679, %v3678
    %v3710 = vsel %vm1355, %v3680, %v3709
    %v3711 = vsel %vm1357, %v3681, %v3710
    %v3712 = vsel %vm1359, %v3682, %v3711
    %v3713 = vsel %vm1361, %v3683, %v3712
    %v3714 = vsel %vm1363, %v3684, %v3713
    %v3715 = vsel %vm1365, %v3685, %v3714
    %v3716 = vsel %vm1353, %v3687, %v3686
    %v3717 = vsel %vm1355, %v3688, %v3716
    %v3718 = vsel %vm1357, %v3689, %v3717
    %v3719 = vsel %vm1359, %v3690, %v3718
    %v3720 = vsel %vm1361, %v3691, %v3719
    %v3721 = vsel %vm1363, %v3692, %v3720
    %v3722 = vsel %vm1365, %v3693, %v3721
    %v3723 = vsel %vm1353, %v3695, %v3694
    %v3724 = vsel %vm1355, %v3696, %v3723
    %v3725 = vsel %vm1357, %v3697, %v3724
    %v3726 = vsel %vm1359, %v3698, %v3725
    %v3727 = vsel %vm1361, %v3699, %v3726
    %v3728 = vsel %vm1363, %v3700, %v3727
    %v3729 = vsel %vm1365, %v3701, %v3728
    %v3734 = vperm.slane %v3544, 1
    %v3735 = vperm.slane %v3616, 1
    %v3736 = vperm.slane %v3617, 1
    %v3737 = vperm.slane %v3618, 1
    %v3738 = vperm.slane %v3548, 1
    %v3739 = vperm.slane %v3622, 1
    %v3740 = vperm.slane %v3623, 1
    %v3741 = vperm.slane %v3624, 1
    %v3742 = vperm.slane %v3552, 1
    %v3743 = vperm.slane %v3628, 1
    %v3744 = vperm.slane %v3629, 1
    %v3745 = vperm.slane %v3630, 1
    %v3746 = vperm.slane %v3556, 1
    %v3747 = vperm.slane %v3634, 1
    %v3748 = vperm.slane %v3635, 1
    %v3749 = vperm.slane %v3636, 1
    %v3750 = vperm.slane %v3562, 1
    %v3751 = vperm.slane %v3643, 1
    %v3752 = vperm.slane %v3644, 1
    %v3753 = vperm.slane %v3645, 1
    %v3754 = vperm.slane %v3566, 1
    %v3755 = vperm.slane %v3649, 1
    %v3756 = vperm.slane %v3650, 1
    %v3757 = vperm.slane %v3651, 1
    %v3758 = vperm.slane %v3570, 1
    %v3759 = vperm.slane %v3655, 1
    %v3760 = vperm.slane %v3656, 1
    %v3761 = vperm.slane %v3657, 1
    %v3762 = vperm.slane %v3574, 1
    %v3763 = vperm.slane %v3661, 1
    %v3764 = vperm.slane %v3662, 1
    %v3765 = vperm.slane %v3663, 1
    %v3766 = vsel %vm1353, %v3735, %v3734
    %v3767 = vsel %vm1355, %v3736, %v3766
    %v3768 = vsel %vm1357, %v3737, %v3767
    %v3769 = vsel %vm1359, %v3738, %v3768
    %v3770 = vsel %vm1361, %v3739, %v3769
    %v3771 = vsel %vm1363, %v3740, %v3770
    %v3772 = vsel %vm1365, %v3741, %v3771
    %v3773 = vsel %vm1353, %v3743, %v3742
    %v3774 = vsel %vm1355, %v3744, %v3773
    %v3775 = vsel %vm1357, %v3745, %v3774
    %v3776 = vsel %vm1359, %v3746, %v3775
    %v3777 = vsel %vm1361, %v3747, %v3776
    %v3778 = vsel %vm1363, %v3748, %v3777
    %v3779 = vsel %vm1365, %v3749, %v3778
    %v3780 = vsel %vm1353, %v3751, %v3750
    %v3781 = vsel %vm1355, %v3752, %v3780
    %v3782 = vsel %vm1357, %v3753, %v3781
    %v3783 = vsel %vm1359, %v3754, %v3782
    %v3784 = vsel %vm1361, %v3755, %v3783
    %v3785 = vsel %vm1363, %v3756, %v3784
    %v3786 = vsel %vm1365, %v3757, %v3785
    %v3787 = vsel %vm1353, %v3759, %v3758
    %v3788 = vsel %vm1355, %v3760, %v3787
    %v3789 = vsel %vm1357, %v3761, %v3788
    %v3790 = vsel %vm1359, %v3762, %v3789
    %v3791 = vsel %vm1361, %v3763, %v3790
    %v3792 = vsel %vm1363, %v3764, %v3791
    %v3793 = vsel %vm1365, %v3765, %v3792
    %3794 = vrot.lane.b32.xlu0 %v3772, 16
    %v3795 = vpop.permute.xlu0 %3794
    %3796 = vrot.lane.b32.xlu0 %v3779, 16
    %v3797 = vpop.permute.xlu0 %3796
    %3798 = vrot.lane.b32.xlu0 %v3786, 16
    %v3799 = vpop.permute.xlu0 %3798
    %3800 = vrot.lane.b32.xlu0 %v3793, 16
    %v3801 = vpop.permute.xlu0 %3800
    %v3806 = vperm.slane %v3545, 0
    %v3807 = vperm.slane %v3549, 0
    %v3808 = vperm.slane %v3553, 0
    %v3809 = vperm.slane %v3557, 0
    %v3810 = vperm.slane %v3563, 0
    %v3811 = vperm.slane %v3567, 0
    %v3812 = vperm.slane %v3571, 0
    %v3813 = vperm.slane %v3575, 0
    %v3814 = vsel %vm1353, %v3672, %v3671
    %v3815 = vsel %vm1355, %v3673, %v3814
    %v3816 = vsel %vm1357, %v3806, %v3815
    %v3817 = vsel %vm1359, %v3675, %v3816
    %v3818 = vsel %vm1361, %v3676, %v3817
    %v3819 = vsel %vm1363, %v3677, %v3818
    %v3820 = vsel %vm1365, %v3807, %v3819
    %v3821 = vsel %vm1353, %v3680, %v3679
    %v3822 = vsel %vm1355, %v3681, %v3821
    %v3823 = vsel %vm1357, %v3808, %v3822
    %v3824 = vsel %vm1359, %v3683, %v3823
    %v3825 = vsel %vm1361, %v3684, %v3824
    %v3826 = vsel %vm1363, %v3685, %v3825
    %v3827 = vsel %vm1365, %v3809, %v3826
    %v3828 = vsel %vm1353, %v3688, %v3687
    %v3829 = vsel %vm1355, %v3689, %v3828
    %v3830 = vsel %vm1357, %v3810, %v3829
    %v3831 = vsel %vm1359, %v3691, %v3830
    %v3832 = vsel %vm1361, %v3692, %v3831
    %v3833 = vsel %vm1363, %v3693, %v3832
    %v3834 = vsel %vm1365, %v3811, %v3833
    %v3835 = vsel %vm1353, %v3696, %v3695
    %v3836 = vsel %vm1355, %v3697, %v3835
    %v3837 = vsel %vm1357, %v3812, %v3836
    %v3838 = vsel %vm1359, %v3699, %v3837
    %v3839 = vsel %vm1361, %v3700, %v3838
    %v3840 = vsel %vm1363, %v3701, %v3839
    %v3841 = vsel %vm1365, %v3813, %v3840
    %3842 = vrot.lane.b32.xlu0 %v3820, 32
    %v3843 = vpop.permute.xlu0 %3842
    %3844 = vrot.lane.b32.xlu0 %v3827, 32
    %v3845 = vpop.permute.xlu0 %3844
    %3846 = vrot.lane.b32.xlu0 %v3834, 32
    %v3847 = vpop.permute.xlu0 %3846
    %3848 = vrot.lane.b32.xlu0 %v3841, 32
    %v3849 = vpop.permute.xlu0 %3848
    %v3854 = vperm.slane %v3546, 0
    %v3855 = vperm.slane %v3619, 0
    %v3856 = vperm.slane %v3620, 0
    %v3857 = vperm.slane %v3621, 0
    %v3858 = vperm.slane %v3550, 0
    %v3859 = vperm.slane %v3625, 0
    %v3860 = vperm.slane %v3626, 0
    %v3861 = vperm.slane %v3627, 0
    %v3862 = vperm.slane %v3554, 0
    %v3863 = vperm.slane %v3631, 0
    %v3864 = vperm.slane %v3632, 0
    %v3865 = vperm.slane %v3633, 0
    %v3866 = vperm.slane %v3558, 0
    %v3867 = vperm.slane %v3637, 0
    %v3868 = vperm.slane %v3638, 0
    %v3869 = vperm.slane %v3639, 0
    %v3870 = vperm.slane %v3564, 0
    %v3871 = vperm.slane %v3646, 0
    %v3872 = vperm.slane %v3647, 0
    %v3873 = vperm.slane %v3648, 0
    %v3874 = vperm.slane %v3568, 0
    %v3875 = vperm.slane %v3652, 0
    %v3876 = vperm.slane %v3653, 0
    %v3877 = vperm.slane %v3654, 0
    %v3878 = vperm.slane %v3572, 0
    %v3879 = vperm.slane %v3658, 0
    %v3880 = vperm.slane %v3659, 0
    %v3881 = vperm.slane %v3660, 0
    %v3882 = vperm.slane %v3576, 0
    %v3883 = vperm.slane %v3664, 0
    %v3884 = vperm.slane %v3665, 0
    %v3885 = vperm.slane %v3666, 0
    %v3886 = vsel %vm1353, %v3855, %v3854
    %v3887 = vsel %vm1355, %v3856, %v3886
    %v3888 = vsel %vm1357, %v3857, %v3887
    %v3889 = vsel %vm1359, %v3858, %v3888
    %v3890 = vsel %vm1361, %v3859, %v3889
    %v3891 = vsel %vm1363, %v3860, %v3890
    %v3892 = vsel %vm1365, %v3861, %v3891
    %v3893 = vsel %vm1353, %v3863, %v3862
    %v3894 = vsel %vm1355, %v3864, %v3893
    %v3895 = vsel %vm1357, %v3865, %v3894
    %v3896 = vsel %vm1359, %v3866, %v3895
    %v3897 = vsel %vm1361, %v3867, %v3896
    %v3898 = vsel %vm1363, %v3868, %v3897
    %v3899 = vsel %vm1365, %v3869, %v3898
    %v3900 = vsel %vm1353, %v3871, %v3870
    %v3901 = vsel %vm1355, %v3872, %v3900
    %v3902 = vsel %vm1357, %v3873, %v3901
    %v3903 = vsel %vm1359, %v3874, %v3902
    %v3904 = vsel %vm1361, %v3875, %v3903
    %v3905 = vsel %vm1363, %v3876, %v3904
    %v3906 = vsel %vm1365, %v3877, %v3905
    %v3907 = vsel %vm1353, %v3879, %v3878
    %v3908 = vsel %vm1355, %v3880, %v3907
    %v3909 = vsel %vm1357, %v3881, %v3908
    %v3910 = vsel %vm1359, %v3882, %v3909
    %v3911 = vsel %vm1361, %v3883, %v3910
    %v3912 = vsel %vm1363, %v3884, %v3911
    %v3913 = vsel %vm1365, %v3885, %v3912
    %3914 = vrot.lane.b32.xlu0 %v3892, 48
    %v3915 = vpop.permute.xlu0 %3914
    %3916 = vrot.lane.b32.xlu0 %v3899, 48
    %v3917 = vpop.permute.xlu0 %3916
    %3918 = vrot.lane.b32.xlu0 %v3906, 48
    %v3919 = vpop.permute.xlu0 %3918
    %3920 = vrot.lane.b32.xlu0 %v3913, 48
    %v3921 = vpop.permute.xlu0 %3920
    %v3926 = vperm.slane %v3546, 1
    %v3927 = vperm.slane %v3619, 1
    %v3928 = vperm.slane %v3620, 1
    %v3929 = vperm.slane %v3621, 1
    %v3930 = vperm.slane %v3550, 1
    %v3931 = vperm.slane %v3625, 1
    %v3932 = vperm.slane %v3626, 1
    %v3933 = vperm.slane %v3627, 1
    %v3934 = vperm.slane %v3554, 1
    %v3935 = vperm.slane %v3631, 1
    %v3936 = vperm.slane %v3632, 1
    %v3937 = vperm.slane %v3633, 1
    %v3938 = vperm.slane %v3558, 1
    %v3939 = vperm.slane %v3637, 1
    %v3940 = vperm.slane %v3638, 1
    %v3941 = vperm.slane %v3639, 1
    %v3942 = vperm.slane %v3564, 1
    %v3943 = vperm.slane %v3646, 1
    %v3944 = vperm.slane %v3647, 1
    %v3945 = vperm.slane %v3648, 1
    %v3946 = vperm.slane %v3568, 1
    %v3947 = vperm.slane %v3652, 1
    %v3948 = vperm.slane %v3653, 1
    %v3949 = vperm.slane %v3654, 1
    %v3950 = vperm.slane %v3572, 1
    %v3951 = vperm.slane %v3658, 1
    %v3952 = vperm.slane %v3659, 1
    %v3953 = vperm.slane %v3660, 1
    %v3954 = vperm.slane %v3576, 1
    %v3955 = vperm.slane %v3664, 1
    %v3956 = vperm.slane %v3665, 1
    %v3957 = vperm.slane %v3666, 1
    %v3958 = vsel %vm1353, %v3927, %v3926
    %v3959 = vsel %vm1355, %v3928, %v3958
    %v3960 = vsel %vm1357, %v3929, %v3959
    %v3961 = vsel %vm1359, %v3930, %v3960
    %v3962 = vsel %vm1361, %v3931, %v3961
    %v3963 = vsel %vm1363, %v3932, %v3962
    %v3964 = vsel %vm1365, %v3933, %v3963
    %v3965 = vsel %vm1353, %v3935, %v3934
    %v3966 = vsel %vm1355, %v3936, %v3965
    %v3967 = vsel %vm1357, %v3937, %v3966
    %v3968 = vsel %vm1359, %v3938, %v3967
    %v3969 = vsel %vm1361, %v3939, %v3968
    %v3970 = vsel %vm1363, %v3940, %v3969
    %v3971 = vsel %vm1365, %v3941, %v3970
    %v3972 = vsel %vm1353, %v3943, %v3942
    %v3973 = vsel %vm1355, %v3944, %v3972
    %v3974 = vsel %vm1357, %v3945, %v3973
    %v3975 = vsel %vm1359, %v3946, %v3974
    %v3976 = vsel %vm1361, %v3947, %v3975
    %v3977 = vsel %vm1363, %v3948, %v3976
    %v3978 = vsel %vm1365, %v3949, %v3977
    %v3979 = vsel %vm1353, %v3951, %v3950
    %v3980 = vsel %vm1355, %v3952, %v3979
    %v3981 = vsel %vm1357, %v3953, %v3980
    %v3982 = vsel %vm1359, %v3954, %v3981
    %v3983 = vsel %vm1361, %v3955, %v3982
    %v3984 = vsel %vm1363, %v3956, %v3983
    %v3985 = vsel %vm1365, %v3957, %v3984
    %3986 = vrot.lane.b32.xlu0 %v3964, 64
    %v3987 = vpop.permute.xlu0 %3986
    %3988 = vrot.lane.b32.xlu0 %v3971, 64
    %v3989 = vpop.permute.xlu0 %3988
    %3990 = vrot.lane.b32.xlu0 %v3978, 64
    %v3991 = vpop.permute.xlu0 %3990
    %3992 = vrot.lane.b32.xlu0 %v3985, 64
    %v3993 = vpop.permute.xlu0 %3992
    %v3998 = vperm.slane %v3547, 0
    %v3999 = vperm.slane %v3551, 0
    %v4000 = vperm.slane %v3555, 0
    %v4001 = vperm.slane %v3559, 0
    %v4002 = vperm.slane %v3565, 0
    %v4003 = vperm.slane %v3569, 0
    %v4004 = vperm.slane %v3573, 0
    %v4005 = vperm.slane %v3577, 0
    %v4006 = vsel %vm1353, %v3856, %v3855
    %v4007 = vsel %vm1355, %v3857, %v4006
    %v4008 = vsel %vm1357, %v3998, %v4007
    %v4009 = vsel %vm1359, %v3859, %v4008
    %v4010 = vsel %vm1361, %v3860, %v4009
    %v4011 = vsel %vm1363, %v3861, %v4010
    %v4012 = vsel %vm1365, %v3999, %v4011
    %v4013 = vsel %vm1353, %v3864, %v3863
    %v4014 = vsel %vm1355, %v3865, %v4013
    %v4015 = vsel %vm1357, %v4000, %v4014
    %v4016 = vsel %vm1359, %v3867, %v4015
    %v4017 = vsel %vm1361, %v3868, %v4016
    %v4018 = vsel %vm1363, %v3869, %v4017
    %v4019 = vsel %vm1365, %v4001, %v4018
    %v4020 = vsel %vm1353, %v3872, %v3871
    %v4021 = vsel %vm1355, %v3873, %v4020
    %v4022 = vsel %vm1357, %v4002, %v4021
    %v4023 = vsel %vm1359, %v3875, %v4022
    %v4024 = vsel %vm1361, %v3876, %v4023
    %v4025 = vsel %vm1363, %v3877, %v4024
    %v4026 = vsel %vm1365, %v4003, %v4025
    %v4027 = vsel %vm1353, %v3880, %v3879
    %v4028 = vsel %vm1355, %v3881, %v4027
    %v4029 = vsel %vm1357, %v4004, %v4028
    %v4030 = vsel %vm1359, %v3883, %v4029
    %v4031 = vsel %vm1361, %v3884, %v4030
    %v4032 = vsel %vm1363, %v3885, %v4031
    %v4033 = vsel %vm1365, %v4005, %v4032
    %4034 = vrot.lane.b32.xlu0 %v4012, 80
    %v4035 = vpop.permute.xlu0 %4034
    %4036 = vrot.lane.b32.xlu0 %v4019, 80
    %v4037 = vpop.permute.xlu0 %4036
    %4038 = vrot.lane.b32.xlu0 %v4026, 80
    %v4039 = vpop.permute.xlu0 %4038
    %4040 = vrot.lane.b32.xlu0 %v4033, 80
    %v4041 = vpop.permute.xlu0 %4040
    %v4046 = vperm.slane %v3560, 0
    %v4047 = vperm.slane %v3640, 0
    %v4048 = vperm.slane %v3641, 0
    %v4049 = vperm.slane %v3642, 0
    %v4050 = vperm.slane %v3578, 0
    %v4051 = vperm.slane %v3667, 0
    %v4052 = vperm.slane %v3668, 0
    %v4053 = vperm.slane %v3669, 0
    %v4054 = vsel %vm1353, %v3675, %v3674
    %v4055 = vsel %vm1355, %v3676, %v4054
    %v4056 = vsel %vm1357, %v3677, %v4055
    %v4057 = vsel %vm1359, %v3678, %v4056
    %v4058 = vsel %vm1361, %v3679, %v4057
    %v4059 = vsel %vm1363, %v3680, %v4058
    %v4060 = vsel %vm1365, %v3681, %v4059
    %v4061 = vsel %vm1353, %v3683, %v3682
    %v4062 = vsel %vm1355, %v3684, %v4061
    %v4063 = vsel %vm1357, %v3685, %v4062
    %v4064 = vsel %vm1359, %v4046, %v4063
    %v4065 = vsel %vm1361, %v4047, %v4064
    %v4066 = vsel %vm1363, %v4048, %v4065
    %v4067 = vsel %vm1365, %v4049, %v4066
    %v4068 = vsel %vm1353, %v3691, %v3690
    %v4069 = vsel %vm1355, %v3692, %v4068
    %v4070 = vsel %vm1357, %v3693, %v4069
    %v4071 = vsel %vm1359, %v3694, %v4070
    %v4072 = vsel %vm1361, %v3695, %v4071
    %v4073 = vsel %vm1363, %v3696, %v4072
    %v4074 = vsel %vm1365, %v3697, %v4073
    %v4075 = vsel %vm1353, %v3699, %v3698
    %v4076 = vsel %vm1355, %v3700, %v4075
    %v4077 = vsel %vm1357, %v3701, %v4076
    %v4078 = vsel %vm1359, %v4050, %v4077
    %v4079 = vsel %vm1361, %v4051, %v4078
    %v4080 = vsel %vm1363, %v4052, %v4079
    %v4081 = vsel %vm1365, %v4053, %v4080
    %4082 = vrot.lane.b32.xlu0 %v4060, 96
    %v4083 = vpop.permute.xlu0 %4082
    %4084 = vrot.lane.b32.xlu0 %v4067, 96
    %v4085 = vpop.permute.xlu0 %4084
    %4086 = vrot.lane.b32.xlu0 %v4074, 96
    %v4087 = vpop.permute.xlu0 %4086
    %4088 = vrot.lane.b32.xlu0 %v4081, 96
    %v4089 = vpop.permute.xlu0 %4088
    %v4094 = vperm.slane %v3560, 1
    %v4095 = vperm.slane %v3640, 1
    %v4096 = vperm.slane %v3641, 1
    %v4097 = vperm.slane %v3642, 1
    %v4098 = vperm.slane %v3578, 1
    %v4099 = vperm.slane %v3667, 1
    %v4100 = vperm.slane %v3668, 1
    %v4101 = vperm.slane %v3669, 1
    %v4102 = vsel %vm1353, %v3739, %v3738
    %v4103 = vsel %vm1355, %v3740, %v4102
    %v4104 = vsel %vm1357, %v3741, %v4103
    %v4105 = vsel %vm1359, %v3742, %v4104
    %v4106 = vsel %vm1361, %v3743, %v4105
    %v4107 = vsel %vm1363, %v3744, %v4106
    %v4108 = vsel %vm1365, %v3745, %v4107
    %v4109 = vsel %vm1353, %v3747, %v3746
    %v4110 = vsel %vm1355, %v3748, %v4109
    %v4111 = vsel %vm1357, %v3749, %v4110
    %v4112 = vsel %vm1359, %v4094, %v4111
    %v4113 = vsel %vm1361, %v4095, %v4112
    %v4114 = vsel %vm1363, %v4096, %v4113
    %v4115 = vsel %vm1365, %v4097, %v4114
    %v4116 = vsel %vm1353, %v3755, %v3754
    %v4117 = vsel %vm1355, %v3756, %v4116
    %v4118 = vsel %vm1357, %v3757, %v4117
    %v4119 = vsel %vm1359, %v3758, %v4118
    %v4120 = vsel %vm1361, %v3759, %v4119
    %v4121 = vsel %vm1363, %v3760, %v4120
    %v4122 = vsel %vm1365, %v3761, %v4121
    %v4123 = vsel %vm1353, %v3763, %v3762
    %v4124 = vsel %vm1355, %v3764, %v4123
    %v4125 = vsel %vm1357, %v3765, %v4124
    %v4126 = vsel %vm1359, %v4098, %v4125
    %v4127 = vsel %vm1361, %v4099, %v4126
    %v4128 = vsel %vm1363, %v4100, %v4127
    %v4129 = vsel %vm1365, %v4101, %v4128
    %4130 = vrot.lane.b32.xlu0 %v4108, 112
    %v4131 = vpop.permute.xlu0 %4130
    %4132 = vrot.lane.b32.xlu0 %v4115, 112
    %v4133 = vpop.permute.xlu0 %4132
    %4134 = vrot.lane.b32.xlu0 %v4122, 112
    %v4135 = vpop.permute.xlu0 %4134
    %4136 = vrot.lane.b32.xlu0 %v4129, 112
    %v4137 = vpop.permute.xlu0 %4136
    %v4142 = vperm.slane %v3561, 0
    %v4143 = vperm.slane %v3579, 0
    %v4144 = vsel %vm1353, %v3676, %v3675
    %v4145 = vsel %vm1355, %v3677, %v4144
    %v4146 = vsel %vm1357, %v3807, %v4145
    %v4147 = vsel %vm1359, %v3679, %v4146
    %v4148 = vsel %vm1361, %v3680, %v4147
    %v4149 = vsel %vm1363, %v3681, %v4148
    %v4150 = vsel %vm1365, %v3808, %v4149
    %v4151 = vsel %vm1353, %v3684, %v3683
    %v4152 = vsel %vm1355, %v3685, %v4151
    %v4153 = vsel %vm1357, %v3809, %v4152
    %v4154 = vsel %vm1359, %v4047, %v4153
    %v4155 = vsel %vm1361, %v4048, %v4154
    %v4156 = vsel %vm1363, %v4049, %v4155
    %v4157 = vsel %vm1365, %v4142, %v4156
    %v4158 = vsel %vm1353, %v3692, %v3691
    %v4159 = vsel %vm1355, %v3693, %v4158
    %v4160 = vsel %vm1357, %v3811, %v4159
    %v4161 = vsel %vm1359, %v3695, %v4160
    %v4162 = vsel %vm1361, %v3696, %v4161
    %v4163 = vsel %vm1363, %v3697, %v4162
    %v4164 = vsel %vm1365, %v3812, %v4163
    %v4165 = vsel %vm1353, %v3700, %v3699
    %v4166 = vsel %vm1355, %v3701, %v4165
    %v4167 = vsel %vm1357, %v3813, %v4166
    %v4168 = vsel %vm1359, %v4051, %v4167
    %v4169 = vsel %vm1361, %v4052, %v4168
    %v4170 = vsel %vm1363, %v4053, %v4169
    %v4171 = vsel %vm1365, %v4143, %v4170
    %v4172 = vsel %vm2974, %v3708, %v3795
    %v4173 = vsel %vm2974, %v3715, %v3797
    %v4174 = vsel %vm2974, %v3722, %v3799
    %v4175 = vsel %vm2974, %v3729, %v3801
    %v4176 = vsel %vm3042, %v4172, %v3843
    %v4177 = vsel %vm3042, %v4173, %v3845
    %v4178 = vsel %vm3042, %v4174, %v3847
    %v4179 = vsel %vm3042, %v4175, %v3849
    %vm4180 = vcmask 392192
    %v4181 = vsel %vm4180, %v4176, %v3915
    %v4182 = vsel %vm4180, %v4177, %v3917
    %v4183 = vsel %vm4180, %v4178, %v3919
    %v4184 = vsel %vm4180, %v4179, %v3921
    %vm4185 = vcmask 523264
    %v4186 = vsel %vm4185, %v4181, %v3987
    %v4187 = vsel %vm4185, %v4182, %v3989
    %v4188 = vsel %vm4185, %v4183, %v3991
    %v4189 = vsel %vm4185, %v4184, %v3993
    %vm4190 = vcmask 654336
    %v4191 = vsel %vm4190, %v4186, %v4035
    %v4192 = vsel %vm4190, %v4187, %v4037
    %v4193 = vsel %vm4190, %v4188, %v4039
    %v4194 = vsel %vm4190, %v4189, %v4041
    %vm4195 = vcmask 785408
    %v4196 = vsel %vm4195, %v4191, %v4083
    %v4197 = vsel %vm4195, %v4192, %v4085
    %v4198 = vsel %vm4195, %v4193, %v4087
    %v4199 = vsel %vm4195, %v4194, %v4089
    %vm4200 = vcmask 916480
    %v4201 = vsel %vm4200, %v4196, %v4131
    %v4202 = vsel %vm4200, %v4197, %v4133
    %v4203 = vsel %vm4200, %v4198, %v4135
    %v4204 = vsel %vm4200, %v4199, %v4137
    %v4205 = vld [vmem:[#allocation9] sm:$0xff]
    %v4206 = vld [vmem:[#allocation9 + $0x8] sm:$0xff]
    %v4207 = vld [vmem:[#allocation9 + $0x10] sm:$0xff]
    %v4208 = vld [vmem:[#allocation9 + $0x18] sm:$0xff]
    %v4209 = vld [vmem:[#allocation9 + $0x20] sm:$0xff]
    %v4210 = vld [vmem:[#allocation9 + $0x28] sm:$0xff]
    %v4211 = vld [vmem:[#allocation9 + $0x30] sm:$0xff]
    %v4212 = vld [vmem:[#allocation9 + $0x38] sm:$0xff]
    %v4213 = vld [vmem:[#allocation9 + $0x40] sm:$0xff]
    %v4214 = vld [vmem:[#allocation9 + $0x48] sm:$0xff]
    %v4215 = vld [vmem:[#allocation9 + $0x50] sm:$0xff]
    %v4216 = vld [vmem:[#allocation9 + $0x58] sm:$0xff]
    %v4217 = vld [vmem:[#allocation9 + $0x60] sm:$0xff]
    %v4218 = vld [vmem:[#allocation9 + $0x68] sm:$0xff]
    %v4219 = vld [vmem:[#allocation9 + $0x70] sm:$0xff]
    %v4220 = vld [vmem:[#allocation9 + $0x78] sm:$0xff]
    %v4221 = vld [vmem:[#allocation9 + $0x80] sm:$0xff]
    %v4222 = vld [vmem:[#allocation9 + $0x88] sm:$0xff]
    %v4223 = vperm.slane %v3367, 1
    %v4224 = vsel %vm2974, %v4150, 0
    %v4226 = vsel %vm2974, %v4157, 0
    %v4228 = vsel %vm2974, %v4164, 0
    %v4230 = vsel %vm2974, %v4171, 0
    %4232 = vmatpush.msra.mxu0 %v4220
    %4233 = vmatpush.msra.mxu0 %v4219
    %4234 = vmatpush.msra.mxu0 %v4218
    %4235 = vmatpush.msra.mxu0 %v4217
    %4236 = vmatpush.msra.mxu0 %v4216
    %4237 = vmatpush.msra.mxu0 %v4215
    %4238 = vmatpush.msra.mxu0 %v4214
    %4239 = vmatpush.msra.mxu0 %v4213
    %4240 = vmatpush.msra.mxu0 %v4212
    %4241 = vmatpush.msra.mxu0 %v4211
    %4242 = vmatpush.msra.mxu0 %v4210
    %4243 = vmatpush.msra.mxu0 %v4209
    %4244 = vmatpush.msra.mxu0 %v4208
    %4245 = vmatpush.msra.mxu0 %v4207
    %4246 = vmatpush.msra.mxu0 %v4206
    %4247 = vmatpush.msra.mxu0 %v4205
    %4248 = vmatmul.f32.gmra.mxu0 %v4201
    %v4249 = vpop.f32.mrf.mxu0
    %v4250 = vadd.f32 %v4223, %v4249
    %4251 = vmatmul.f32.gmra.mxu0 %v4202
    %v4252 = vpop.f32.mrf.mxu0
    %v4253 = vadd.f32 %v4223, %v4252
    %4254 = vmatmul.f32.gmra.mxu0 %v4203
    %v4255 = vpop.f32.mrf.mxu0
    %v4256 = vadd.f32 %v4223, %v4255
    %4257 = vmatmul.f32.gmra.mxu0 %v4204
    %v4258 = vpop.f32.mrf.mxu0
    %v4259 = vadd.f32 %v4223, %v4258
    %4260 = vdwg.mxu0
    %4261 = vmatpush.msra.mxu0 0.0
    %4262 = vmatpush.msra.mxu0 0.0
    %4263 = vmatpush.msra.mxu0 0.0
    %4264 = vmatpush.msra.mxu0 0.0
    %4265 = vmatpush.msra.mxu0 0.0
    %4266 = vmatpush.msra.mxu0 0.0
    %4267 = vmatpush.msra.mxu0 0.0
    %4268 = vmatpush.msra.mxu0 0.0
    %4269 = vmatpush.msra.mxu0 0.0
    %4270 = vmatpush.msra.mxu0 0.0
    %4271 = vmatpush.msra.mxu0 0.0
    %4272 = vmatpush.msra.mxu0 0.0
    %4273 = vmatpush.msra.mxu0 0.0
    %4274 = vmatpush.msra.mxu0 0.0
    %4275 = vmatpush.msra.mxu0 %v4222
    %4276 = vmatpush.msra.mxu0 %v4221
    %4277 = vmatmul.f32.gmra.mxu0 %v4224
    %v4278 = vpop.f32.mrf.mxu0
    %v4279 = vadd.f32 %v4250, %v4278
    %4280 = vmatmul.f32.gmra.mxu0 %v4226
    %v4281 = vpop.f32.mrf.mxu0
    %v4282 = vadd.f32 %v4253, %v4281
    %4283 = vmatmul.f32.gmra.mxu0 %v4228
    %v4284 = vpop.f32.mrf.mxu0
    %v4285 = vadd.f32 %v4256, %v4284
    %4286 = vmatmul.f32.gmra.mxu0 %v4230
    %v4287 = vpop.f32.mrf.mxu0
    %v4288 = vadd.f32 %v4259, %v4287
    %4289 = vdwg.mxu0
    %v4290 = vperm.slane %v3367, 2
    %v4291 = vmul.f32 %v4279, %v4290
    %v4292 = vmul.f32 %v4282, %v4290
    %v4293 = vmul.f32 %v4285, %v4290
    %v4294 = vmul.f32 %v4288, %v4290
    %v4295 = vperm.slane %v3367, 3
    %v4296 = vadd.f32 %v4291, %v4295
    %v4297 = vadd.f32 %v4292, %v4295
    %v4298 = vadd.f32 %v4293, %v4295
    %v4299 = vadd.f32 %v4294, %v4295
    %v4300 = vmax.f32 %v4296, 0.0
    %v4301 = vmax.f32 %v4297, 0.0
    %v4302 = vmax.f32 %v4298, 0.0
    %v4303 = vmax.f32 %v4299, 0.0
    %v4304 = vld [vmem:[#allocation11] sm:$0xff]
    %v4305 = vld [vmem:[#allocation11 + $0x8] sm:$0xff]
    %v4306 = vperm.slane %v3367, 4
    %v4308 = vsel %vm2974, %v4300, 0
    %v4311 = vsel %vm2974, %v4301, 0
    %v4314 = vsel %vm2974, %v4302, 0
    %v4317 = vsel %vm2974, %v4303, 0
    %4319 = vmatpush.msra.mxu0 0.0
    %4320 = vmatpush.msra.mxu0 0.0
    %4321 = vmatpush.msra.mxu0 0.0
    %4322 = vmatpush.msra.mxu0 0.0
    %4323 = vmatpush.msra.mxu0 0.0
    %4324 = vmatpush.msra.mxu0 0.0
    %4325 = vmatpush.msra.mxu0 0.0
    %4326 = vmatpush.msra.mxu0 0.0
    %4327 = vmatpush.msra.mxu0 0.0
    %4328 = vmatpush.msra.mxu0 0.0
    %4329 = vmatpush.msra.mxu0 0.0
    %4330 = vmatpush.msra.mxu0 0.0
    %4331 = vmatpush.msra.mxu0 0.0
    %4332 = vmatpush.msra.mxu0 0.0
    %4333 = vmatpush.msra.mxu0 %v4305
    %4334 = vmatpush.msra.mxu0 %v4304
    %4335 = vmatmul.f32.gmra.mxu0 %v4308
    %v4336 = vpop.f32.mrf.mxu0
    %v4337 = vadd.f32 %v4306, %v4336
    %4338 = vmatmul.f32.gmra.mxu0 %v4311
    %v4339 = vpop.f32.mrf.mxu0
    %v4340 = vadd.f32 %v4306, %v4339
    %4341 = vmatmul.f32.gmra.mxu0 %v4314
    %v4342 = vpop.f32.mrf.mxu0
    %v4343 = vadd.f32 %v4306, %v4342
    %4344 = vmatmul.f32.gmra.mxu0 %v4317
    %v4345 = vpop.f32.mrf.mxu0
    %v4346 = vadd.f32 %v4306, %v4345
    %4347 = vdwg.mxu0
    %4348 = vst.msk [vmem:[#allocation18] sm:$0xff] %vm2974, %v4337
    %4349 = vst.msk [vmem:[#allocation18 + $0x8] sm:$0xff] %vm2974, %v4340
    %4350 = vst.msk [vmem:[#allocation18 + $0x10] sm:$0xff] %vm2974, %v4343
    %4351 = vst.msk [vmem:[#allocation18 + $0x18] sm:$0xff] %vm2974, %v4346
    %v4352 = vld [vmem:[%s12] sm:$0x1f]
    %v4353 = vld [vmem:[#allocation12] sm:$0xff]
    %v4354 = vld [vmem:[#allocation12 + $0x8] sm:$0xff]
    %v4355 = vperm.slane %v4352, 0
    %v4357 = vsel %vm2974, %v4337, 0
    %v4360 = vsel %vm2974, %v4340, 0
    %v4363 = vsel %vm2974, %v4343, 0
    %v4366 = vsel %vm2974, %v4346, 0
    %4368 = vmatpush.msra.mxu0 0.0
    %4369 = vmatpush.msra.mxu0 0.0
    %4370 = vmatpush.msra.mxu0 0.0
    %4371 = vmatpush.msra.mxu0 0.0
    %4372 = vmatpush.msra.mxu0 0.0
    %4373 = vmatpush.msra.mxu0 0.0
    %4374 = vmatpush.msra.mxu0 0.0
    %4375 = vmatpush.msra.mxu0 0.0
    %4376 = vmatpush.msra.mxu0 0.0
    %4377 = vmatpush.msra.mxu0 0.0
    %4378 = vmatpush.msra.mxu0 0.0
    %4379 = vmatpush.msra.mxu0 0.0
    %4380 = vmatpush.msra.mxu0 0.0
    %4381 = vmatpush.msra.mxu0 0.0
    %4382 = vmatpush.msra.mxu0 %v4354
    %4383 = vmatpush.msra.mxu0 %v4353
    %4384 = vmatmul.f32.gmra.mxu0 %v4357
    %v4385 = vpop.f32.mrf.mxu0
    %v4386 = vadd.f32 %v4355, %v4385
    %4387 = vmatmul.f32.gmra.mxu0 %v4360
    %v4388 = vpop.f32.mrf.mxu0
    %v4389 = vadd.f32 %v4355, %v4388
    %4390 = vmatmul.f32.gmra.mxu0 %v4363
    %v4391 = vpop.f32.mrf.mxu0
    %v4392 = vadd.f32 %v4355, %v4391
    %4393 = vmatmul.f32.gmra.mxu0 %v4366
    %v4394 = vpop.f32.mrf.mxu0
    %v4395 = vadd.f32 %v4355, %v4394
    %4396 = vdwg.mxu0
    %vm4397 = vcmask 259072
    %4398 = vst.msk [vmem:[#allocation4] sm:$0x3f] %vm4397, 0.0
    %4399 = vst.msk [vmem:[#allocation4 + $0x8] sm:$0x3f] %vm4397, 0.0
    %4400 = vst.msk [vmem:[#allocation4 + $0x10] sm:$0x3f] %vm4397, 0.0
    %4401 = vst.msk [vmem:[#allocation4 + $0x18] sm:$0x3f] %vm4397, 0.0
    %4402 = vst.msk [vmem:[#allocation4 + $0x20] sm:$0x3f] %vm4397, 0.0
    %4403 = vst.msk [vmem:[#allocation4 + $0x28] sm:$0x3f] %vm4397, 0.0
    %4404 = vst.msk [vmem:[#allocation4 + $0x30] sm:$0x3f] %vm4397, 0.0
    %4405 = vst.msk [vmem:[#allocation4 + $0x38] sm:$0x3f] %vm4397, 0.0
    %4406 = vst.msk [vmem:[#allocation4 + $0x40] sm:$0x3f] %vm4397, 0.0
    %4407 = vst.msk [vmem:[#allocation4 + $0x48] sm:$0x3f] %vm4397, 0.0
    %4408 = vst.msk [vmem:[#allocation4 + $0x50] sm:$0x3f] %vm4397, 0.0
    %4409 = vst.msk [vmem:[#allocation4 + $0x58] sm:$0x3f] %vm4397, 0.0
    %v4414 = vrot.slane %v4386, 4
    %v4415 = vrot.slane %v4389, 4
    %v4416 = vrot.slane %v4392, 4
    %v4417 = vrot.slane %v4395, 4
    %s4422 = scalar_lea.vmem [#allocation4], 8
    %vm4423 = vcmask 257024
    %4424 = vst.msk [vmem:[%s4422 + $0x1] sm:$0xf] %vm4423, %v4386
    %4425 = vst.msk [vmem:[%s4422 + $0x9] sm:$0xf] %vm4423, %v4414
    %4426 = vst.msk [vmem:[%s4422 + $0x11] sm:$0xf] %vm4423, %v4389
    %4427 = vst.msk [vmem:[%s4422 + $0x19] sm:$0xf] %vm4423, %v4415
    %4428 = vst.msk [vmem:[%s4422 + $0x31] sm:$0xf] %vm4423, %v4392
    %4429 = vst.msk [vmem:[%s4422 + $0x39] sm:$0xf] %vm4423, %v4416
    %4430 = vst.msk [vmem:[%s4422 + $0x41] sm:$0xf] %vm4423, %v4395
    %4431 = vst.msk [vmem:[%s4422 + $0x49] sm:$0xf] %vm4423, %v4417
    %v4432 = vld [vmem:[#allocation4] sm:$0x3f]
    %v4433 = vld [vmem:[#allocation4 + $0x8] sm:$0x3f]
    %v4434 = vld [vmem:[#allocation4 + $0x10] sm:$0x3f]
    %v4435 = vld [vmem:[#allocation4 + $0x18] sm:$0x3f]
    %v4436 = vld [vmem:[#allocation4 + $0x20] sm:$0x3f]
    %v4437 = vld [vmem:[#allocation4 + $0x30] sm:$0x3f]
    %v4438 = vld [vmem:[#allocation4 + $0x38] sm:$0x3f]
    %v4439 = vld [vmem:[#allocation4 + $0x40] sm:$0x3f]
    %v4440 = vld [vmem:[#allocation4 + $0x48] sm:$0x3f]
    %v4441 = vld [vmem:[#allocation4 + $0x50] sm:$0x3f]
    %v4452 = vrot.slane %v4432, 2
    %v4453 = vrot.slane %v4432, 4
    %v4454 = vrot.slane %v4433, 2
    %v4455 = vrot.slane %v4433, 4
    %v4456 = vrot.slane %v4434, 2
    %v4457 = vrot.slane %v4434, 4
    %v4458 = vrot.slane %v4435, 2
    %v4459 = vrot.slane %v4435, 4
    %v4460 = vrot.slane %v4436, 2
    %v4461 = vrot.slane %v4436, 4
    %v4462 = vrot.slane %v4437, 2
    %v4463 = vrot.slane %v4437, 4
    %v4464 = vrot.slane %v4438, 2
    %v4465 = vrot.slane %v4438, 4
    %v4466 = vrot.slane %v4439, 2
    %v4467 = vrot.slane %v4439, 4
    %v4468 = vrot.slane %v4440, 2
    %v4469 = vrot.slane %v4440, 4
    %v4470 = vrot.slane %v4441, 2
    %v4471 = vrot.slane %v4441, 4
    %v4472 = vperm.slane %v4432, 0
    %v4473 = vperm.slane %v4452, 0
    %v4474 = vperm.slane %v4434, 0
    %v4475 = vperm.slane %v4456, 0
    %v4476 = vperm.slane %v4437, 0
    %v4477 = vperm.slane %v4462, 0
    %v4478 = vperm.slane %v4439, 0
    %v4479 = vperm.slane %v4466, 0
    %v4480 = vsel %vm1353, %v4473, %v4472
    %v4481 = vsel %vm1355, %v4474, %v4480
    %v4482 = vsel %vm1357, %v4475, %v4481
    %v4483 = vsel %vm1359, %v4476, %v4482
    %v4484 = vsel %vm1361, %v4477, %v4483
    %v4485 = vsel %vm1363, %v4478, %v4484
    %v4486 = vsel %vm1365, %v4479, %v4485
    %v4488 = vperm.slane %v4432, 1
    %v4489 = vperm.slane %v4452, 1
    %v4490 = vperm.slane %v4434, 1
    %v4491 = vperm.slane %v4456, 1
    %v4492 = vperm.slane %v4437, 1
    %v4493 = vperm.slane %v4462, 1
    %v4494 = vperm.slane %v4439, 1
    %v4495 = vperm.slane %v4466, 1
    %v4496 = vsel %vm1353, %v4489, %v4488
    %v4497 = vsel %vm1355, %v4490, %v4496
    %v4498 = vsel %vm1357, %v4491, %v4497
    %v4499 = vsel %vm1359, %v4492, %v4498
    %v4500 = vsel %vm1361, %v4493, %v4499
    %v4501 = vsel %vm1363, %v4494, %v4500
    %v4502 = vsel %vm1365, %v4495, %v4501
    %4503 = vrot.lane.b32.xlu0 %v4502, 32
    %v4504 = vpop.permute.xlu0 %4503
    %v4506 = vperm.slane %v4453, 0
    %v4507 = vperm.slane %v4457, 0
    %v4508 = vperm.slane %v4463, 0
    %v4509 = vperm.slane %v4467, 0
    %v4510 = vsel %vm1353, %v4506, %v4473
    %v4511 = vsel %vm1355, %v4475, %v4510
    %v4512 = vsel %vm1357, %v4507, %v4511
    %v4513 = vsel %vm1359, %v4477, %v4512
    %v4514 = vsel %vm1361, %v4508, %v4513
    %v4515 = vsel %vm1363, %v4479, %v4514
    %v4516 = vsel %vm1365, %v4509, %v4515
    %4517 = vrot.lane.b32.xlu0 %v4516, 64
    %v4518 = vpop.permute.xlu0 %4517
    %v4520 = vperm.slane %v4433, 0
    %v4521 = vperm.slane %v4454, 0
    %v4522 = vperm.slane %v4435, 0
    %v4523 = vperm.slane %v4458, 0
    %v4524 = vperm.slane %v4438, 0
    %v4525 = vperm.slane %v4464, 0
    %v4526 = vperm.slane %v4440, 0
    %v4527 = vperm.slane %v4468, 0
    %v4528 = vsel %vm1353, %v4521, %v4520
    %v4529 = vsel %vm1355, %v4522, %v4528
    %v4530 = vsel %vm1357, %v4523, %v4529
    %v4531 = vsel %vm1359, %v4524, %v4530
    %v4532 = vsel %vm1361, %v4525, %v4531
    %v4533 = vsel %vm1363, %v4526, %v4532
    %v4534 = vsel %vm1365, %v4527, %v4533
    %4535 = vrot.lane.b32.xlu0 %v4534, 96
    %v4536 = vpop.permute.xlu0 %4535
    %v4538 = vperm.slane %v4433, 1
    %v4539 = vperm.slane %v4454, 1
    %v4540 = vperm.slane %v4435, 1
    %v4541 = vperm.slane %v4458, 1
    %v4542 = vperm.slane %v4438, 1
    %v4543 = vperm.slane %v4464, 1
    %v4544 = vperm.slane %v4440, 1
    %v4545 = vperm.slane %v4468, 1
    %v4546 = vsel %vm1353, %v4539, %v4538
    %v4547 = vsel %vm1355, %v4540, %v4546
    %v4548 = vsel %vm1357, %v4541, %v4547
    %v4549 = vsel %vm1359, %v4542, %v4548
    %v4550 = vsel %vm1361, %v4543, %v4549
    %v4551 = vsel %vm1363, %v4544, %v4550
    %v4552 = vsel %vm1365, %v4545, %v4551
    %v4554 = vperm.slane %v4455, 0
    %v4555 = vperm.slane %v4459, 0
    %v4556 = vperm.slane %v4465, 0
    %v4557 = vperm.slane %v4469, 0
    %v4558 = vsel %vm1353, %v4554, %v4521
    %v4559 = vsel %vm1355, %v4523, %v4558
    %v4560 = vsel %vm1357, %v4555, %v4559
    %v4561 = vsel %vm1359, %v4525, %v4560
    %v4562 = vsel %vm1361, %v4556, %v4561
    %v4563 = vsel %vm1363, %v4527, %v4562
    %v4564 = vsel %vm1365, %v4557, %v4563
    %4565 = vrot.lane.b32.xlu0 %v4564, 32
    %v4566 = vpop.permute.xlu0 %4565
    %v4568 = vperm.slane %v4436, 0
    %v4569 = vperm.slane %v4460, 0
    %v4570 = vperm.slane %v4441, 0
    %v4571 = vperm.slane %v4470, 0
    %v4572 = vsel %vm1353, %v4475, %v4474
    %v4573 = vsel %vm1355, %v4568, %v4572
    %v4574 = vsel %vm1357, %v4569, %v4573
    %v4575 = vsel %vm1359, %v4478, %v4574
    %v4576 = vsel %vm1361, %v4479, %v4575
    %v4577 = vsel %vm1363, %v4570, %v4576
    %v4578 = vsel %vm1365, %v4571, %v4577
    %4579 = vrot.lane.b32.xlu0 %v4578, 64
    %v4580 = vpop.permute.xlu0 %4579
    %v4582 = vperm.slane %v4436, 1
    %v4583 = vperm.slane %v4460, 1
    %v4584 = vperm.slane %v4441, 1
    %v4585 = vperm.slane %v4470, 1
    %v4586 = vsel %vm1353, %v4491, %v4490
    %v4587 = vsel %vm1355, %v4582, %v4586
    %v4588 = vsel %vm1357, %v4583, %v4587
    %v4589 = vsel %vm1359, %v4494, %v4588
    %v4590 = vsel %vm1361, %v4495, %v4589
    %v4591 = vsel %vm1363, %v4584, %v4590
    %v4592 = vsel %vm1365, %v4585, %v4591
    %4593 = vrot.lane.b32.xlu0 %v4592, 96
    %v4594 = vpop.permute.xlu0 %4593
    %v4596 = vperm.slane %v4461, 0
    %v4597 = vperm.slane %v4471, 0
    %v4598 = vsel %vm1353, %v4507, %v4475
    %v4599 = vsel %vm1355, %v4569, %v4598
    %v4600 = vsel %vm1357, %v4596, %v4599
    %v4601 = vsel %vm1359, %v4479, %v4600
    %v4602 = vsel %vm1361, %v4509, %v4601
    %v4603 = vsel %vm1363, %v4571, %v4602
    %v4604 = vsel %vm1365, %v4597, %v4603
    %v4605 = vsel %vm3042, %v4486, %v4504
    %v4606 = vsel %vm4185, %v4605, %v4518
    %v4607 = vsel %vm4195, %v4606, %v4536
    %v4608 = vsel %vm3042, %v4552, %v4566
    %v4609 = vsel %vm4185, %v4608, %v4580
    %v4610 = vsel %vm4195, %v4609, %v4594
    %v4611 = vld [vmem:[#allocation14] sm:$0xff]
    %v4612 = vld [vmem:[#allocation14 + $0x8] sm:$0xff]
    %v4613 = vld [vmem:[#allocation14 + $0x10] sm:$0xff]
    %v4614 = vld [vmem:[#allocation14 + $0x18] sm:$0xff]
    %v4615 = vld [vmem:[#allocation14 + $0x20] sm:$0xff]
    %v4616 = vld [vmem:[#allocation14 + $0x28] sm:$0xff]
    %v4617 = vld [vmem:[#allocation14 + $0x30] sm:$0xff]
    %v4618 = vld [vmem:[#allocation14 + $0x38] sm:$0xff]
    %v4619 = vld [vmem:[#allocation14 + $0x40] sm:$0xff]
    %v4620 = vld [vmem:[#allocation14 + $0x48] sm:$0xff]
    %v4621 = vld [vmem:[#allocation14 + $0x50] sm:$0xff]
    %v4622 = vld [vmem:[#allocation14 + $0x58] sm:$0xff]
    %v4623 = vld [vmem:[#allocation14 + $0x60] sm:$0xff]
    %v4624 = vld [vmem:[#allocation14 + $0x68] sm:$0xff]
    %v4625 = vld [vmem:[#allocation14 + $0x70] sm:$0xff]
    %v4626 = vld [vmem:[#allocation14 + $0x78] sm:$0xff]
    %v4627 = vld [vmem:[#allocation14 + $0x80] sm:$0xff]
    %v4628 = vld [vmem:[#allocation14 + $0x88] sm:$0xff]
    %v4629 = vld [vmem:[#allocation14 + $0x90] sm:$0xff]
    %v4630 = vld [vmem:[#allocation14 + $0x98] sm:$0xff]
    %v4631 = vld [vmem:[#allocation14 + $0xa0] sm:$0xff]
    %v4632 = vld [vmem:[#allocation14 + $0xa8] sm:$0xff]
    %v4633 = vld [vmem:[#allocation14 + $0xb0] sm:$0xff]
    %v4634 = vld [vmem:[#allocation14 + $0xb8] sm:$0xff]
    %v4635 = vld [vmem:[#allocation14 + $0xc0] sm:$0xff]
    %v4636 = vld [vmem:[#allocation14 + $0xc8] sm:$0xff]
    %v4637 = vld [vmem:[#allocation14 + $0xd0] sm:$0xff]
    %v4638 = vld [vmem:[#allocation14 + $0xd8] sm:$0xff]
    %v4639 = vld [vmem:[#allocation14 + $0xe0] sm:$0xff]
    %v4640 = vld [vmem:[#allocation14 + $0xe8] sm:$0xff]
    %v4641 = vld [vmem:[#allocation14 + $0xf0] sm:$0xff]
    %v4642 = vld [vmem:[#allocation14 + $0xf8] sm:$0xff]
    %v4643 = vld [vmem:[#allocation14 + $0x100] sm:$0xff]
    %v4644 = vld [vmem:[#allocation14 + $0x108] sm:$0xff]
    %v4645 = vld [vmem:[#allocation14 + $0x110] sm:$0xff]
    %v4646 = vld [vmem:[#allocation14 + $0x118] sm:$0xff]
    %v4647 = vperm.slane %v4352, 1
    %v4648 = vsel %vm3042, %v4604, 0
    %4650 = vmatpush.msra.mxu0 %v4626
    %4651 = vmatpush.msra.mxu0 %v4625
    %4652 = vmatpush.msra.mxu0 %v4624
    %4653 = vmatpush.msra.mxu0 %v4623
    %4654 = vmatpush.msra.mxu0 %v4622
    %4655 = vmatpush.msra.mxu0 %v4621
    %4656 = vmatpush.msra.mxu0 %v4620
    %4657 = vmatpush.msra.mxu0 %v4619
    %4658 = vmatpush.msra.mxu0 %v4618
    %4659 = vmatpush.msra.mxu0 %v4617
    %4660 = vmatpush.msra.mxu0 %v4616
    %4661 = vmatpush.msra.mxu0 %v4615
    %4662 = vmatpush.msra.mxu0 %v4614
    %4663 = vmatpush.msra.mxu0 %v4613
    %4664 = vmatpush.msra.mxu0 %v4612
    %4665 = vmatpush.msra.mxu0 %v4611
    %4666 = vmatmul.f32.gmra.mxu0 %v4607
    %v4667 = vpop.f32.mrf.mxu0
    %v4668 = vadd.f32 %v4647, %v4667
    %4669 = vdwg.mxu0
    %4670 = vmatpush.msra.mxu0 %v4642
    %4671 = vmatpush.msra.mxu0 %v4641
    %4672 = vmatpush.msra.mxu0 %v4640
    %4673 = vmatpush.msra.mxu0 %v4639
    %4674 = vmatpush.msra.mxu0 %v4638
    %4675 = vmatpush.msra.mxu0 %v4637
    %4676 = vmatpush.msra.mxu0 %v4636
    %4677 = vmatpush.msra.mxu0 %v4635
    %4678 = vmatpush.msra.mxu0 %v4634
    %4679 = vmatpush.msra.mxu0 %v4633
    %4680 = vmatpush.msra.mxu0 %v4632
    %4681 = vmatpush.msra.mxu0 %v4631
    %4682 = vmatpush.msra.mxu0 %v4630
    %4683 = vmatpush.msra.mxu0 %v4629
    %4684 = vmatpush.msra.mxu0 %v4628
    %4685 = vmatpush.msra.mxu0 %v4627
    %4686 = vmatmul.f32.gmra.mxu0 %v4610
    %v4687 = vpop.f32.mrf.mxu0
    %v4688 = vadd.f32 %v4668, %v4687
    %4689 = vdwg.mxu0
    %4690 = vmatpush.msra.mxu0 0.0
    %4691 = vmatpush.msra.mxu0 0.0
    %4692 = vmatpush.msra.mxu0 0.0
    %4693 = vmatpush.msra.mxu0 0.0
    %4694 = vmatpush.msra.mxu0 0.0
    %4695 = vmatpush.msra.mxu0 0.0
    %4696 = vmatpush.msra.mxu0 0.0
    %4697 = vmatpush.msra.mxu0 0.0
    %4698 = vmatpush.msra.mxu0 0.0
    %4699 = vmatpush.msra.mxu0 0.0
    %4700 = vmatpush.msra.mxu0 0.0
    %4701 = vmatpush.msra.mxu0 0.0
    %4702 = vmatpush.msra.mxu0 %v4646
    %4703 = vmatpush.msra.mxu0 %v4645
    %4704 = vmatpush.msra.mxu0 %v4644
    %4705 = vmatpush.msra.mxu0 %v4643
    %4706 = vmatmul.f32.gmra.mxu0 %v4648
    %v4707 = vpop.f32.mrf.mxu0
    %v4708 = vadd.f32 %v4688, %v4707
    %4709 = vdwg.mxu0
    %v4710 = vperm.slane %v4352, 2
    %v4711 = vmul.f32 %v4708, %v4710
    %v4712 = vperm.slane %v4352, 3
    %v4713 = vadd.f32 %v4711, %v4712
    %v4714 = vmax.f32 %v4713, 0.0
    %v4715 = vld [vmem:[%s11] sm:$0xff]
    %v4716 = vld [vmem:[%s11 + $0x8] sm:$0xff]
    %v4717 = vld [vmem:[%s11 + $0x10] sm:$0xff]
    %v4718 = vld [vmem:[%s11 + $0x18] sm:$0xff]
    %v4719 = vperm.slane %v4352, 4
    %v4721 = vsel %vm3042, %v4714, 0
    %4723 = vmatpush.msra.mxu0 0.0
    %4724 = vmatpush.msra.mxu0 0.0
    %4725 = vmatpush.msra.mxu0 0.0
    %4726 = vmatpush.msra.mxu0 0.0
    %4727 = vmatpush.msra.mxu0 0.0
    %4728 = vmatpush.msra.mxu0 0.0
    %4729 = vmatpush.msra.mxu0 0.0
    %4730 = vmatpush.msra.mxu0 0.0
    %4731 = vmatpush.msra.mxu0 0.0
    %4732 = vmatpush.msra.mxu0 0.0
    %4733 = vmatpush.msra.mxu0 0.0
    %4734 = vmatpush.msra.mxu0 0.0
    %4735 = vmatpush.msra.mxu0 %v4718
    %4736 = vmatpush.msra.mxu0 %v4717
    %4737 = vmatpush.msra.mxu0 %v4716
    %4738 = vmatpush.msra.mxu0 %v4715
    %4739 = vmatmul.f32.gmra.mxu0 %v4721
    %v4740 = vpop.f32.mrf.mxu0
    %v4741 = vadd.f32 %v4719, %v4740
    %4742 = vdwg.mxu0
    %4743 = vst.msk [vmem:[#allocation19] sm:$0xff] %vm3042, %v4741
    %v4744 = vld [vmem:[%s16] sm:$0x1f]
    %v4745 = vld [vmem:[#allocation15] sm:$0xff]
    %v4746 = vld [vmem:[#allocation15 + $0x8] sm:$0xff]
    %v4747 = vld [vmem:[#allocation15 + $0x10] sm:$0xff]
    %v4748 = vld [vmem:[#allocation15 + $0x18] sm:$0xff]
    %v4749 = vperm.slane %v4744, 0
    %v4751 = vsel %vm3042, %v4741, 0
    %4753 = vmatpush.msra.mxu0 0.0
    %4754 = vmatpush.msra.mxu0 0.0
    %4755 = vmatpush.msra.mxu0 0.0
    %4756 = vmatpush.msra.mxu0 0.0
    %4757 = vmatpush.msra.mxu0 0.0
    %4758 = vmatpush.msra.mxu0 0.0
    %4759 = vmatpush.msra.mxu0 0.0
    %4760 = vmatpush.msra.mxu0 0.0
    %4761 = vmatpush.msra.mxu0 0.0
    %4762 = vmatpush.msra.mxu0 0.0
    %4763 = vmatpush.msra.mxu0 0.0
    %4764 = vmatpush.msra.mxu0 0.0
    %4765 = vmatpush.msra.mxu0 %v4748
    %4766 = vmatpush.msra.mxu0 %v4747
    %4767 = vmatpush.msra.mxu0 %v4746
    %4768 = vmatpush.msra.mxu0 %v4745
    %4769 = vmatmul.f32.gmra.mxu0 %v4751
    %v4770 = vpop.f32.mrf.mxu0
    %v4771 = vadd.f32 %v4749, %v4770
    %4772 = vdwg.mxu0
    %vm4773 = vcmask 519168
    %4774 = vst.msk [vmem:[#allocation5] sm:$0xf] %vm4773, 0.0
    %4775 = vst.msk [vmem:[#allocation5 + $0x4] sm:$0xf] %vm4773, 0.0
    %4776 = vst.msk [vmem:[#allocation5 + $0x8] sm:$0xf] %vm4773, 0.0
    %4777 = vst.msk [vmem:[#allocation5 + $0xc] sm:$0xf] %vm4773, 0.0
    %4778 = vst.msk [vmem:[#allocation5 + $0x10] sm:$0xf] %vm4773, 0.0
    %4779 = vst.msk [vmem:[#allocation5 + $0x14] sm:$0xf] %vm4773, 0.0
    %4780 = vst.msk [vmem:[#allocation5 + $0x18] sm:$0xf] %vm4773, 0.0
    %4781 = vst.msk [vmem:[#allocation5 + $0x1c] sm:$0xf] %vm4773, 0.0
    %v4783 = vrot.slane %v4771, 2
    %v4784 = vrot.slane %v4771, 4
    %v4785 = vrot.slane %v4771, 6
    %s4789 = scalar_lea.vmem [#allocation5], 4
    %vm4790 = vcmask 517120
    %4791 = vst.msk [vmem:[%s4789 + $0x1] sm:$0x3] %vm4790, %v4771
    %4792 = vst.msk [vmem:[%s4789 + $0x5] sm:$0x3] %vm4790, %v4783
    %4793 = vst.msk [vmem:[%s4789 + $0x11] sm:$0x3] %vm4790, %v4784
    %4794 = vst.msk [vmem:[%s4789 + $0x15] sm:$0x3] %vm4790, %v4785
    %v4795 = vld [vmem:[#allocation5] sm:$0xf]
    %v4796 = vld [vmem:[#allocation5 + $0x4] sm:$0xf]
    %v4797 = vld [vmem:[#allocation5 + $0x8] sm:$0xf]
    %v4798 = vld [vmem:[#allocation5 + $0x10] sm:$0xf]
    %v4799 = vld [vmem:[#allocation5 + $0x14] sm:$0xf]
    %v4800 = vld [vmem:[#allocation5 + $0x18] sm:$0xf]
    %v4807 = vrot.slane %v4795, 2
    %v4808 = vrot.slane %v4796, 2
    %v4809 = vrot.slane %v4797, 2
    %v4810 = vrot.slane %v4798, 2
    %v4811 = vrot.slane %v4799, 2
    %v4812 = vrot.slane %v4800, 2
    %v4813 = vperm.slane %v4795, 0
    %v4814 = vperm.slane %v4798, 0
    %v4815 = vsel %vm1353, %v4814, %v4813
    %v4817 = vperm.slane %v4795, 1
    %v4818 = vperm.slane %v4798, 1
    %v4819 = vsel %vm1353, %v4818, %v4817
    %4820 = vrot.lane.b32.xlu0 %v4819, 64
    %v4821 = vpop.permute.xlu0 %4820
    %v4823 = vperm.slane %v4807, 0
    %v4824 = vperm.slane %v4810, 0
    %v4825 = vsel %vm1353, %v4824, %v4823
    %v4827 = vperm.slane %v4796, 0
    %v4828 = vperm.slane %v4799, 0
    %v4829 = vsel %vm1353, %v4828, %v4827
    %4830 = vrot.lane.b32.xlu0 %v4829, 64
    %v4831 = vpop.permute.xlu0 %4830
    %v4833 = vperm.slane %v4796, 1
    %v4834 = vperm.slane %v4799, 1
    %v4835 = vsel %vm1353, %v4834, %v4833
    %v4837 = vperm.slane %v4808, 0
    %v4838 = vperm.slane %v4811, 0
    %v4839 = vsel %vm1353, %v4838, %v4837
    %4840 = vrot.lane.b32.xlu0 %v4839, 64
    %v4841 = vpop.permute.xlu0 %4840
    %v4843 = vperm.slane %v4797, 0
    %v4844 = vperm.slane %v4800, 0
    %v4845 = vsel %vm1353, %v4844, %v4843
    %v4847 = vperm.slane %v4797, 1
    %v4848 = vperm.slane %v4800, 1
    %v4849 = vsel %vm1353, %v4848, %v4847
    %4850 = vrot.lane.b32.xlu0 %v4849, 64
    %v4851 = vpop.permute.xlu0 %4850
    %v4853 = vperm.slane %v4809, 0
    %v4854 = vperm.slane %v4812, 0
    %v4855 = vsel %vm1353, %v4854, %v4853
    %v4856 = vsel %vm4185, %v4815, %v4821
    %v4857 = vsel %vm4185, %v4825, %v4831
    %v4858 = vsel %vm4185, %v4835, %v4841
    %v4859 = vsel %vm4185, %v4845, %v4851
    %v4860 = vld [vmem:[%s14] sm:$0xff]
    %v4861 = vld [vmem:[%s14 + $0x8] sm:$0xff]
    %v4862 = vld [vmem:[%s14 + $0x10] sm:$0xff]
    %v4863 = vld [vmem:[%s14 + $0x18] sm:$0xff]
    %v4864 = vld [vmem:[%s14 + $0x20] sm:$0xff]
    %v4865 = vld [vmem:[%s14 + $0x28] sm:$0xff]
    %v4866 = vld [vmem:[%s14 + $0x30] sm:$0xff]
    %v4867 = vld [vmem:[%s14 + $0x38] sm:$0xff]
    %v4868 = vld [vmem:[%s14 + $0x40] sm:$0xff]
    %v4869 = vld [vmem:[%s14 + $0x48] sm:$0xff]
    %v4870 = vld [vmem:[%s14 + $0x50] sm:$0xff]
    %v4871 = vld [vmem:[%s14 + $0x58] sm:$0xff]
    %v4872 = vld [vmem:[%s14 + $0x60] sm:$0xff]
    %v4873 = vld [vmem:[%s14 + $0x68] sm:$0xff]
    %v4874 = vld [vmem:[%s14 + $0x70] sm:$0xff]
    %v4875 = vld [vmem:[%s14 + $0x78] sm:$0xff]
    %v4876 = vld [vmem:[%s14 + $0x80] sm:$0xff]
    %v4877 = vld [vmem:[%s14 + $0x88] sm:$0xff]
    %v4878 = vld [vmem:[%s14 + $0x90] sm:$0xff]
    %v4879 = vld [vmem:[%s14 + $0x98] sm:$0xff]
    %v4880 = vld [vmem:[%s14 + $0xa0] sm:$0xff]
    %v4881 = vld [vmem:[%s14 + $0xa8] sm:$0xff]
    %v4882 = vld [vmem:[%s14 + $0xb0] sm:$0xff]
    %v4883 = vld [vmem:[%s14 + $0xb8] sm:$0xff]
    %v4884 = vld [vmem:[%s14 + $0xc0] sm:$0xff]
    %v4885 = vld [vmem:[%s14 + $0xc8] sm:$0xff]
    %v4886 = vld [vmem:[%s14 + $0xd0] sm:$0xff]
    %v4887 = vld [vmem:[%s14 + $0xd8] sm:$0xff]
    %v4888 = vld [vmem:[%s14 + $0xe0] sm:$0xff]
    %v4889 = vld [vmem:[%s14 + $0xe8] sm:$0xff]
    %v4890 = vld [vmem:[%s14 + $0xf0] sm:$0xff]
    %v4891 = vld [vmem:[%s14 + $0xf8] sm:$0xff]
    %v4892 = vld [vmem:[%s14 + $0x100] sm:$0xff]
    %v4893 = vld [vmem:[%s14 + $0x108] sm:$0xff]
    %v4894 = vld [vmem:[%s14 + $0x110] sm:$0xff]
    %v4895 = vld [vmem:[%s14 + $0x118] sm:$0xff]
    %v4896 = vld [vmem:[%s14 + $0x120] sm:$0xff]
    %v4897 = vld [vmem:[%s14 + $0x128] sm:$0xff]
    %v4898 = vld [vmem:[%s14 + $0x130] sm:$0xff]
    %v4899 = vld [vmem:[%s14 + $0x138] sm:$0xff]
    %v4900 = vld [vmem:[%s14 + $0x140] sm:$0xff]
    %v4901 = vld [vmem:[%s14 + $0x148] sm:$0xff]
    %v4902 = vld [vmem:[%s14 + $0x150] sm:$0xff]
    %v4903 = vld [vmem:[%s14 + $0x158] sm:$0xff]
    %v4904 = vld [vmem:[%s14 + $0x160] sm:$0xff]
    %v4905 = vld [vmem:[%s14 + $0x168] sm:$0xff]
    %v4906 = vld [vmem:[%s14 + $0x170] sm:$0xff]
    %v4907 = vld [vmem:[%s14 + $0x178] sm:$0xff]
    %v4908 = vld [vmem:[%s14 + $0x180] sm:$0xff]
    %v4909 = vld [vmem:[%s14 + $0x188] sm:$0xff]
    %v4910 = vld [vmem:[%s14 + $0x190] sm:$0xff]
    %v4911 = vld [vmem:[%s14 + $0x198] sm:$0xff]
    %v4912 = vld [vmem:[%s14 + $0x1a0] sm:$0xff]
    %v4913 = vld [vmem:[%s14 + $0x1a8] sm:$0xff]
    %v4914 = vld [vmem:[%s14 + $0x1b0] sm:$0xff]
    %v4915 = vld [vmem:[%s14 + $0x1b8] sm:$0xff]
    %v4916 = vld [vmem:[%s14 + $0x1c0] sm:$0xff]
    %v4917 = vld [vmem:[%s14 + $0x1c8] sm:$0xff]
    %v4918 = vld [vmem:[%s14 + $0x1d0] sm:$0xff]
    %v4919 = vld [vmem:[%s14 + $0x1d8] sm:$0xff]
    %v4920 = vld [vmem:[%s14 + $0x1e0] sm:$0xff]
    %v4921 = vld [vmem:[%s14 + $0x1e8] sm:$0xff]
    %v4922 = vld [vmem:[%s14 + $0x1f0] sm:$0xff]
    %v4923 = vld [vmem:[%s14 + $0x1f8] sm:$0xff]
    %v4924 = vld [vmem:[%s14 + $0x200] sm:$0xff]
    %v4925 = vld [vmem:[%s14 + $0x208] sm:$0xff]
    %v4926 = vld [vmem:[%s14 + $0x210] sm:$0xff]
    %v4927 = vld [vmem:[%s14 + $0x218] sm:$0xff]
    %v4928 = vld [vmem:[%s14 + $0x220] sm:$0xff]
    %v4929 = vld [vmem:[%s14 + $0x228] sm:$0xff]
    %v4930 = vld [vmem:[%s14 + $0x230] sm:$0xff]
    %v4931 = vld [vmem:[%s14 + $0x238] sm:$0xff]
    %v4932 = vperm.slane %v4744, 1
    %v4933 = vsel %vm4185, %v4855, 0
    %4935 = vmatpush.msra.mxu0 %v4875
    %4936 = vmatpush.msra.mxu0 %v4874
    %4937 = vmatpush.msra.mxu0 %v4873
    %4938 = vmatpush.msra.mxu0 %v4872
    %4939 = vmatpush.msra.mxu0 %v4871
    %4940 = vmatpush.msra.mxu0 %v4870
    %4941 = vmatpush.msra.mxu0 %v4869
    %4942 = vmatpush.msra.mxu0 %v4868
    %4943 = vmatpush.msra.mxu0 %v4867
    %4944 = vmatpush.msra.mxu0 %v4866
    %4945 = vmatpush.msra.mxu0 %v4865
    %4946 = vmatpush.msra.mxu0 %v4864
    %4947 = vmatpush.msra.mxu0 %v4863
    %4948 = vmatpush.msra.mxu0 %v4862
    %4949 = vmatpush.msra.mxu0 %v4861
    %4950 = vmatpush.msra.mxu0 %v4860
    %4951 = vmatmul.f32.gmra.mxu0 %v4856
    %v4952 = vpop.f32.mrf.mxu0
    %v4953 = vadd.f32 %v4932, %v4952
    %4954 = vdwg.mxu0
    %4955 = vmatpush.msra.mxu0 %v4891
    %4956 = vmatpush.msra.mxu0 %v4890
    %4957 = vmatpush.msra.mxu0 %v4889
    %4958 = vmatpush.msra.mxu0 %v4888
    %4959 = vmatpush.msra.mxu0 %v4887
    %4960 = vmatpush.msra.mxu0 %v4886
    %4961 = vmatpush.msra.mxu0 %v4885
    %4962 = vmatpush.msra.mxu0 %v4884
    %4963 = vmatpush.msra.mxu0 %v4883
    %4964 = vmatpush.msra.mxu0 %v4882
    %4965 = vmatpush.msra.mxu0 %v4881
    %4966 = vmatpush.msra.mxu0 %v4880
    %4967 = vmatpush.msra.mxu0 %v4879
    %4968 = vmatpush.msra.mxu0 %v4878
    %4969 = vmatpush.msra.mxu0 %v4877
    %4970 = vmatpush.msra.mxu0 %v4876
    %4971 = vmatmul.f32.gmra.mxu0 %v4857
    %v4972 = vpop.f32.mrf.mxu0
    %v4973 = vadd.f32 %v4953, %v4972
    %4974 = vdwg.mxu0
    %4975 = vmatpush.msra.mxu0 %v4907
    %4976 = vmatpush.msra.mxu0 %v4906
    %4977 = vmatpush.msra.mxu0 %v4905
    %4978 = vmatpush.msra.mxu0 %v4904
    %4979 = vmatpush.msra.mxu0 %v4903
    %4980 = vmatpush.msra.mxu0 %v4902
    %4981 = vmatpush.msra.mxu0 %v4901
    %4982 = vmatpush.msra.mxu0 %v4900
    %4983 = vmatpush.msra.mxu0 %v4899
    %4984 = vmatpush.msra.mxu0 %v4898
    %4985 = vmatpush.msra.mxu0 %v4897
    %4986 = vmatpush.msra.mxu0 %v4896
    %4987 = vmatpush.msra.mxu0 %v4895
    %4988 = vmatpush.msra.mxu0 %v4894
    %4989 = vmatpush.msra.mxu0 %v4893
    %4990 = vmatpush.msra.mxu0 %v4892
    %4991 = vmatmul.f32.gmra.mxu0 %v4858
    %v4992 = vpop.f32.mrf.mxu0
    %v4993 = vadd.f32 %v4973, %v4992
    %4994 = vdwg.mxu0
    %4995 = vmatpush.msra.mxu0 %v4923
    %4996 = vmatpush.msra.mxu0 %v4922
    %4997 = vmatpush.msra.mxu0 %v4921
    %4998 = vmatpush.msra.mxu0 %v4920
    %4999 = vmatpush.msra.mxu0 %v4919
    %5000 = vmatpush.msra.mxu0 %v4918
    %5001 = vmatpush.msra.mxu0 %v4917
    %5002 = vmatpush.msra.mxu0 %v4916
    %5003 = vmatpush.msra.mxu0 %v4915
    %5004 = vmatpush.msra.mxu0 %v4914
    %5005 = vmatpush.msra.mxu0 %v4913
    %5006 = vmatpush.msra.mxu0 %v4912
    %5007 = vmatpush.msra.mxu0 %v4911
    %5008 = vmatpush.msra.mxu0 %v4910
    %5009 = vmatpush.msra.mxu0 %v4909
    %5010 = vmatpush.msra.mxu0 %v4908
    %5011 = vmatmul.f32.gmra.mxu0 %v4859
    %v5012 = vpop.f32.mrf.mxu0
    %v5013 = vadd.f32 %v4993, %v5012
    %5014 = vdwg.mxu0
    %5015 = vmatpush.msra.mxu0 0.0
    %5016 = vmatpush.msra.mxu0 0.0
    %5017 = vmatpush.msra.mxu0 0.0
    %5018 = vmatpush.msra.mxu0 0.0
    %5019 = vmatpush.msra.mxu0 0.0
    %5020 = vmatpush.msra.mxu0 0.0
    %5021 = vmatpush.msra.mxu0 0.0
    %5022 = vmatpush.msra.mxu0 0.0
    %5023 = vmatpush.msra.mxu0 %v4931
    %5024 = vmatpush.msra.mxu0 %v4930
    %5025 = vmatpush.msra.mxu0 %v4929
    %5026 = vmatpush.msra.mxu0 %v4928
    %5027 = vmatpush.msra.mxu0 %v4927
    %5028 = vmatpush.msra.mxu0 %v4926
    %5029 = vmatpush.msra.mxu0 %v4925
    %5030 = vmatpush.msra.mxu0 %v4924
    %5031 = vmatmul.f32.gmra.mxu0 %v4933
    %v5032 = vpop.f32.mrf.mxu0
    %v5033 = vadd.f32 %v5013, %v5032
    %5034 = vdwg.mxu0
    %v5035 = vperm.slane %v4744, 2
    %v5036 = vmul.f32 %v5033, %v5035
    %v5037 = vperm.slane %v4744, 3
    %v5038 = vadd.f32 %v5036, %v5037
    %v5039 = vmax.f32 %v5038, 0.0
    %v5040 = vld [vmem:[#allocation17] sm:$0xff]
    %v5041 = vld [vmem:[#allocation17 + $0x8] sm:$0xff]
    %v5042 = vld [vmem:[#allocation17 + $0x10] sm:$0xff]
    %v5043 = vld [vmem:[#allocation17 + $0x18] sm:$0xff]
    %v5044 = vld [vmem:[#allocation17 + $0x20] sm:$0xff]
    %v5045 = vld [vmem:[#allocation17 + $0x28] sm:$0xff]
    %v5046 = vld [vmem:[#allocation17 + $0x30] sm:$0xff]
    %v5047 = vld [vmem:[#allocation17 + $0x38] sm:$0xff]
    %v5048 = vperm.slane %v4744, 4
    %v5050 = vsel %vm4185, %v5039, 0
    %5052 = vmatpush.msra.mxu0 0.0
    %5053 = vmatpush.msra.mxu0 0.0
    %5054 = vmatpush.msra.mxu0 0.0
    %5055 = vmatpush.msra.mxu0 0.0
    %5056 = vmatpush.msra.mxu0 0.0
    %5057 = vmatpush.msra.mxu0 0.0
    %5058 = vmatpush.msra.mxu0 0.0
    %5059 = vmatpush.msra.mxu0 0.0
    %5060 = vmatpush.msra.mxu0 %v5047
    %5061 = vmatpush.msra.mxu0 %v5046
    %5062 = vmatpush.msra.mxu0 %v5045
    %5063 = vmatpush.msra.mxu0 %v5044
    %5064 = vmatpush.msra.mxu0 %v5043
    %5065 = vmatpush.msra.mxu0 %v5042
    %5066 = vmatpush.msra.mxu0 %v5041
    %5067 = vmatpush.msra.mxu0 %v5040
    %5068 = vmatmul.f32.gmra.mxu0 %v5050
    %v5069 = vpop.f32.mrf.mxu0
    %v5070 = vadd.f32 %v5048, %v5069
    %5071 = vdwg.mxu0
    %5072 = vst.msk [vmem:[#allocation21] sm:$0x3] %vm4790, %v5070
    // Predicated region
    $region98: #{depthnet_forward.1} parent=1 // pred_check
      _
    $region99: #{depthnet_forward.1} parent=1 // pred_check_branch
      %5074 = sbr.rel (0) target = $region101
    $region100: #{depthnet_forward.1} parent=1 // pred_region
      _
    $region101: #{depthnet_forward.1} parent=1 // pred_fallthru
      _
    // Predicated region
    $region102: #{depthnet_forward.1} parent=1 // pred_check
      _
    $region103: #{depthnet_forward.1} parent=1 // pred_check_branch
      %5076 = sbr.rel (0) target = $region105
    $region104: #{depthnet_forward.1} parent=1 // pred_region
      %5078 = vsyncadd [#allocation8], 0
      %s5079 = sshll.u32 [#allocation18], 4
      %s5080 = int_to_ptr.vmem [resolvable:$true] %s5079
      %s5081 = sshll.u32 %s18, 4
      %s5082 = int_to_ptr.hbm [resolvable:$true] %s5081
      %5087 = dma.vmem_to_hbm [thread:$0]  %s5080, 512, %s5082, [#allocation8], 128, 128, 8
    $region105: #{depthnet_forward.1} parent=1 // pred_fallthru
      _
    // Predicated region
    $region106: #{depthnet_forward.1} parent=1 // pred_check
      _
    $region107: #{depthnet_forward.1} parent=1 // pred_check_branch
      %5089 = sbr.rel (0) target = $region109
    $region108: #{depthnet_forward.1} parent=1 // pred_region
      %5091 = vsyncadd [#allocation20], 0
      %s5093 = sshll.u32 [#allocation19], 4
      %s5094 = int_to_ptr.vmem [resolvable:$true] %s5093
      %s5095 = sshll.u32 %s19, 4
      %s5096 = int_to_ptr.hbm [resolvable:$true] %s5095
      %5098 = dma.vmem_to_hbm [thread:$0]  %s5094, 128, %s5096, [#allocation20]
    $region109: #{depthnet_forward.1} parent=1 // pred_fallthru
      _
    // Predicated region
    $region110: #{depthnet_forward.1} parent=1 // pred_check
      _
    $region111: #{depthnet_forward.1} parent=1 // pred_check_branch
      %5100 = sbr.rel (0) target = $region113
    $region112: #{depthnet_forward.1} parent=1 // pred_region
      %5102 = vsyncadd [#allocation20], 0
      %s5104 = sshll.u32 [#allocation21], 4
      %s5105 = int_to_ptr.vmem [resolvable:$true] %s5104
      %s5106 = sshll.u32 %s20, 4
      %s5107 = int_to_ptr.hbm [resolvable:$true] %s5106
      %5109 = dma.vmem_to_hbm [thread:$0]  %s5105, 32, %s5107, [#allocation20]
    $region113: #{depthnet_forward.1} parent=1 // pred_fallthru
      _
    // Predicated region
    $region114: #{depthnet_forward.1} parent=1 // pred_check
      _
    $region115: #{depthnet_forward.1} parent=1 // pred_check_branch
      %5111 = sbr.rel (0) target = $region117
    $region116: #{depthnet_forward.1} parent=1 // pred_region
      _
    $region117: #{depthnet_forward.1} parent=1 // pred_fallthru
      _
    // Predicated region
    $region118: #{depthnet_forward.1} parent=1 // pred_check
      _
    $region119: #{depthnet_forward.1} parent=1 // pred_check_branch
      %5113 = sbr.rel (0) target = $region121
    $region120: #{depthnet_forward.1} parent=1 // pred_region
      %5115 = dma.done [#allocation8], 512
    $region121: #{depthnet_forward.1} parent=1 // pred_fallthru
      _
    // Predicated region
    $region122: #{depthnet_forward.1} parent=1 // pred_check
      _
    $region123: #{depthnet_forward.1} parent=1 // pred_check_branch
      %5117 = sbr.rel (0) target = $region125
    $region124: #{depthnet_forward.1} parent=1 // pred_region
      %5119 = dma.done [#allocation20], 128
    $region125: #{depthnet_forward.1} parent=1 // pred_fallthru
      _
    // Predicated region
    $region126: #{depthnet_forward.1} parent=1 // pred_check
      _
    $region127: #{depthnet_forward.1} parent=1 // pred_check_branch
      %5121 = sbr.rel (0) target = $region129
    $region128: #{depthnet_forward.1} parent=1 // pred_region
      %5123 = dma.done [#allocation20], 32
    $region129: #{depthnet_forward.1} parent=1 // pred_fallthru
      _
    %5124 = vsyncpa [#allocation7], 1
    %5125 = vsyncpa [#allocation10], 1
    %5126 = vsyncpa [#allocation13], 1
    %5127 = vsyncpa [#allocation16], 1
    %5128 = vsyncpa [#allocation8], 1
    %5129 = vsyncpa [#allocation20], 1

</llo_original>
